<compile_context>
chip_gen: v5e
topology: v5e:2x2
jax: 0.10.0
libtpu: 0.0.40
codegen_flags: <defaults>
</compile_context>

<pallas_src>
import functools
import math

import jax
import jax.numpy as jnp
from jax import lax
from jax.experimental import pallas as pl
from jax.experimental.pallas import tpu as pltpu


# ----------------------------- kernel helpers -------------------------------

def _layernorm(x, w, b, eps):
    mu = jnp.mean(x, axis=-1, keepdims=True)
    var = jnp.mean((x - mu) ** 2, axis=-1, keepdims=True)
    return (x - mu) * lax.rsqrt(var + eps) * w + b


def _gelu_tanh(x):
    # torch.nn.functional.gelu(x, approximate='tanh')
    c = math.sqrt(2.0 / math.pi)
    return 0.5 * x * (1.0 + jnp.tanh(c * (x + 0.044715 * x * x * x)))


# --------------------------------- kernel -----------------------------------

def encoder_layer_kernel(x_ref,
                         ln1w_ref, ln1b_ref,
                         wq_ref, bq_ref, wk_ref, bk_ref, wv_ref, bv_ref,
                         wo_ref, bo_ref,
                         ln2w_ref, ln2b_ref,
                         w1_ref, b1_ref, w2_ref, b2_ref,
                         o_ref,
                         k_scratch, v_scratch, q_scratch,
                         *, num_heads, head_dim, head_group, seq_valid, eps):
    qi = pl.program_id(1)
    S = x_ref.shape[0]                      # padded sequence length
    TQ = o_ref.shape[0]                     # query tile
    D = num_heads * head_dim
    G = head_group
    num_groups = num_heads // G
    bf16 = jnp.bfloat16
    f32 = jnp.float32

    # ---- K / V for the full (padded) sequence: once per batch element ------
    @pl.when(qi == 0)
    def _():
        hf = _layernorm(x_ref[...].astype(f32),
                        ln1w_ref[...], ln1b_ref[...], eps).astype(bf16)
        # Two separate dots (instead of one (S, 2D) f32 temp); cast to bf16
        # right after the bias add to cap the step-0 f32 footprint.
        k = (jnp.dot(hf, wk_ref[...], preferred_element_type=f32)
             + bk_ref[...]).astype(bf16)
        k_scratch[...] = jnp.transpose(k.reshape(S, num_heads, head_dim), (1, 0, 2))
        v = (jnp.dot(hf, wv_ref[...], preferred_element_type=f32)
             + bv_ref[...]).astype(bf16)
        v_scratch[...] = jnp.transpose(v.reshape(S, num_heads, head_dim), (1, 0, 2))

    # ---- layer_norm1 + Q projection for this query tile --------------------
    q_start = pl.multiple_of(qi * TQ, TQ)
    x = x_ref[pl.ds(q_start, TQ), :].astype(f32)            # (TQ, D) residual
    h = _layernorm(x, ln1w_ref[...], ln1b_ref[...], eps)
    q = jnp.dot(h.astype(bf16), wq_ref[...],
                preferred_element_type=f32) + bq_ref[...]
    q = q * (head_dim ** -0.5)                              # fold scale into q
    # (H, TQ, Dh) bf16 staged in scratch so the head-group loop can use
    # aligned ref slices instead of value dynamic_slices.
    q_scratch[...] = jnp.transpose(
        q.reshape(TQ, num_heads, head_dim), (1, 0, 2)).astype(bf16)

    need_mask = seq_valid < S                               # static Python bool
    if need_mask:
        key_pos = lax.broadcasted_iota(jnp.int32, (1, 1, S), 2)
        kmask = key_pos < seq_valid

    # ---- head-group attention: bounds live f32 softmax temporaries ----------
    def group_body(g, acc):
        hs = g * G
        rs = g * (G * head_dim)
        if not isinstance(g, int):
            rs = pl.multiple_of(rs, 8)                      # aligned row slice
        qg = q_scratch[pl.ds(hs, G)]                        # (G, TQ, Dh) bf16
        kg = k_scratch[pl.ds(hs, G)]                        # (G, S,  Dh) bf16
        vg = v_scratch[pl.ds(hs, G)]                        # (G, S,  Dh) bf16

        scores = jnp.einsum('hqd,hkd->hqk', qg, kg,
                            preferred_element_type=f32)     # (G, TQ, S) f32
        if need_mask:
            scores = jnp.where(kmask, scores, jnp.float32(-1e30))
        m = jnp.max(scores, axis=-1, keepdims=True)
        e = jnp.exp(scores - m)
        p = e * pl.reciprocal(jnp.sum(e, axis=-1, keepdims=True), approx=True)

        attn = jnp.einsum('hqk,hkd->hqd', p.astype(bf16), vg,
                          preferred_element_type=f32)       # (G, TQ, Dh)
        attn2d = jnp.transpose(attn.astype(bf16),
                               (1, 0, 2)).reshape(TQ, G * head_dim)
        wo_g = wo_ref[pl.ds(rs, G * head_dim), :]           # (G*Dh, D) bf16
        return acc + jnp.dot(attn2d, wo_g, preferred_element_type=f32)

    acc0 = jnp.zeros((TQ, D), f32)
    if num_groups == 1:
        attn_out = group_body(0, acc0)
    else:
        attn_out = lax.fori_loop(0, num_groups, group_body, acc0)

    x = x + attn_out + bo_ref[...]                          # residual 1

    # ---- layer_norm2 + MLP ---------------------------------------------------
    h = _layernorm(x, ln2w_ref[...], ln2b_ref[...], eps)
    h = jnp.dot(h.astype(bf16), w1_ref[...],
                preferred_element_type=f32) + b1_ref[...]
    h = _gelu_tanh(h)
    h = jnp.dot(h.astype(bf16), w2_ref[...],
                preferred_element_type=f32) + b2_ref[...]
    o_ref[...] = (x + h).astype(o_ref.dtype)                # residual 2


# -------------------------------- wrapper ------------------------------------

def _pick_tiles(S, tq):
    """Padded sequence length and query-tile size (both multiples of 8)."""
    if tq is not None:
        assert tq % 8 == 0, "tq must be a multiple of 8"
        S_pad = ((S + tq - 1) // tq) * tq
        return S_pad, tq
    if S <= 256:
        S_pad = ((S + 7) // 8) * 8
        tq = max(d for d in range(8, S_pad + 1, 8) if S_pad % d == 0)
        return S_pad, tq
    # Large sequences (e.g. Siglip S=729): pad to a multiple of 128 so a
    # 128/256-wide query tile divides it; padded keys are masked in softmax.
    S_pad = ((S + 127) // 128) * 128
    return S_pad, (256 if S_pad % 256 == 0 else 128)


def _pick_head_group(num_heads, head_dim, tq, s_pad, requested):
    """Largest divisor of num_heads whose f32 score tile fits ~4 MiB."""
    if requested is not None:
        assert num_heads % requested == 0
        assert (requested * head_dim) % 8 == 0 or requested == num_heads
        return requested
    if head_dim % 8 != 0:
        return num_heads                     # single group -> static slices only
    budget = 4 * 1024 * 1024
    divisors = [g for g in range(1, num_heads + 1) if num_heads % g == 0]
    fitting = [g for g in divisors if g * tq * s_pad * 4 <= budget]
    return max(fitting) if fitting else 1


def siglip_encoder_layer(x, params, *, num_heads, eps=1e-6, tq=None, head_group=None):
    B, S, D = x.shape
    assert D % num_heads == 0
    head_dim = D // num_heads
    I = params['w1'].shape[1]

    S_pad, tq = _pick_tiles(S, tq)
    nq = S_pad // tq
    hg = _pick_head_group(num_heads, head_dim, tq, S_pad, head_group)

    bf16, f32 = jnp.bfloat16, jnp.float32

    x_in = x
    if S_pad != S:
        x_in = jnp.pad(x, ((0, 0), (0, S_pad - S), (0, 0)))

    # Matmul weights in bf16 (halves DMA + VMEM); biases & LN params in f32.
    weights = [
        params['ln1_w'].astype(f32).reshape(1, D),
        params['ln1_b'].astype(f32).reshape(1, D),
        params['wq'].astype(bf16), params['bq'].astype(f32).reshape(1, D),
        params['wk'].astype(bf16), params['bk'].astype(f32).reshape(1, D),
        params['wv'].astype(bf16), params['bv'].astype(f32).reshape(1, D),
        params['wo'].astype(bf16), params['bo'].astype(f32).reshape(1, D),
        params['ln2_w'].astype(f32).reshape(1, D),
        params['ln2_b'].astype(f32).reshape(1, D),
        params['w1'].astype(bf16), params['b1'].astype(f32).reshape(1, I),
        params['w2'].astype(bf16), params['b2'].astype(f32).reshape(1, D),
    ]

    nbytes = lambda a: a.size * a.dtype.itemsize
    weight_bytes = sum(nbytes(w) for w in weights)
    dh_pad = ((head_dim + 127) // 128) * 128                # lane padding of Dh
    kv_scratch_bytes = 2 * num_heads * S_pad * dh_pad * 2   # bf16 K/V scratch
    q_scratch_bytes = num_heads * tq * dh_pad * 2
    x_block = S_pad * D * x.dtype.itemsize
    out_block = tq * D * x.dtype.itemsize
    scores_bytes = 3 * hg * tq * S_pad * 4                  # scores/e/p (f32)
    mlp_bytes = 2 * tq * I * 4
    misc = 6 * tq * D * 4 + 2 * S_pad * D * 4               # residuals + qi==0 fill temps

    try:
        info = pltpu.get_tpu_info()
        vmem_cap = int(getattr(info, "vmem_capacity_bytes", 64 * 1024 * 1024))
    except Exception:
        vmem_cap = 64 * 1024 * 1024
    vmem_cap = max(vmem_cap, 48 * 1024 * 1024)

    flops = int(B * (2 * S_pad * D * 3 * D        # q/k/v projections
                     + 4 * S_pad * S_pad * D      # q@k.T and p@v
                     + 2 * S_pad * D * D          # out projection
                     + 4 * S_pad * D * I))        # MLP
    transcendentals = int(B * (num_heads * S_pad * S_pad + S_pad * I))
    bytes_accessed = int(2 * B * S_pad * D * x.dtype.itemsize + weight_bytes)

    kernel = functools.partial(encoder_layer_kernel,
                               num_heads=num_heads, head_dim=head_dim,
                               head_group=hg, seq_valid=S, eps=eps)

    def build_and_run(single_buffer):
        spec_kw = {}
        if single_buffer:
            spec_kw = dict(pipeline_mode=pl.Buffered(1))

        def full_spec(a):
            nd = a.ndim
            return pl.BlockSpec(a.shape, lambda b, q, _nd=nd: (0,) * _nd, **spec_kw)

        x_spec = pl.BlockSpec((pl.Squeezed(), S_pad, D),
                              lambda b, q: (b, 0, 0), **spec_kw)
        out_spec = pl.BlockSpec((pl.Squeezed(), tq, D), lambda b, q: (b, q, 0))

        wfactor = 1 if single_buffer else 2
        working = (wfactor * (weight_bytes + x_block) + 2 * out_block
                   + kv_scratch_bytes + q_scratch_bytes
                   + scores_bytes + mlp_bytes + misc)
        vmem_limit = int(min(max(working, 32 * 1024 * 1024),
                             int(0.85 * vmem_cap)))

        return pl.pallas_call(
            kernel,
            out_shape=jax.ShapeDtypeStruct((B, S_pad, D), x.dtype),
            grid=(B, nq),
            in_specs=[x_spec] + [full_spec(w) for w in weights],
            out_specs=out_spec,
            scratch_shapes=[pltpu.VMEM((num_heads, S_pad, head_dim), bf16),  # K
                            pltpu.VMEM((num_heads, S_pad, head_dim), bf16),  # V
                            pltpu.VMEM((num_heads, tq, head_dim), bf16)],    # Q
            compiler_params=pltpu.CompilerParams(
                dimension_semantics=("parallel", "arbitrary"),
                vmem_limit_bytes=vmem_limit),
            cost_estimate=pl.CostEstimate(flops=flops,
                                          transcendentals=transcendentals,
                                          bytes_accessed=bytes_accessed),
        )(x_in, *weights)

    if hasattr(pl, "Buffered"):
        try:
            out = jax.block_until_ready(build_and_run(True))
        except Exception:
            # Fallback for JAX builds that reject single-buffered BlockSpecs.
            out = jax.block_until_ready(build_and_run(False))
    else:
        out = jax.block_until_ready(build_and_run(False))

    if S_pad != S:
        out = out[:, :S, :]
    return out


# --------------------------- pure-JAX reference ------------------------------

def reference(x, p, *, num_heads, eps=1e-6):
    B, S, D = x.shape
    Dh = D // num_heads

    def ln(x, w, b):
        mu = jnp.mean(x, axis=-1, keepdims=True)
        var = jnp.mean((x - mu) ** 2, axis=-1, keepdims=True)
        return (x - mu) / jnp.sqrt(var + eps) * w + b

    residual = x
    h = ln(x, p['ln1_w'], p['ln1_b'])
    q = h @ p['wq'] + p['bq']
    k = h @ p['wk'] + p['bk']
    v = h @ p['wv'] + p['bv']
    q = q.reshape(B, S, num_heads, Dh).transpose(0, 2, 1, 3)
    k = k.reshape(B, S, num_heads, Dh).transpose(0, 2, 1, 3)
    v = v.reshape(B, S, num_heads, Dh).transpose(0, 2, 1, 3)
    scores = jnp.einsum('bhqd,bhkd->bhqk', q, k) * (Dh ** -0.5)
    probs = jax.nn.softmax(scores, axis=-1)
    attn = jnp.einsum('bhqk,bhkd->bhqd', probs, v)
    attn = attn.transpose(0, 2, 1, 3).reshape(B, S, D)
    attn = attn @ p['wo'] + p['bo']
    x = residual + attn
    residual = x
    h = ln(x, p['ln2_w'], p['ln2_b'])
    h = h @ p['w1'] + p['b1']
    c = math.sqrt(2.0 / math.pi)
    h = 0.5 * h * (1.0 + jnp.tanh(c * (h + 0.044715 * h ** 3)))
    h = h @ p['w2'] + p['b2']
    return residual + h


# ----------------------------------- main ------------------------------------

if __name__ == "__main__":
    # Small synthetic Siglip config: hidden=128, heads=4 (head_dim=32),
    # intermediate=256, seq=16, batch=2.
    B, S, D, H, I = 2, 16, 128, 4, 256
    eps = 1e-6

    key = jax.random.PRNGKey(0)
    keys = jax.random.split(key, 16)
    init = lambda k, shape, scale=0.05: (scale * jax.random.normal(k, shape)).astype(jnp.float32)

    params = {
        'ln1_w': jnp.ones((1, D), jnp.float32),
        'ln1_b': jnp.zeros((1, D), jnp.float32),
        'wq': init(keys[0], (D, D)), 'bq': init(keys[1], (1, D)),
        'wk': init(keys[2], (D, D)), 'bk': init(keys[3], (1, D)),
        'wv': init(keys[4], (D, D)), 'bv': init(keys[5], (1, D)),
        'wo': init(keys[6], (D, D)), 'bo': init(keys[7], (1, D)),
        'ln2_w': jnp.ones((1, D), jnp.float32),
        'ln2_b': jnp.zeros((1, D), jnp.float32),
        'w1': init(keys[8], (D, I)), 'b1': init(keys[9], (1, I)),
        'w2': init(keys[10], (I, D)), 'b2': init(keys[11], (1, D)),
    }

    # Case 1: tq=8 exercises the query-tile axis (nq=2) + K/V scratch carry.
    x = jax.random.normal(keys[12], (B, S, D), dtype=jnp.float32)
    out = siglip_encoder_layer(x, params, num_heads=H, eps=eps, tq=8)
    ref = reference(x, params, num_heads=H, eps=eps)
    assert out.shape == (B, S, D)
    # Loose tolerance: matmuls use bf16 inputs (f32 accumulation) + approx recip.
    assert jnp.allclose(out, ref, atol=5e-2, rtol=5e-2), (
        f"max abs diff {jnp.max(jnp.abs(out - ref))}")

    # Case 2: non-8-divisible sequence length (padding + key mask) and
    # head_group=2 (multi-group fori_loop softmax path).
    B2, S2 = 1, 12
    x2 = jax.random.normal(keys[13], (B2, S2, D), dtype=jnp.float32)
    out2 = siglip_encoder_layer(x2, params, num_heads=H, eps=eps, head_group=2)
    ref2 = reference(x2, params, num_heads=H, eps=eps)
    assert out2.shape == (B2, S2, D)
    assert jnp.allclose(out2, ref2, atol=5e-2, rtol=5e-2), (
        f"max abs diff {jnp.max(jnp.abs(out2 - ref2))}")

    print("KERNEL_OK")
</pallas_src>

<mosaic_0001>
module attributes {stable_mosaic.version = 11 : i64} {
  func.func @encoder_layer_kernel(%arg0: i32, %arg1: i32, %arg2: memref<1x16x128xf32, #tpu.memory_space<vmem>>, %arg3: memref<1x128xf32, #tpu.memory_space<vmem>>, %arg4: memref<1x128xf32, #tpu.memory_space<vmem>>, %arg5: memref<128x128xbf16, #tpu.memory_space<vmem>>, %arg6: memref<1x128xf32, #tpu.memory_space<vmem>>, %arg7: memref<128x128xbf16, #tpu.memory_space<vmem>>, %arg8: memref<1x128xf32, #tpu.memory_space<vmem>>, %arg9: memref<128x128xbf16, #tpu.memory_space<vmem>>, %arg10: memref<1x128xf32, #tpu.memory_space<vmem>>, %arg11: memref<128x128xbf16, #tpu.memory_space<vmem>>, %arg12: memref<1x128xf32, #tpu.memory_space<vmem>>, %arg13: memref<1x128xf32, #tpu.memory_space<vmem>>, %arg14: memref<1x128xf32, #tpu.memory_space<vmem>>, %arg15: memref<128x256xbf16, #tpu.memory_space<vmem>>, %arg16: memref<1x256xf32, #tpu.memory_space<vmem>>, %arg17: memref<256x128xbf16, #tpu.memory_space<vmem>>, %arg18: memref<1x128xf32, #tpu.memory_space<vmem>>, %arg19: memref<1x8x128xf32, #tpu.memory_space<vmem>>, %arg20: memref<4x16x32xbf16, #tpu.memory_space<vmem>>, %arg21: memref<4x16x32xbf16, #tpu.memory_space<vmem>>, %arg22: memref<4x8x32xbf16, #tpu.memory_space<vmem>>) attributes {dimension_semantics = [#tpu.dimension_semantics<parallel>, #tpu.dimension_semantics<arbitrary>], iteration_bounds = array<i64: 2, 2>, scalar_prefetch = 0 : i64, scratch_operands = 3 : i64, tpu.core_type = #tpu.core_type<tc>, window_params = [{pipeline_mode = #tpu.pipeline_mode<synchronous>, transform_indices = @transform_0, window_bounds = array<i64: 1, 16, 128>}, {pipeline_mode = #tpu.pipeline_mode<synchronous>, transform_indices = @transform_1, window_bounds = array<i64: 1, 128>}, {pipeline_mode = #tpu.pipeline_mode<synchronous>, transform_indices = @transform_2, window_bounds = array<i64: 1, 128>}, {pipeline_mode = #tpu.pipeline_mode<synchronous>, transform_indices = @transform_3, window_bounds = array<i64: 128, 128>}, {pipeline_mode = #tpu.pipeline_mode<synchronous>, transform_indices = @transform_4, window_bounds = array<i64: 1, 128>}, {pipeline_mode = #tpu.pipeline_mode<synchronous>, transform_indices = @transform_5, window_bounds = array<i64: 128, 128>}, {pipeline_mode = #tpu.pipeline_mode<synchronous>, transform_indices = @transform_6, window_bounds = array<i64: 1, 128>}, {pipeline_mode = #tpu.pipeline_mode<synchronous>, transform_indices = @transform_7, window_bounds = array<i64: 128, 128>}, {pipeline_mode = #tpu.pipeline_mode<synchronous>, transform_indices = @transform_8, window_bounds = array<i64: 1, 128>}, {pipeline_mode = #tpu.pipeline_mode<synchronous>, transform_indices = @transform_9, window_bounds = array<i64: 128, 128>}, {pipeline_mode = #tpu.pipeline_mode<synchronous>, transform_indices = @transform_10, window_bounds = array<i64: 1, 128>}, {pipeline_mode = #tpu.pipeline_mode<synchronous>, transform_indices = @transform_11, window_bounds = array<i64: 1, 128>}, {pipeline_mode = #tpu.pipeline_mode<synchronous>, transform_indices = @transform_12, window_bounds = array<i64: 1, 128>}, {pipeline_mode = #tpu.pipeline_mode<synchronous>, transform_indices = @transform_13, window_bounds = array<i64: 128, 256>}, {pipeline_mode = #tpu.pipeline_mode<synchronous>, transform_indices = @transform_14, window_bounds = array<i64: 1, 256>}, {pipeline_mode = #tpu.pipeline_mode<synchronous>, transform_indices = @transform_15, window_bounds = array<i64: 256, 128>}, {pipeline_mode = #tpu.pipeline_mode<synchronous>, transform_indices = @transform_16, window_bounds = array<i64: 1, 128>}, {transform_indices = @transform_17, window_bounds = array<i64: 1, 8, 128>}]} {
    %c0_i32 = arith.constant 0 : i32
    %0 = arith.cmpi eq, %arg1, %c0_i32 : i32
    %1 = arith.extui %0 : i1 to i32
    %c0_i32_0 = arith.constant 0 : i32
    %2 = arith.cmpi ne, %1, %c0_i32_0 : i32
    scf.if %2 {
      %c0_64 = arith.constant 0 : index
      %c0_65 = arith.constant 0 : index
      %c0_66 = arith.constant 0 : index
      %124 = vector.load %arg2[%c0_64, %c0_65, %c0_66] : memref<1x16x128xf32, #tpu.memory_space<vmem>>, vector<1x16x128xf32>
      %125 = vector.shape_cast %124 : vector<1x16x128xf32> to vector<16x128xf32>
      %c0_67 = arith.constant 0 : index
      %c0_68 = arith.constant 0 : index
      %126 = vector.load %arg3[%c0_67, %c0_68] : memref<1x128xf32, #tpu.memory_space<vmem>>, vector<1x128xf32>
      %c0_69 = arith.constant 0 : index
      %c0_70 = arith.constant 0 : index
      %127 = vector.load %arg4[%c0_69, %c0_70] : memref<1x128xf32, #tpu.memory_space<vmem>>, vector<1x128xf32>
      %cst_71 = arith.constant dense<0.000000e+00> : vector<16xf32>
      %128 = vector.multi_reduction <add>, %125, %cst_71 [1] : vector<16x128xf32> to vector<16xf32>
      %129 = vector.shape_cast %128 : vector<16xf32> to vector<16x1xf32>
      %cst_72 = arith.constant 1.280000e+02 : f32
      %130 = vector.broadcast %cst_72 : f32 to vector<16x1xf32>
      %131 = arith.divf %129, %130 : vector<16x1xf32>
      %132 = vector.broadcast %131 : vector<16x1xf32> to vector<16x128xf32>
      %133 = arith.subf %125, %132 : vector<16x128xf32>
      %134 = arith.mulf %133, %133 : vector<16x128xf32>
      %cst_73 = arith.constant dense<0.000000e+00> : vector<16xf32>
      %135 = vector.multi_reduction <add>, %134, %cst_73 [1] : vector<16x128xf32> to vector<16xf32>
      %136 = vector.shape_cast %135 : vector<16xf32> to vector<16x1xf32>
      %cst_74 = arith.constant 1.280000e+02 : f32
      %137 = vector.broadcast %cst_74 : f32 to vector<16x1xf32>
      %138 = arith.divf %136, %137 : vector<16x1xf32>
      %139 = vector.broadcast %131 : vector<16x1xf32> to vector<16x128xf32>
      %140 = arith.subf %125, %139 : vector<16x128xf32>
      %cst_75 = arith.constant 9.99999997E-7 : f32
      %141 = vector.broadcast %cst_75 : f32 to vector<16x1xf32>
      %142 = arith.addf %138, %141 : vector<16x1xf32>
      %143 = math.rsqrt %142 : vector<16x1xf32>
      %144 = vector.broadcast %143 : vector<16x1xf32> to vector<16x128xf32>
      %145 = arith.mulf %140, %144 : vector<16x128xf32>
      %146 = vector.broadcast %126 : vector<1x128xf32> to vector<16x128xf32>
      %147 = arith.mulf %145, %146 : vector<16x128xf32>
      %148 = vector.broadcast %127 : vector<1x128xf32> to vector<16x128xf32>
      %149 = arith.addf %147, %148 : vector<16x128xf32>
      %150 = arith.truncf %149 : vector<16x128xf32> to vector<16x128xbf16>
      %c0_76 = arith.constant 0 : index
      %c0_77 = arith.constant 0 : index
      %151 = vector.load %arg7[%c0_76, %c0_77] : memref<128x128xbf16, #tpu.memory_space<vmem>>, vector<128x128xbf16>
      %cst_78 = arith.constant dense<0.000000e+00> : vector<16x128xf32>
      %152 = tpu.matmul %150, %151, %cst_78 {dimension_numbers = #tpu.dot_dimension_numbers<[1], [0], [0], [1], [0, 0, 1, 1], [], []>} : vector<16x128xbf16>, vector<128x128xbf16>, vector<16x128xf32> -> vector<16x128xf32>
      %c0_79 = arith.constant 0 : index
      %c0_80 = arith.constant 0 : index
      %153 = vector.load %arg8[%c0_79, %c0_80] : memref<1x128xf32, #tpu.memory_space<vmem>>, vector<1x128xf32>
      %154 = vector.broadcast %153 : vector<1x128xf32> to vector<16x128xf32>
      %155 = arith.addf %152, %154 : vector<16x128xf32>
      %156 = arith.truncf %155 : vector<16x128xf32> to vector<16x128xbf16>
      %157 = vector.shape_cast %156 : vector<16x128xbf16> to vector<16x4x32xbf16>
      %158 = tpu.transpose %157, [1, 0, 2] : vector<16x4x32xbf16> -> vector<4x16x32xbf16>
      %c0_81 = arith.constant 0 : index
      %c0_82 = arith.constant 0 : index
      %c0_83 = arith.constant 0 : index
      %159 = vector.load %arg20[%c0_81, %c0_82, %c0_83] : memref<4x16x32xbf16, #tpu.memory_space<vmem>>, vector<4x16x32xbf16>
      tpu.vector_store %arg20[%c0_81, %c0_82, %c0_83], %158 {strides = array<i32>} : memref<4x16x32xbf16, #tpu.memory_space<vmem>>, vector<4x16x32xbf16>,
      %c0_84 = arith.constant 0 : index
      %c0_85 = arith.constant 0 : index
      %160 = vector.load %arg9[%c0_84, %c0_85] : memref<128x128xbf16, #tpu.memory_space<vmem>>, vector<128x128xbf16>
      %cst_86 = arith.constant dense<0.000000e+00> : vector<16x128xf32>
      %161 = tpu.matmul %150, %160, %cst_86 {dimension_numbers = #tpu.dot_dimension_numbers<[1], [0], [0], [1], [0, 0, 1, 1], [], []>} : vector<16x128xbf16>, vector<128x128xbf16>, vector<16x128xf32> -> vector<16x128xf32>
      %c0_87 = arith.constant 0 : index
      %c0_88 = arith.constant 0 : index
      %162 = vector.load %arg10[%c0_87, %c0_88] : memref<1x128xf32, #tpu.memory_space<vmem>>, vector<1x128xf32>
      %163 = vector.broadcast %162 : vector<1x128xf32> to vector<16x128xf32>
      %164 = arith.addf %161, %163 : vector<16x128xf32>
      %165 = arith.truncf %164 : vector<16x128xf32> to vector<16x128xbf16>
      %166 = vector.shape_cast %165 : vector<16x128xbf16> to vector<16x4x32xbf16>
      %167 = tpu.transpose %166, [1, 0, 2] : vector<16x4x32xbf16> -> vector<4x16x32xbf16>
      %c0_89 = arith.constant 0 : index
      %c0_90 = arith.constant 0 : index
      %c0_91 = arith.constant 0 : index
      %168 = vector.load %arg21[%c0_89, %c0_90, %c0_91] : memref<4x16x32xbf16, #tpu.memory_space<vmem>>, vector<4x16x32xbf16>
      tpu.vector_store %arg21[%c0_89, %c0_90, %c0_91], %167 {strides = array<i32>} : memref<4x16x32xbf16, #tpu.memory_space<vmem>>, vector<4x16x32xbf16>,
    } else {
    }
    %c8_i32 = arith.constant 8 : i32
    %3 = arith.muli %arg1, %c8_i32 : i32
    %4 = tpu.assume_multiple %3, 8 : i32
    %c0 = arith.constant 0 : index
    %5 = arith.index_cast %4 : i32 to index
    %c0_1 = arith.constant 0 : index
    %6 = vector.load %arg2[%c0, %5, %c0_1] : memref<1x16x128xf32, #tpu.memory_space<vmem>>, vector<1x8x128xf32>
    %7 = vector.shape_cast %6 : vector<1x8x128xf32> to vector<8x128xf32>
    %c0_2 = arith.constant 0 : index
    %c0_3 = arith.constant 0 : index
    %8 = vector.load %arg3[%c0_2, %c0_3] : memref<1x128xf32, #tpu.memory_space<vmem>>, vector<1x128xf32>
    %c0_4 = arith.constant 0 : index
    %c0_5 = arith.constant 0 : index
    %9 = vector.load %arg4[%c0_4, %c0_5] : memref<1x128xf32, #tpu.memory_space<vmem>>, vector<1x128xf32>
    %cst = arith.constant dense<0.000000e+00> : vector<8xf32>
    %10 = vector.multi_reduction <add>, %7, %cst [1] : vector<8x128xf32> to vector<8xf32>
    %11 = vector.shape_cast %10 : vector<8xf32> to vector<8x1xf32>
    %cst_6 = arith.constant 1.280000e+02 : f32
    %12 = vector.broadcast %cst_6 : f32 to vector<8x1xf32>
    %13 = arith.divf %11, %12 : vector<8x1xf32>
    %14 = vector.broadcast %13 : vector<8x1xf32> to vector<8x128xf32>
    %15 = arith.subf %7, %14 : vector<8x128xf32>
    %16 = arith.mulf %15, %15 : vector<8x128xf32>
    %cst_7 = arith.constant dense<0.000000e+00> : vector<8xf32>
    %17 = vector.multi_reduction <add>, %16, %cst_7 [1] : vector<8x128xf32> to vector<8xf32>
    %18 = vector.shape_cast %17 : vector<8xf32> to vector<8x1xf32>
    %cst_8 = arith.constant 1.280000e+02 : f32
    %19 = vector.broadcast %cst_8 : f32 to vector<8x1xf32>
    %20 = arith.divf %18, %19 : vector<8x1xf32>
    %21 = vector.broadcast %13 : vector<8x1xf32> to vector<8x128xf32>
    %22 = arith.subf %7, %21 : vector<8x128xf32>
    %cst_9 = arith.constant 9.99999997E-7 : f32
    %23 = vector.broadcast %cst_9 : f32 to vector<8x1xf32>
    %24 = arith.addf %20, %23 : vector<8x1xf32>
    %25 = math.rsqrt %24 : vector<8x1xf32>
    %26 = vector.broadcast %25 : vector<8x1xf32> to vector<8x128xf32>
    %27 = arith.mulf %22, %26 : vector<8x128xf32>
    %28 = vector.broadcast %8 : vector<1x128xf32> to vector<8x128xf32>
    %29 = arith.mulf %27, %28 : vector<8x128xf32>
    %30 = vector.broadcast %9 : vector<1x128xf32> to vector<8x128xf32>
    %31 = arith.addf %29, %30 : vector<8x128xf32>
    %32 = arith.truncf %31 : vector<8x128xf32> to vector<8x128xbf16>
    %c0_10 = arith.constant 0 : index
    %c0_11 = arith.constant 0 : index
    %33 = vector.load %arg5[%c0_10, %c0_11] : memref<128x128xbf16, #tpu.memory_space<vmem>>, vector<128x128xbf16>
    %cst_12 = arith.constant dense<0.000000e+00> : vector<8x128xf32>
    %34 = tpu.matmul %32, %33, %cst_12 {dimension_numbers = #tpu.dot_dimension_numbers<[1], [0], [0], [1], [0, 0, 1, 1], [], []>} : vector<8x128xbf16>, vector<128x128xbf16>, vector<8x128xf32> -> vector<8x128xf32>
    %c0_13 = arith.constant 0 : index
    %c0_14 = arith.constant 0 : index
    %35 = vector.load %arg6[%c0_13, %c0_14] : memref<1x128xf32, #tpu.memory_space<vmem>>, vector<1x128xf32>
    %36 = vector.broadcast %35 : vector<1x128xf32> to vector<8x128xf32>
    %37 = arith.addf %34, %36 : vector<8x128xf32>
    %cst_15 = arith.constant 0.176776692 : f32
    %38 = vector.broadcast %cst_15 : f32 to vector<8x128xf32>
    %39 = arith.mulf %37, %38 : vector<8x128xf32>
    %40 = vector.shape_cast %39 : vector<8x128xf32> to vector<8x4x32xf32>
    %41 = tpu.transpose %40, [1, 0, 2] : vector<8x4x32xf32> -> vector<4x8x32xf32>
    %42 = arith.truncf %41 : vector<4x8x32xf32> to vector<4x8x32xbf16>
    %c0_16 = arith.constant 0 : index
    %c0_17 = arith.constant 0 : index
    %c0_18 = arith.constant 0 : index
    %43 = vector.load %arg22[%c0_16, %c0_17, %c0_18] : memref<4x8x32xbf16, #tpu.memory_space<vmem>>, vector<4x8x32xbf16>
    tpu.vector_store %arg22[%c0_16, %c0_17, %c0_18], %42 {strides = array<i32>} : memref<4x8x32xbf16, #tpu.memory_space<vmem>>, vector<4x8x32xbf16>,
    %cst_19 = arith.constant 0.000000e+00 : f32
    %44 = vector.broadcast %cst_19 : f32 to vector<8x128xf32>
    %c0_20 = arith.constant 0 : index
    %c0_21 = arith.constant 0 : index
    %c0_22 = arith.constant 0 : index
    %45 = vector.load %arg22[%c0_20, %c0_21, %c0_22] : memref<4x8x32xbf16, #tpu.memory_space<vmem>>, vector<4x8x32xbf16>
    %c0_23 = arith.constant 0 : index
    %c0_24 = arith.constant 0 : index
    %c0_25 = arith.constant 0 : index
    %46 = vector.load %arg20[%c0_23, %c0_24, %c0_25] : memref<4x16x32xbf16, #tpu.memory_space<vmem>>, vector<4x16x32xbf16>
    %c0_26 = arith.constant 0 : index
    %c0_27 = arith.constant 0 : index
    %c0_28 = arith.constant 0 : index
    %47 = vector.load %arg21[%c0_26, %c0_27, %c0_28] : memref<4x16x32xbf16, #tpu.memory_space<vmem>>, vector<4x16x32xbf16>
    "tpu.trace_start"() <{level = 10 : i32, message = "hqd,hkd->hqk"}> : () -> ()
    %cst_29 = arith.constant dense<0.000000e+00> : vector<4x8x16xf32>
    %48 = tpu.matmul %45, %46, %cst_29 {dimension_numbers = #tpu.dot_dimension_numbers<[2], [2], [1], [1], [0, 0, 0, 1, 1, 1], [0], [0]>} : vector<4x8x32xbf16>, vector<4x16x32xbf16>, vector<4x8x16xf32> -> vector<4x8x16xf32>
    "tpu.trace_stop"() : () -> ()
    %cst_30 = arith.constant dense<0xFF800000> : vector<4x8xf32>
    %49 = vector.multi_reduction <maximumf>, %48, %cst_30 [2] : vector<4x8x16xf32> to vector<4x8xf32>
    %50 = vector.shape_cast %49 : vector<4x8xf32> to vector<4x8x1xf32>
    %51 = vector.broadcast %50 : vector<4x8x1xf32> to vector<4x8x16xf32>
    %52 = arith.subf %48, %51 : vector<4x8x16xf32>
    %53 = math.exp %52 : vector<4x8x16xf32>
    %cst_31 = arith.constant dense<0.000000e+00> : vector<4x8xf32>
    %54 = vector.multi_reduction <add>, %53, %cst_31 [2] : vector<4x8x16xf32> to vector<4x8xf32>
    %55 = vector.shape_cast %54 : vector<4x8xf32> to vector<4x8x1xf32>
    %56 = tpu.reciprocal %55 {approx = true} : vector<4x8x1xf32> -> vector<4x8x1xf32>
    %57 = vector.broadcast %56 : vector<4x8x1xf32> to vector<4x8x16xf32>
    %58 = arith.mulf %53, %57 : vector<4x8x16xf32>
    %59 = arith.truncf %58 : vector<4x8x16xf32> to vector<4x8x16xbf16>
    "tpu.trace_start"() <{level = 10 : i32, message = "hqk,hkd->hqd"}> : () -> ()
    %cst_32 = arith.constant dense<0.000000e+00> : vector<4x8x32xf32>
    %60 = tpu.matmul %59, %47, %cst_32 {dimension_numbers = #tpu.dot_dimension_numbers<[2], [1], [1], [2], [0, 0, 0, 1, 1, 2], [0], [0]>} : vector<4x8x16xbf16>, vector<4x16x32xbf16>, vector<4x8x32xf32> -> vector<4x8x32xf32>
    "tpu.trace_stop"() : () -> ()
    %61 = arith.truncf %60 : vector<4x8x32xf32> to vector<4x8x32xbf16>
    %62 = tpu.transpose %61, [1, 0, 2] : vector<4x8x32xbf16> -> vector<8x4x32xbf16>
    %63 = vector.shape_cast %62 : vector<8x4x32xbf16> to vector<8x128xbf16>
    %c0_33 = arith.constant 0 : index
    %c0_34 = arith.constant 0 : index
    %64 = vector.load %arg11[%c0_33, %c0_34] : memref<128x128xbf16, #tpu.memory_space<vmem>>, vector<128x128xbf16>
    %cst_35 = arith.constant dense<0.000000e+00> : vector<8x128xf32>
    %65 = tpu.matmul %63, %64, %cst_35 {dimension_numbers = #tpu.dot_dimension_numbers<[1], [0], [0], [1], [0, 0, 1, 1], [], []>} : vector<8x128xbf16>, vector<128x128xbf16>, vector<8x128xf32> -> vector<8x128xf32>
    %66 = arith.addf %44, %65 : vector<8x128xf32>
    %67 = arith.addf %7, %66 : vector<8x128xf32>
    %c0_36 = arith.constant 0 : index
    %c0_37 = arith.constant 0 : index
    %68 = vector.load %arg12[%c0_36, %c0_37] : memref<1x128xf32, #tpu.memory_space<vmem>>, vector<1x128xf32>
    %69 = vector.broadcast %68 : vector<1x128xf32> to vector<8x128xf32>
    %70 = arith.addf %67, %69 : vector<8x128xf32>
    %c0_38 = arith.constant 0 : index
    %c0_39 = arith.constant 0 : index
    %71 = vector.load %arg13[%c0_38, %c0_39] : memref<1x128xf32, #tpu.memory_space<vmem>>, vector<1x128xf32>
    %c0_40 = arith.constant 0 : index
    %c0_41 = arith.constant 0 : index
    %72 = vector.load %arg14[%c0_40, %c0_41] : memref<1x128xf32, #tpu.memory_space<vmem>>, vector<1x128xf32>
    %cst_42 = arith.constant dense<0.000000e+00> : vector<8xf32>
    %73 = vector.multi_reduction <add>, %70, %cst_42 [1] : vector<8x128xf32> to vector<8xf32>
    %74 = vector.shape_cast %73 : vector<8xf32> to vector<8x1xf32>
    %cst_43 = arith.constant 1.280000e+02 : f32
    %75 = vector.broadcast %cst_43 : f32 to vector<8x1xf32>
    %76 = arith.divf %74, %75 : vector<8x1xf32>
    %77 = vector.broadcast %76 : vector<8x1xf32> to vector<8x128xf32>
    %78 = arith.subf %70, %77 : vector<8x128xf32>
    %79 = arith.mulf %78, %78 : vector<8x128xf32>
    %cst_44 = arith.constant dense<0.000000e+00> : vector<8xf32>
    %80 = vector.multi_reduction <add>, %79, %cst_44 [1] : vector<8x128xf32> to vector<8xf32>
    %81 = vector.shape_cast %80 : vector<8xf32> to vector<8x1xf32>
    %cst_45 = arith.constant 1.280000e+02 : f32
    %82 = vector.broadcast %cst_45 : f32 to vector<8x1xf32>
    %83 = arith.divf %81, %82 : vector<8x1xf32>
    %84 = vector.broadcast %76 : vector<8x1xf32> to vector<8x128xf32>
    %85 = arith.subf %70, %84 : vector<8x128xf32>
    %cst_46 = arith.constant 9.99999997E-7 : f32
    %86 = vector.broadcast %cst_46 : f32 to vector<8x1xf32>
    %87 = arith.addf %83, %86 : vector<8x1xf32>
    %88 = math.rsqrt %87 : vector<8x1xf32>
    %89 = vector.broadcast %88 : vector<8x1xf32> to vector<8x128xf32>
    %90 = arith.mulf %85, %89 : vector<8x128xf32>
    %91 = vector.broadcast %71 : vector<1x128xf32> to vector<8x128xf32>
    %92 = arith.mulf %90, %91 : vector<8x128xf32>
    %93 = vector.broadcast %72 : vector<1x128xf32> to vector<8x128xf32>
    %94 = arith.addf %92, %93 : vector<8x128xf32>
    %95 = arith.truncf %94 : vector<8x128xf32> to vector<8x128xbf16>
    %c0_47 = arith.constant 0 : index
    %c0_48 = arith.constant 0 : index
    %96 = vector.load %arg15[%c0_47, %c0_48] : memref<128x256xbf16, #tpu.memory_space<vmem>>, vector<128x256xbf16>
    %cst_49 = arith.constant dense<0.000000e+00> : vector<8x256xf32>
    %97 = tpu.matmul %95, %96, %cst_49 {dimension_numbers = #tpu.dot_dimension_numbers<[1], [0], [0], [1], [0, 0, 1, 1], [], []>} : vector<8x128xbf16>, vector<128x256xbf16>, vector<8x256xf32> -> vector<8x256xf32>
    %c0_50 = arith.constant 0 : index
    %c0_51 = arith.constant 0 : index
    %98 = vector.load %arg16[%c0_50, %c0_51] : memref<1x256xf32, #tpu.memory_space<vmem>>, vector<1x256xf32>
    %99 = vector.broadcast %98 : vector<1x256xf32> to vector<8x256xf32>
    %100 = arith.addf %97, %99 : vector<8x256xf32>
    %cst_52 = arith.constant 5.000000e-01 : f32
    %101 = vector.broadcast %cst_52 : f32 to vector<8x256xf32>
    %102 = arith.mulf %101, %100 : vector<8x256xf32>
    %cst_53 = arith.constant 4.471500e-02 : f32
    %103 = vector.broadcast %cst_53 : f32 to vector<8x256xf32>
    %104 = arith.mulf %103, %100 : vector<8x256xf32>
    %105 = arith.mulf %104, %100 : vector<8x256xf32>
    %106 = arith.mulf %105, %100 : vector<8x256xf32>
    %107 = arith.addf %100, %106 : vector<8x256xf32>
    %cst_54 = arith.constant 0.797884583 : f32
    %108 = vector.broadcast %cst_54 : f32 to vector<8x256xf32>
    %109 = arith.mulf %108, %107 : vector<8x256xf32>
    %110 = math.tanh %109 : vector<8x256xf32>
    %cst_55 = arith.constant 1.000000e+00 : f32
    %111 = vector.broadcast %cst_55 : f32 to vector<8x256xf32>
    %112 = arith.addf %111, %110 : vector<8x256xf32>
    %113 = arith.mulf %102, %112 : vector<8x256xf32>
    %114 = arith.truncf %113 : vector<8x256xf32> to vector<8x256xbf16>
    %c0_56 = arith.constant 0 : index
    %c0_57 = arith.constant 0 : index
    %115 = vector.load %arg17[%c0_56, %c0_57] : memref<256x128xbf16, #tpu.memory_space<vmem>>, vector<256x128xbf16>
    %cst_58 = arith.constant dense<0.000000e+00> : vector<8x128xf32>
    %116 = tpu.matmul %114, %115, %cst_58 {dimension_numbers = #tpu.dot_dimension_numbers<[1], [0], [0], [1], [0, 0, 1, 1], [], []>} : vector<8x256xbf16>, vector<256x128xbf16>, vector<8x128xf32> -> vector<8x128xf32>
    %c0_59 = arith.constant 0 : index
    %c0_60 = arith.constant 0 : index
    %117 = vector.load %arg18[%c0_59, %c0_60] : memref<1x128xf32, #tpu.memory_space<vmem>>, vector<1x128xf32>
    %118 = vector.broadcast %117 : vector<1x128xf32> to vector<8x128xf32>
    %119 = arith.addf %116, %118 : vector<8x128xf32>
    %120 = arith.addf %70, %119 : vector<8x128xf32>
    %c0_61 = arith.constant 0 : index
    %c0_62 = arith.constant 0 : index
    %c0_63 = arith.constant 0 : index
    %121 = vector.load %arg19[%c0_61, %c0_62, %c0_63] : memref<1x8x128xf32, #tpu.memory_space<vmem>>, vector<1x8x128xf32>
    %122 = vector.shape_cast %121 : vector<1x8x128xf32> to vector<8x128xf32>
    %123 = vector.shape_cast %120 : vector<8x128xf32> to vector<1x8x128xf32>
    tpu.vector_store %arg19[%c0_61, %c0_62, %c0_63], %123 {strides = array<i32>} : memref<1x8x128xf32, #tpu.memory_space<vmem>>, vector<1x8x128xf32>,
    return
  }
  func.func @transform_0(%arg0: i32, %arg1: i32) -> (i32, i32, i32) {
    %c0_i32 = arith.constant 0 : i32
    %c0_i32_0 = arith.constant 0 : i32
    %c0_i32_1 = arith.constant 0 : i32
    return %arg0, %c0_i32, %c0_i32_0 : i32, i32, i32
  }
  func.func @transform_1(%arg0: i32, %arg1: i32) -> (i32, i32) {
    %c0_i32 = arith.constant 0 : i32
    %c0_i32_0 = arith.constant 0 : i32
    %c0_i32_1 = arith.constant 0 : i32
    return %c0_i32, %c0_i32_0 : i32, i32
  }
  func.func @transform_2(%arg0: i32, %arg1: i32) -> (i32, i32) {
    %c0_i32 = arith.constant 0 : i32
    %c0_i32_0 = arith.constant 0 : i32
    %c0_i32_1 = arith.constant 0 : i32
    return %c0_i32, %c0_i32_0 : i32, i32
  }
  func.func @transform_3(%arg0: i32, %arg1: i32) -> (i32, i32) {
    %c0_i32 = arith.constant 0 : i32
    %c0_i32_0 = arith.constant 0 : i32
    %c0_i32_1 = arith.constant 0 : i32
    return %c0_i32, %c0_i32_0 : i32, i32
  }
  func.func @transform_4(%arg0: i32, %arg1: i32) -> (i32, i32) {
    %c0_i32 = arith.constant 0 : i32
    %c0_i32_0 = arith.constant 0 : i32
    %c0_i32_1 = arith.constant 0 : i32
    return %c0_i32, %c0_i32_0 : i32, i32
  }
  func.func @transform_5(%arg0: i32, %arg1: i32) -> (i32, i32) {
    %c0_i32 = arith.constant 0 : i32
    %c0_i32_0 = arith.constant 0 : i32
    %c0_i32_1 = arith.constant 0 : i32
    return %c0_i32, %c0_i32_0 : i32, i32
  }
  func.func @transform_6(%arg0: i32, %arg1: i32) -> (i32, i32) {
    %c0_i32 = arith.constant 0 : i32
    %c0_i32_0 = arith.constant 0 : i32
    %c0_i32_1 = arith.constant 0 : i32
    return %c0_i32, %c0_i32_0 : i32, i32
  }
  func.func @transform_7(%arg0: i32, %arg1: i32) -> (i32, i32) {
    %c0_i32 = arith.constant 0 : i32
    %c0_i32_0 = arith.constant 0 : i32
    %c0_i32_1 = arith.constant 0 : i32
    return %c0_i32, %c0_i32_0 : i32, i32
  }
  func.func @transform_8(%arg0: i32, %arg1: i32) -> (i32, i32) {
    %c0_i32 = arith.constant 0 : i32
    %c0_i32_0 = arith.constant 0 : i32
    %c0_i32_1 = arith.constant 0 : i32
    return %c0_i32, %c0_i32_0 : i32, i32
  }
  func.func @transform_9(%arg0: i32, %arg1: i32) -> (i32, i32) {
    %c0_i32 = arith.constant 0 : i32
    %c0_i32_0 = arith.constant 0 : i32
    %c0_i32_1 = arith.constant 0 : i32
    return %c0_i32, %c0_i32_0 : i32, i32
  }
  func.func @transform_10(%arg0: i32, %arg1: i32) -> (i32, i32) {
    %c0_i32 = arith.constant 0 : i32
    %c0_i32_0 = arith.constant 0 : i32
    %c0_i32_1 = arith.constant 0 : i32
    return %c0_i32, %c0_i32_0 : i32, i32
  }
  func.func @transform_11(%arg0: i32, %arg1: i32) -> (i32, i32) {
    %c0_i32 = arith.constant 0 : i32
    %c0_i32_0 = arith.constant 0 : i32
    %c0_i32_1 = arith.constant 0 : i32
    return %c0_i32, %c0_i32_0 : i32, i32
  }
  func.func @transform_12(%arg0: i32, %arg1: i32) -> (i32, i32) {
    %c0_i32 = arith.constant 0 : i32
    %c0_i32_0 = arith.constant 0 : i32
    %c0_i32_1 = arith.constant 0 : i32
    return %c0_i32, %c0_i32_0 : i32, i32
  }
  func.func @transform_13(%arg0: i32, %arg1: i32) -> (i32, i32) {
    %c0_i32 = arith.constant 0 : i32
    %c0_i32_0 = arith.constant 0 : i32
    %c0_i32_1 = arith.constant 0 : i32
    return %c0_i32, %c0_i32_0 : i32, i32
  }
  func.func @transform_14(%arg0: i32, %arg1: i32) -> (i32, i32) {
    %c0_i32 = arith.constant 0 : i32
    %c0_i32_0 = arith.constant 0 : i32
    %c0_i32_1 = arith.constant 0 : i32
    return %c0_i32, %c0_i32_0 : i32, i32
  }
  func.func @transform_15(%arg0: i32, %arg1: i32) -> (i32, i32) {
    %c0_i32 = arith.constant 0 : i32
    %c0_i32_0 = arith.constant 0 : i32
    %c0_i32_1 = arith.constant 0 : i32
    return %c0_i32, %c0_i32_0 : i32, i32
  }
  func.func @transform_16(%arg0: i32, %arg1: i32) -> (i32, i32) {
    %c0_i32 = arith.constant 0 : i32
    %c0_i32_0 = arith.constant 0 : i32
    %c0_i32_1 = arith.constant 0 : i32
    return %c0_i32, %c0_i32_0 : i32, i32
  }
  func.func @transform_17(%arg0: i32, %arg1: i32) -> (i32, i32, i32) {
    %c0_i32 = arith.constant 0 : i32
    %c0_i32_0 = arith.constant 0 : i32
    return %arg0, %arg1, %c0_i32 : i32, i32, i32
  }
}

module attributes {stable_mosaic.version = 11 : i64} {
  func.func @encoder_layer_kernel(%arg0: i32, %arg1: i32, %arg2: memref<1x16x128xf32, #tpu.memory_space<vmem>>, %arg3: memref<1x128xf32, #tpu.memory_space<vmem>>, %arg4: memref<1x128xf32, #tpu.memory_space<vmem>>, %arg5: memref<128x128xbf16, #tpu.memory_space<vmem>>, %arg6: memref<1x128xf32, #tpu.memory_space<vmem>>, %arg7: memref<128x128xbf16, #tpu.memory_space<vmem>>, %arg8: memref<1x128xf32, #tpu.memory_space<vmem>>, %arg9: memref<128x128xbf16, #tpu.memory_space<vmem>>, %arg10: memref<1x128xf32, #tpu.memory_space<vmem>>, %arg11: memref<128x128xbf16, #tpu.memory_space<vmem>>, %arg12: memref<1x128xf32, #tpu.memory_space<vmem>>, %arg13: memref<1x128xf32, #tpu.memory_space<vmem>>, %arg14: memref<1x128xf32, #tpu.memory_space<vmem>>, %arg15: memref<128x256xbf16, #tpu.memory_space<vmem>>, %arg16: memref<1x256xf32, #tpu.memory_space<vmem>>, %arg17: memref<256x128xbf16, #tpu.memory_space<vmem>>, %arg18: memref<1x128xf32, #tpu.memory_space<vmem>>, %arg19: memref<1x8x128xf32, #tpu.memory_space<vmem>>, %arg20: memref<4x16x32xbf16, #tpu.memory_space<vmem>>, %arg21: memref<4x16x32xbf16, #tpu.memory_space<vmem>>, %arg22: memref<4x8x32xbf16, #tpu.memory_space<vmem>>) attributes {dimension_semantics = [#tpu.dimension_semantics<parallel>, #tpu.dimension_semantics<arbitrary>], iteration_bounds = array<i64: 2, 2>, scalar_prefetch = 0 : i64, scratch_operands = 3 : i64, tpu.core_type = #tpu.core_type<tc>, window_params = [{transform_indices = @transform_0, window_bounds = array<i64: 1, 16, 128>}, {pipeline_mode = #tpu.pipeline_mode<synchronous>, transform_indices = @transform_1, window_bounds = array<i64: 1, 128>}, {pipeline_mode = #tpu.pipeline_mode<synchronous>, transform_indices = @transform_2, window_bounds = array<i64: 1, 128>}, {pipeline_mode = #tpu.pipeline_mode<synchronous>, transform_indices = @transform_3, window_bounds = array<i64: 128, 128>}, {pipeline_mode = #tpu.pipeline_mode<synchronous>, transform_indices = @transform_4, window_bounds = array<i64: 1, 128>}, {pipeline_mode = #tpu.pipeline_mode<synchronous>, transform_indices = @transform_5, window_bounds = array<i64: 128, 128>}, {pipeline_mode = #tpu.pipeline_mode<synchronous>, transform_indices = @transform_6, window_bounds = array<i64: 1, 128>}, {pipeline_mode = #tpu.pipeline_mode<synchronous>, transform_indices = @transform_7, window_bounds = array<i64: 128, 128>}, {pipeline_mode = #tpu.pipeline_mode<synchronous>, transform_indices = @transform_8, window_bounds = array<i64: 1, 128>}, {pipeline_mode = #tpu.pipeline_mode<synchronous>, transform_indices = @transform_9, window_bounds = array<i64: 128, 128>}, {pipeline_mode = #tpu.pipeline_mode<synchronous>, transform_indices = @transform_10, window_bounds = array<i64: 1, 128>}, {pipeline_mode = #tpu.pipeline_mode<synchronous>, transform_indices = @transform_11, window_bounds = array<i64: 1, 128>}, {pipeline_mode = #tpu.pipeline_mode<synchronous>, transform_indices = @transform_12, window_bounds = array<i64: 1, 128>}, {pipeline_mode = #tpu.pipeline_mode<synchronous>, transform_indices = @transform_13, window_bounds = array<i64: 128, 256>}, {pipeline_mode = #tpu.pipeline_mode<synchronous>, transform_indices = @transform_14, window_bounds = array<i64: 1, 256>}, {pipeline_mode = #tpu.pipeline_mode<synchronous>, transform_indices = @transform_15, window_bounds = array<i64: 256, 128>}, {pipeline_mode = #tpu.pipeline_mode<synchronous>, transform_indices = @transform_16, window_bounds = array<i64: 1, 128>}, {transform_indices = @transform_17, window_bounds = array<i64: 1, 8, 128>}]} {
    %c0_i32 = arith.constant 0 : i32
    %0 = arith.cmpi eq, %arg1, %c0_i32 : i32
    %1 = arith.extui %0 : i1 to i32
    %c0_i32_0 = arith.constant 0 : i32
    %2 = arith.cmpi ne, %1, %c0_i32_0 : i32
    scf.if %2 {
      %c0_64 = arith.constant 0 : index
      %c0_65 = arith.constant 0 : index
      %c0_66 = arith.constant 0 : index
      %124 = vector.load %arg2[%c0_64, %c0_65, %c0_66] : memref<1x16x128xf32, #tpu.memory_space<vmem>>, vector<1x16x128xf32>
      %125 = vector.shape_cast %124 : vector<1x16x128xf32> to vector<16x128xf32>
      %c0_67 = arith.constant 0 : index
      %c0_68 = arith.constant 0 : index
      %126 = vector.load %arg3[%c0_67, %c0_68] : memref<1x128xf32, #tpu.memory_space<vmem>>, vector<1x128xf32>
      %c0_69 = arith.constant 0 : index
      %c0_70 = arith.constant 0 : index
      %127 = vector.load %arg4[%c0_69, %c0_70] : memref<1x128xf32, #tpu.memory_space<vmem>>, vector<1x128xf32>
      %cst_71 = arith.constant dense<0.000000e+00> : vector<16xf32>
      %128 = vector.multi_reduction <add>, %125, %cst_71 [1] : vector<16x128xf32> to vector<16xf32>
      %129 = vector.shape_cast %128 : vector<16xf32> to vector<16x1xf32>
      %cst_72 = arith.constant 1.280000e+02 : f32
      %130 = vector.broadcast %cst_72 : f32 to vector<16x1xf32>
      %131 = arith.divf %129, %130 : vector<16x1xf32>
      %132 = vector.broadcast %131 : vector<16x1xf32> to vector<16x128xf32>
      %133 = arith.subf %125, %132 : vector<16x128xf32>
      %134 = arith.mulf %133, %133 : vector<16x128xf32>
      %cst_73 = arith.constant dense<0.000000e+00> : vector<16xf32>
      %135 = vector.multi_reduction <add>, %134, %cst_73 [1] : vector<16x128xf32> to vector<16xf32>
      %136 = vector.shape_cast %135 : vector<16xf32> to vector<16x1xf32>
      %cst_74 = arith.constant 1.280000e+02 : f32
      %137 = vector.broadcast %cst_74 : f32 to vector<16x1xf32>
      %138 = arith.divf %136, %137 : vector<16x1xf32>
      %139 = vector.broadcast %131 : vector<16x1xf32> to vector<16x128xf32>
      %140 = arith.subf %125, %139 : vector<16x128xf32>
      %cst_75 = arith.constant 9.99999997E-7 : f32
      %141 = vector.broadcast %cst_75 : f32 to vector<16x1xf32>
      %142 = arith.addf %138, %141 : vector<16x1xf32>
      %143 = math.rsqrt %142 : vector<16x1xf32>
      %144 = vector.broadcast %143 : vector<16x1xf32> to vector<16x128xf32>
      %145 = arith.mulf %140, %144 : vector<16x128xf32>
      %146 = vector.broadcast %126 : vector<1x128xf32> to vector<16x128xf32>
      %147 = arith.mulf %145, %146 : vector<16x128xf32>
      %148 = vector.broadcast %127 : vector<1x128xf32> to vector<16x128xf32>
      %149 = arith.addf %147, %148 : vector<16x128xf32>
      %150 = arith.truncf %149 : vector<16x128xf32> to vector<16x128xbf16>
      %c0_76 = arith.constant 0 : index
      %c0_77 = arith.constant 0 : index
      %151 = vector.load %arg7[%c0_76, %c0_77] : memref<128x128xbf16, #tpu.memory_space<vmem>>, vector<128x128xbf16>
      %cst_78 = arith.constant dense<0.000000e+00> : vector<16x128xf32>
      %152 = tpu.matmul %150, %151, %cst_78 {dimension_numbers = #tpu.dot_dimension_numbers<[1], [0], [0], [1], [0, 0, 1, 1], [], []>} : vector<16x128xbf16>, vector<128x128xbf16>, vector<16x128xf32> -> vector<16x128xf32>
      %c0_79 = arith.constant 0 : index
      %c0_80 = arith.constant 0 : index
      %153 = vector.load %arg8[%c0_79, %c0_80] : memref<1x128xf32, #tpu.memory_space<vmem>>, vector<1x128xf32>
      %154 = vector.broadcast %153 : vector<1x128xf32> to vector<16x128xf32>
      %155 = arith.addf %152, %154 : vector<16x128xf32>
      %156 = arith.truncf %155 : vector<16x128xf32> to vector<16x128xbf16>
      %157 = vector.shape_cast %156 : vector<16x128xbf16> to vector<16x4x32xbf16>
      %158 = tpu.transpose %157, [1, 0, 2] : vector<16x4x32xbf16> -> vector<4x16x32xbf16>
      %c0_81 = arith.constant 0 : index
      %c0_82 = arith.constant 0 : index
      %c0_83 = arith.constant 0 : index
      %159 = vector.load %arg20[%c0_81, %c0_82, %c0_83] : memref<4x16x32xbf16, #tpu.memory_space<vmem>>, vector<4x16x32xbf16>
      tpu.vector_store %arg20[%c0_81, %c0_82, %c0_83], %158 {strides = array<i32>} : memref<4x16x32xbf16, #tpu.memory_space<vmem>>, vector<4x16x32xbf16>,
      %c0_84 = arith.constant 0 : index
      %c0_85 = arith.constant 0 : index
      %160 = vector.load %arg9[%c0_84, %c0_85] : memref<128x128xbf16, #tpu.memory_space<vmem>>, vector<128x128xbf16>
      %cst_86 = arith.constant dense<0.000000e+00> : vector<16x128xf32>
      %161 = tpu.matmul %150, %160, %cst_86 {dimension_numbers = #tpu.dot_dimension_numbers<[1], [0], [0], [1], [0, 0, 1, 1], [], []>} : vector<16x128xbf16>, vector<128x128xbf16>, vector<16x128xf32> -> vector<16x128xf32>
      %c0_87 = arith.constant 0 : index
      %c0_88 = arith.constant 0 : index
      %162 = vector.load %arg10[%c0_87, %c0_88] : memref<1x128xf32, #tpu.memory_space<vmem>>, vector<1x128xf32>
      %163 = vector.broadcast %162 : vector<1x128xf32> to vector<16x128xf32>
      %164 = arith.addf %161, %163 : vector<16x128xf32>
      %165 = arith.truncf %164 : vector<16x128xf32> to vector<16x128xbf16>
      %166 = vector.shape_cast %165 : vector<16x128xbf16> to vector<16x4x32xbf16>
      %167 = tpu.transpose %166, [1, 0, 2] : vector<16x4x32xbf16> -> vector<4x16x32xbf16>
      %c0_89 = arith.constant 0 : index
      %c0_90 = arith.constant 0 : index
      %c0_91 = arith.constant 0 : index
      %168 = vector.load %arg21[%c0_89, %c0_90, %c0_91] : memref<4x16x32xbf16, #tpu.memory_space<vmem>>, vector<4x16x32xbf16>
      tpu.vector_store %arg21[%c0_89, %c0_90, %c0_91], %167 {strides = array<i32>} : memref<4x16x32xbf16, #tpu.memory_space<vmem>>, vector<4x16x32xbf16>,
    } else {
    }
    %c8_i32 = arith.constant 8 : i32
    %3 = arith.muli %arg1, %c8_i32 : i32
    %4 = tpu.assume_multiple %3, 8 : i32
    %c0 = arith.constant 0 : index
    %5 = arith.index_cast %4 : i32 to index
    %c0_1 = arith.constant 0 : index
    %6 = vector.load %arg2[%c0, %5, %c0_1] : memref<1x16x128xf32, #tpu.memory_space<vmem>>, vector<1x8x128xf32>
    %7 = vector.shape_cast %6 : vector<1x8x128xf32> to vector<8x128xf32>
    %c0_2 = arith.constant 0 : index
    %c0_3 = arith.constant 0 : index
    %8 = vector.load %arg3[%c0_2, %c0_3] : memref<1x128xf32, #tpu.memory_space<vmem>>, vector<1x128xf32>
    %c0_4 = arith.constant 0 : index
    %c0_5 = arith.constant 0 : index
    %9 = vector.load %arg4[%c0_4, %c0_5] : memref<1x128xf32, #tpu.memory_space<vmem>>, vector<1x128xf32>
    %cst = arith.constant dense<0.000000e+00> : vector<8xf32>
    %10 = vector.multi_reduction <add>, %7, %cst [1] : vector<8x128xf32> to vector<8xf32>
    %11 = vector.shape_cast %10 : vector<8xf32> to vector<8x1xf32>
    %cst_6 = arith.constant 1.280000e+02 : f32
    %12 = vector.broadcast %cst_6 : f32 to vector<8x1xf32>
    %13 = arith.divf %11, %12 : vector<8x1xf32>
    %14 = vector.broadcast %13 : vector<8x1xf32> to vector<8x128xf32>
    %15 = arith.subf %7, %14 : vector<8x128xf32>
    %16 = arith.mulf %15, %15 : vector<8x128xf32>
    %cst_7 = arith.constant dense<0.000000e+00> : vector<8xf32>
    %17 = vector.multi_reduction <add>, %16, %cst_7 [1] : vector<8x128xf32> to vector<8xf32>
    %18 = vector.shape_cast %17 : vector<8xf32> to vector<8x1xf32>
    %cst_8 = arith.constant 1.280000e+02 : f32
    %19 = vector.broadcast %cst_8 : f32 to vector<8x1xf32>
    %20 = arith.divf %18, %19 : vector<8x1xf32>
    %21 = vector.broadcast %13 : vector<8x1xf32> to vector<8x128xf32>
    %22 = arith.subf %7, %21 : vector<8x128xf32>
    %cst_9 = arith.constant 9.99999997E-7 : f32
    %23 = vector.broadcast %cst_9 : f32 to vector<8x1xf32>
    %24 = arith.addf %20, %23 : vector<8x1xf32>
    %25 = math.rsqrt %24 : vector<8x1xf32>
    %26 = vector.broadcast %25 : vector<8x1xf32> to vector<8x128xf32>
    %27 = arith.mulf %22, %26 : vector<8x128xf32>
    %28 = vector.broadcast %8 : vector<1x128xf32> to vector<8x128xf32>
    %29 = arith.mulf %27, %28 : vector<8x128xf32>
    %30 = vector.broadcast %9 : vector<1x128xf32> to vector<8x128xf32>
    %31 = arith.addf %29, %30 : vector<8x128xf32>
    %32 = arith.truncf %31 : vector<8x128xf32> to vector<8x128xbf16>
    %c0_10 = arith.constant 0 : index
    %c0_11 = arith.constant 0 : index
    %33 = vector.load %arg5[%c0_10, %c0_11] : memref<128x128xbf16, #tpu.memory_space<vmem>>, vector<128x128xbf16>
    %cst_12 = arith.constant dense<0.000000e+00> : vector<8x128xf32>
    %34 = tpu.matmul %32, %33, %cst_12 {dimension_numbers = #tpu.dot_dimension_numbers<[1], [0], [0], [1], [0, 0, 1, 1], [], []>} : vector<8x128xbf16>, vector<128x128xbf16>, vector<8x128xf32> -> vector<8x128xf32>
    %c0_13 = arith.constant 0 : index
    %c0_14 = arith.constant 0 : index
    %35 = vector.load %arg6[%c0_13, %c0_14] : memref<1x128xf32, #tpu.memory_space<vmem>>, vector<1x128xf32>
    %36 = vector.broadcast %35 : vector<1x128xf32> to vector<8x128xf32>
    %37 = arith.addf %34, %36 : vector<8x128xf32>
    %cst_15 = arith.constant 0.176776692 : f32
    %38 = vector.broadcast %cst_15 : f32 to vector<8x128xf32>
    %39 = arith.mulf %37, %38 : vector<8x128xf32>
    %40 = vector.shape_cast %39 : vector<8x128xf32> to vector<8x4x32xf32>
    %41 = tpu.transpose %40, [1, 0, 2] : vector<8x4x32xf32> -> vector<4x8x32xf32>
    %42 = arith.truncf %41 : vector<4x8x32xf32> to vector<4x8x32xbf16>
    %c0_16 = arith.constant 0 : index
    %c0_17 = arith.constant 0 : index
    %c0_18 = arith.constant 0 : index
    %43 = vector.load %arg22[%c0_16, %c0_17, %c0_18] : memref<4x8x32xbf16, #tpu.memory_space<vmem>>, vector<4x8x32xbf16>
    tpu.vector_store %arg22[%c0_16, %c0_17, %c0_18], %42 {strides = array<i32>} : memref<4x8x32xbf16, #tpu.memory_space<vmem>>, vector<4x8x32xbf16>,
    %cst_19 = arith.constant 0.000000e+00 : f32
    %44 = vector.broadcast %cst_19 : f32 to vector<8x128xf32>
    %c0_20 = arith.constant 0 : index
    %c0_21 = arith.constant 0 : index
    %c0_22 = arith.constant 0 : index
    %45 = vector.load %arg22[%c0_20, %c0_21, %c0_22] : memref<4x8x32xbf16, #tpu.memory_space<vmem>>, vector<4x8x32xbf16>
    %c0_23 = arith.constant 0 : index
    %c0_24 = arith.constant 0 : index
    %c0_25 = arith.constant 0 : index
    %46 = vector.load %arg20[%c0_23, %c0_24, %c0_25] : memref<4x16x32xbf16, #tpu.memory_space<vmem>>, vector<4x16x32xbf16>
    %c0_26 = arith.constant 0 : index
    %c0_27 = arith.constant 0 : index
    %c0_28 = arith.constant 0 : index
    %47 = vector.load %arg21[%c0_26, %c0_27, %c0_28] : memref<4x16x32xbf16, #tpu.memory_space<vmem>>, vector<4x16x32xbf16>
    "tpu.trace_start"() <{level = 10 : i32, message = "hqd,hkd->hqk"}> : () -> ()
    %cst_29 = arith.constant dense<0.000000e+00> : vector<4x8x16xf32>
    %48 = tpu.matmul %45, %46, %cst_29 {dimension_numbers = #tpu.dot_dimension_numbers<[2], [2], [1], [1], [0, 0, 0, 1, 1, 1], [0], [0]>} : vector<4x8x32xbf16>, vector<4x16x32xbf16>, vector<4x8x16xf32> -> vector<4x8x16xf32>
    "tpu.trace_stop"() : () -> ()
    %cst_30 = arith.constant dense<0xFF800000> : vector<4x8xf32>
    %49 = vector.multi_reduction <maximumf>, %48, %cst_30 [2] : vector<4x8x16xf32> to vector<4x8xf32>
    %50 = vector.shape_cast %49 : vector<4x8xf32> to vector<4x8x1xf32>
    %51 = vector.broadcast %50 : vector<4x8x1xf32> to vector<4x8x16xf32>
    %52 = arith.subf %48, %51 : vector<4x8x16xf32>
    %53 = math.exp %52 : vector<4x8x16xf32>
    %cst_31 = arith.constant dense<0.000000e+00> : vector<4x8xf32>
    %54 = vector.multi_reduction <add>, %53, %cst_31 [2] : vector<4x8x16xf32> to vector<4x8xf32>
    %55 = vector.shape_cast %54 : vector<4x8xf32> to vector<4x8x1xf32>
    %56 = tpu.reciprocal %55 {approx = true} : vector<4x8x1xf32> -> vector<4x8x1xf32>
    %57 = vector.broadcast %56 : vector<4x8x1xf32> to vector<4x8x16xf32>
    %58 = arith.mulf %53, %57 : vector<4x8x16xf32>
    %59 = arith.truncf %58 : vector<4x8x16xf32> to vector<4x8x16xbf16>
    "tpu.trace_start"() <{level = 10 : i32, message = "hqk,hkd->hqd"}> : () -> ()
    %cst_32 = arith.constant dense<0.000000e+00> : vector<4x8x32xf32>
    %60 = tpu.matmul %59, %47, %cst_32 {dimension_numbers = #tpu.dot_dimension_numbers<[2], [1], [1], [2], [0, 0, 0, 1, 1, 2], [0], [0]>} : vector<4x8x16xbf16>, vector<4x16x32xbf16>, vector<4x8x32xf32> -> vector<4x8x32xf32>
    "tpu.trace_stop"() : () -> ()
    %61 = arith.truncf %60 : vector<4x8x32xf32> to vector<4x8x32xbf16>
    %62 = tpu.transpose %61, [1, 0, 2] : vector<4x8x32xbf16> -> vector<8x4x32xbf16>
    %63 = vector.shape_cast %62 : vector<8x4x32xbf16> to vector<8x128xbf16>
    %c0_33 = arith.constant 0 : index
    %c0_34 = arith.constant 0 : index
    %64 = vector.load %arg11[%c0_33, %c0_34] : memref<128x128xbf16, #tpu.memory_space<vmem>>, vector<128x128xbf16>
    %cst_35 = arith.constant dense<0.000000e+00> : vector<8x128xf32>
    %65 = tpu.matmul %63, %64, %cst_35 {dimension_numbers = #tpu.dot_dimension_numbers<[1], [0], [0], [1], [0, 0, 1, 1], [], []>} : vector<8x128xbf16>, vector<128x128xbf16>, vector<8x128xf32> -> vector<8x128xf32>
    %66 = arith.addf %44, %65 : vector<8x128xf32>
    %67 = arith.addf %7, %66 : vector<8x128xf32>
    %c0_36 = arith.constant 0 : index
    %c0_37 = arith.constant 0 : index
    %68 = vector.load %arg12[%c0_36, %c0_37] : memref<1x128xf32, #tpu.memory_space<vmem>>, vector<1x128xf32>
    %69 = vector.broadcast %68 : vector<1x128xf32> to vector<8x128xf32>
    %70 = arith.addf %67, %69 : vector<8x128xf32>
    %c0_38 = arith.constant 0 : index
    %c0_39 = arith.constant 0 : index
    %71 = vector.load %arg13[%c0_38, %c0_39] : memref<1x128xf32, #tpu.memory_space<vmem>>, vector<1x128xf32>
    %c0_40 = arith.constant 0 : index
    %c0_41 = arith.constant 0 : index
    %72 = vector.load %arg14[%c0_40, %c0_41] : memref<1x128xf32, #tpu.memory_space<vmem>>, vector<1x128xf32>
    %cst_42 = arith.constant dense<0.000000e+00> : vector<8xf32>
    %73 = vector.multi_reduction <add>, %70, %cst_42 [1] : vector<8x128xf32> to vector<8xf32>
    %74 = vector.shape_cast %73 : vector<8xf32> to vector<8x1xf32>
    %cst_43 = arith.constant 1.280000e+02 : f32
    %75 = vector.broadcast %cst_43 : f32 to vector<8x1xf32>
    %76 = arith.divf %74, %75 : vector<8x1xf32>
    %77 = vector.broadcast %76 : vector<8x1xf32> to vector<8x128xf32>
    %78 = arith.subf %70, %77 : vector<8x128xf32>
    %79 = arith.mulf %78, %78 : vector<8x128xf32>
    %cst_44 = arith.constant dense<0.000000e+00> : vector<8xf32>
    %80 = vector.multi_reduction <add>, %79, %cst_44 [1] : vector<8x128xf32> to vector<8xf32>
    %81 = vector.shape_cast %80 : vector<8xf32> to vector<8x1xf32>
    %cst_45 = arith.constant 1.280000e+02 : f32
    %82 = vector.broadcast %cst_45 : f32 to vector<8x1xf32>
    %83 = arith.divf %81, %82 : vector<8x1xf32>
    %84 = vector.broadcast %76 : vector<8x1xf32> to vector<8x128xf32>
    %85 = arith.subf %70, %84 : vector<8x128xf32>
    %cst_46 = arith.constant 9.99999997E-7 : f32
    %86 = vector.broadcast %cst_46 : f32 to vector<8x1xf32>
    %87 = arith.addf %83, %86 : vector<8x1xf32>
    %88 = math.rsqrt %87 : vector<8x1xf32>
    %89 = vector.broadcast %88 : vector<8x1xf32> to vector<8x128xf32>
    %90 = arith.mulf %85, %89 : vector<8x128xf32>
    %91 = vector.broadcast %71 : vector<1x128xf32> to vector<8x128xf32>
    %92 = arith.mulf %90, %91 : vector<8x128xf32>
    %93 = vector.broadcast %72 : vector<1x128xf32> to vector<8x128xf32>
    %94 = arith.addf %92, %93 : vector<8x128xf32>
    %95 = arith.truncf %94 : vector<8x128xf32> to vector<8x128xbf16>
    %c0_47 = arith.constant 0 : index
    %c0_48 = arith.constant 0 : index
    %96 = vector.load %arg15[%c0_47, %c0_48] : memref<128x256xbf16, #tpu.memory_space<vmem>>, vector<128x256xbf16>
    %cst_49 = arith.constant dense<0.000000e+00> : vector<8x256xf32>
    %97 = tpu.matmul %95, %96, %cst_49 {dimension_numbers = #tpu.dot_dimension_numbers<[1], [0], [0], [1], [0, 0, 1, 1], [], []>} : vector<8x128xbf16>, vector<128x256xbf16>, vector<8x256xf32> -> vector<8x256xf32>
    %c0_50 = arith.constant 0 : index
    %c0_51 = arith.constant 0 : index
    %98 = vector.load %arg16[%c0_50, %c0_51] : memref<1x256xf32, #tpu.memory_space<vmem>>, vector<1x256xf32>
    %99 = vector.broadcast %98 : vector<1x256xf32> to vector<8x256xf32>
    %100 = arith.addf %97, %99 : vector<8x256xf32>
    %cst_52 = arith.constant 5.000000e-01 : f32
    %101 = vector.broadcast %cst_52 : f32 to vector<8x256xf32>
    %102 = arith.mulf %101, %100 : vector<8x256xf32>
    %cst_53 = arith.constant 4.471500e-02 : f32
    %103 = vector.broadcast %cst_53 : f32 to vector<8x256xf32>
    %104 = arith.mulf %103, %100 : vector<8x256xf32>
    %105 = arith.mulf %104, %100 : vector<8x256xf32>
    %106 = arith.mulf %105, %100 : vector<8x256xf32>
    %107 = arith.addf %100, %106 : vector<8x256xf32>
    %cst_54 = arith.constant 0.797884583 : f32
    %108 = vector.broadcast %cst_54 : f32 to vector<8x256xf32>
    %109 = arith.mulf %108, %107 : vector<8x256xf32>
    %110 = math.tanh %109 : vector<8x256xf32>
    %cst_55 = arith.constant 1.000000e+00 : f32
    %111 = vector.broadcast %cst_55 : f32 to vector<8x256xf32>
    %112 = arith.addf %111, %110 : vector<8x256xf32>
    %113 = arith.mulf %102, %112 : vector<8x256xf32>
    %114 = arith.truncf %113 : vector<8x256xf32> to vector<8x256xbf16>
    %c0_56 = arith.constant 0 : index
    %c0_57 = arith.constant 0 : index
    %115 = vector.load %arg17[%c0_56, %c0_57] : memref<256x128xbf16, #tpu.memory_space<vmem>>, vector<256x128xbf16>
    %cst_58 = arith.constant dense<0.000000e+00> : vector<8x128xf32>
    %116 = tpu.matmul %114, %115, %cst_58 {dimension_numbers = #tpu.dot_dimension_numbers<[1], [0], [0], [1], [0, 0, 1, 1], [], []>} : vector<8x256xbf16>, vector<256x128xbf16>, vector<8x128xf32> -> vector<8x128xf32>
    %c0_59 = arith.constant 0 : index
    %c0_60 = arith.constant 0 : index
    %117 = vector.load %arg18[%c0_59, %c0_60] : memref<1x128xf32, #tpu.memory_space<vmem>>, vector<1x128xf32>
    %118 = vector.broadcast %117 : vector<1x128xf32> to vector<8x128xf32>
    %119 = arith.addf %116, %118 : vector<8x128xf32>
    %120 = arith.addf %70, %119 : vector<8x128xf32>
    %c0_61 = arith.constant 0 : index
    %c0_62 = arith.constant 0 : index
    %c0_63 = arith.constant 0 : index
    %121 = vector.load %arg19[%c0_61, %c0_62, %c0_63] : memref<1x8x128xf32, #tpu.memory_space<vmem>>, vector<1x8x128xf32>
    %122 = vector.shape_cast %121 : vector<1x8x128xf32> to vector<8x128xf32>
    %123 = vector.shape_cast %120 : vector<8x128xf32> to vector<1x8x128xf32>
    tpu.vector_store %arg19[%c0_61, %c0_62, %c0_63], %123 {strides = array<i32>} : memref<1x8x128xf32, #tpu.memory_space<vmem>>, vector<1x8x128xf32>,
    return
  }
  func.func @transform_0(%arg0: i32, %arg1: i32) -> (i32, i32, i32) {
    %c0_i32 = arith.constant 0 : i32
    %c0_i32_0 = arith.constant 0 : i32
    %c0_i32_1 = arith.constant 0 : i32
    return %arg0, %c0_i32, %c0_i32_0 : i32, i32, i32
  }
  func.func @transform_1(%arg0: i32, %arg1: i32) -> (i32, i32) {
    %c0_i32 = arith.constant 0 : i32
    %c0_i32_0 = arith.constant 0 : i32
    %c0_i32_1 = arith.constant 0 : i32
    return %c0_i32, %c0_i32_0 : i32, i32
  }
  func.func @transform_2(%arg0: i32, %arg1: i32) -> (i32, i32) {
    %c0_i32 = arith.constant 0 : i32
    %c0_i32_0 = arith.constant 0 : i32
    %c0_i32_1 = arith.constant 0 : i32
    return %c0_i32, %c0_i32_0 : i32, i32
  }
  func.func @transform_3(%arg0: i32, %arg1: i32) -> (i32, i32) {
    %c0_i32 = arith.constant 0 : i32
    %c0_i32_0 = arith.constant 0 : i32
    %c0_i32_1 = arith.constant 0 : i32
    return %c0_i32, %c0_i32_0 : i32, i32
  }
  func.func @transform_4(%arg0: i32, %arg1: i32) -> (i32, i32) {
    %c0_i32 = arith.constant 0 : i32
    %c0_i32_0 = arith.constant 0 : i32
    %c0_i32_1 = arith.constant 0 : i32
    return %c0_i32, %c0_i32_0 : i32, i32
  }
  func.func @transform_5(%arg0: i32, %arg1: i32) -> (i32, i32) {
    %c0_i32 = arith.constant 0 : i32
    %c0_i32_0 = arith.constant 0 : i32
    %c0_i32_1 = arith.constant 0 : i32
    return %c0_i32, %c0_i32_0 : i32, i32
  }
  func.func @transform_6(%arg0: i32, %arg1: i32) -> (i32, i32) {
    %c0_i32 = arith.constant 0 : i32
    %c0_i32_0 = arith.constant 0 : i32
    %c0_i32_1 = arith.constant 0 : i32
    return %c0_i32, %c0_i32_0 : i32, i32
  }
  func.func @transform_7(%arg0: i32, %arg1: i32) -> (i32, i32) {
    %c0_i32 = arith.constant 0 : i32
    %c0_i32_0 = arith.constant 0 : i32
    %c0_i32_1 = arith.constant 0 : i32
    return %c0_i32, %c0_i32_0 : i32, i32
  }
  func.func @transform_8(%arg0: i32, %arg1: i32) -> (i32, i32) {
    %c0_i32 = arith.constant 0 : i32
    %c0_i32_0 = arith.constant 0 : i32
    %c0_i32_1 = arith.constant 0 : i32
    return %c0_i32, %c0_i32_0 : i32, i32
  }
  func.func @transform_9(%arg0: i32, %arg1: i32) -> (i32, i32) {
    %c0_i32 = arith.constant 0 : i32
    %c0_i32_0 = arith.constant 0 : i32
    %c0_i32_1 = arith.constant 0 : i32
    return %c0_i32, %c0_i32_0 : i32, i32
  }
  func.func @transform_10(%arg0: i32, %arg1: i32) -> (i32, i32) {
    %c0_i32 = arith.constant 0 : i32
    %c0_i32_0 = arith.constant 0 : i32
    %c0_i32_1 = arith.constant 0 : i32
    return %c0_i32, %c0_i32_0 : i32, i32
  }
  func.func @transform_11(%arg0: i32, %arg1: i32) -> (i32, i32) {
    %c0_i32 = arith.constant 0 : i32
    %c0_i32_0 = arith.constant 0 : i32
    %c0_i32_1 = arith.constant 0 : i32
    return %c0_i32, %c0_i32_0 : i32, i32
  }
  func.func @transform_12(%arg0: i32, %arg1: i32) -> (i32, i32) {
    %c0_i32 = arith.constant 0 : i32
    %c0_i32_0 = arith.constant 0 : i32
    %c0_i32_1 = arith.constant 0 : i32
    return %c0_i32, %c0_i32_0 : i32, i32
  }
  func.func @transform_13(%arg0: i32, %arg1: i32) -> (i32, i32) {
    %c0_i32 = arith.constant 0 : i32
    %c0_i32_0 = arith.constant 0 : i32
    %c0_i32_1 = arith.constant 0 : i32
    return %c0_i32, %c0_i32_0 : i32, i32
  }
  func.func @transform_14(%arg0: i32, %arg1: i32) -> (i32, i32) {
    %c0_i32 = arith.constant 0 : i32
    %c0_i32_0 = arith.constant 0 : i32
    %c0_i32_1 = arith.constant 0 : i32
    return %c0_i32, %c0_i32_0 : i32, i32
  }
  func.func @transform_15(%arg0: i32, %arg1: i32) -> (i32, i32) {
    %c0_i32 = arith.constant 0 : i32
    %c0_i32_0 = arith.constant 0 : i32
    %c0_i32_1 = arith.constant 0 : i32
    return %c0_i32, %c0_i32_0 : i32, i32
  }
  func.func @transform_16(%arg0: i32, %arg1: i32) -> (i32, i32) {
    %c0_i32 = arith.constant 0 : i32
    %c0_i32_0 = arith.constant 0 : i32
    %c0_i32_1 = arith.constant 0 : i32
    return %c0_i32, %c0_i32_0 : i32, i32
  }
  func.func @transform_17(%arg0: i32, %arg1: i32) -> (i32, i32, i32) {
    %c0_i32 = arith.constant 0 : i32
    %c0_i32_0 = arith.constant 0 : i32
    return %arg0, %arg1, %c0_i32 : i32, i32, i32
  }
}

</mosaic_0001>

<llo_original>
// kernel: tpu_custom_call.1
$region0: #{tpu_custom_call.1}
  #allocation0 [shape = 'u32[]', space=smem, size = 0x4, offset = 0x4, fixed_abs, tag = 'smem constant byte address 0x4 - core index']
  #allocation1 [shape = 'u32[72,128]{1,0:T(1,128)}', space=vmem, size = 0x9000, scoped, tag = 'internal scratch']
  #allocation2 [shape = 'bf16[4,16,32]{2,1,0:T(8,128)(2,1)}', space=vmem, size = 0x4000, scoped, tag = 'scratch operand']
  #allocation3 [shape = 'bf16[4,16,32]{2,1,0:T(8,128)(2,1)}', space=vmem, size = 0x4000, scoped, tag = 'scratch operand']
  #allocation4 [shape = 'bf16[4,8,32]{2,1,0:T(8,128)(2,1)}', space=vmem, size = 0x2000, scoped, tag = 'scratch operand']
  %s0 = inlined_call_operand.hbm [shape: f32[2,16,128], index: 0, kind: input, shape index: {}]
  %s1 = inlined_call_operand.hbm [shape: f32[1,128], index: 1, kind: input, shape index: {}]
  %s2 = inlined_call_operand.vmem [shape: f32[1,128], index: 2, kind: input, shape index: {}]
  %s3 = inlined_call_operand.hbm [shape: bf16[128,128], index: 3, kind: input, shape index: {}]
  %s4 = inlined_call_operand.hbm [shape: f32[1,128], index: 4, kind: input, shape index: {}]
  %s5 = inlined_call_operand.hbm [shape: bf16[128,128], index: 5, kind: input, shape index: {}]
  %s6 = inlined_call_operand.vmem [shape: f32[1,128], index: 6, kind: input, shape index: {}]
  %s7 = inlined_call_operand.hbm [shape: bf16[128,128], index: 7, kind: input, shape index: {}]
  %s8 = inlined_call_operand.vmem [shape: f32[1,128], index: 8, kind: input, shape index: {}]
  %s9 = inlined_call_operand.hbm [shape: bf16[128,128], index: 9, kind: input, shape index: {}]
  %s10 = inlined_call_operand.vmem [shape: f32[1,128], index: 10, kind: input, shape index: {}]
  %s11 = inlined_call_operand.vmem [shape: f32[1,128], index: 11, kind: input, shape index: {}]
  %s12 = inlined_call_operand.vmem [shape: f32[1,128], index: 12, kind: input, shape index: {}]
  %s13 = inlined_call_operand.hbm [shape: bf16[128,256], index: 13, kind: input, shape index: {}]
  %s14 = inlined_call_operand.vmem [shape: f32[1,256], index: 14, kind: input, shape index: {}]
  %s15 = inlined_call_operand.hbm [shape: bf16[256,128], index: 15, kind: input, shape index: {}]
  %s16 = inlined_call_operand.vmem [shape: f32[1,128], index: 16, kind: input, shape index: {}]
  %s17 = inlined_call_operand.hbm [shape: f32[2,16,128], index: 17, kind: output, shape index: {}]
  %s18 = sld [smem:[#allocation0]]
  $region141: #{tpu_custom_call.1} parent=0
    _
  %s20 = ssub.s32 1, %s18
  %s21 = scalar_select 0, %s20, %s18
  $region1: #{tpu_custom_call.1} parent=0
    #allocation5 [shape = 'u8[8192]{0}', space=vmem, size = 0x2000, scoped, tag = 'input window, operand 0, single buffered']
    #allocation6 [shape = 's32[2]{0}', space=sflag, size = 0x8, scoped, tag = 'scoped memory for tpu_custom_call.1']
    #allocation7 [shape = 's32[2]{0}', space=sflag, size = 0x8, scoped, tag = 'scoped memory for tpu_custom_call.1']
    #allocation8 [shape = 'u8[512]{0}', space=vmem, size = 0x400, scoped, tag = 'input window, operand 1, single buffered']
    #allocation9 [shape = 's32[1]{0}', space=sflag, size = 0x4, scoped, tag = 'scoped memory for tpu_custom_call.1']
    #allocation10 [shape = 'u8[32768]{0}', space=vmem, size = 0x8000, scoped, tag = 'input window, operand 3, single buffered']
    #allocation11 [shape = 'u8[512]{0}', space=vmem, size = 0x400, scoped, tag = 'input window, operand 4, single buffered']
    #allocation12 [shape = 's32[1]{0}', space=sflag, size = 0x4, scoped, tag = 'scoped memory for tpu_custom_call.1']
    #allocation13 [shape = 'u8[32768]{0}', space=vmem, size = 0x8000, scoped, tag = 'input window, operand 5, single buffered']
    #allocation14 [shape = 'u8[32768]{0}', space=vmem, size = 0x8000, scoped, tag = 'input window, operand 7, single buffered']
    #allocation15 [shape = 's32[1]{0}', space=sflag, size = 0x4, scoped, tag = 'scoped memory for tpu_custom_call.1']
    #allocation16 [shape = 'u8[32768]{0}', space=vmem, size = 0x8000, scoped, tag = 'input window, operand 9, single buffered']
    #allocation17 [shape = 'u8[65536]{0}', space=vmem, size = 0x10000, scoped, tag = 'input window, operand 13, single buffered']
    #allocation18 [shape = 's32[1]{0}', space=sflag, size = 0x4, scoped, tag = 'scoped memory for tpu_custom_call.1']
    #allocation19 [shape = 'u8[65536]{0}', space=vmem, size = 0x10000, scoped, tag = 'input window, operand 15, single buffered']
    #allocation20 [shape = 'u8[8192]{0}', space=vmem, size = 0x2000, scoped, tag = 'output window, operand 0']
    %22 = vsyncpa [#allocation6], 0
    %23 = vsyncpa [#allocation9], 0
    %24 = vsyncpa [#allocation12], 0
    %25 = vsyncpa [#allocation15], 0
    %26 = vsyncpa [#allocation18], 0
    %27 = vsyncpa [#allocation7], 0
    %s28 = scalar_lea.sflag [#allocation7], 1
    %29 = vsyncpa %s28, 0
    loop: start=0, step=1, limit=6
    $region2: #{tpu_custom_call.1} parent=1 // loop_pre_header
      _
    $region3: #{tpu_custom_call.1} parent=1 // loop_header
      %s31 = sphi 0, %s35
      %p32 = scmp.ge.s32.totalorder %s31, 6
      %s38 = sphi 0, %s50
      %s39 = sphi 0, %s46
      %s40 = sphi 0, %s38
      %s41 = sphi 0, %s39
      %s42 = sphi 0, %s40
      %s43 = sphi 0, %s41
      %s53 = sphi 0, %s55
      %s56 = sphi 0, %s53
      %s57 = sphi 0, %s56
      %s73 = sphi 0, %s57
      %s77 = sphi 0, %s77
      %s79 = sphi 0, %s77
      %s80 = sphi 0, %s79
      %s94 = sphi 0, %s80
      %s98 = sphi 0, %s98
      %s100 = sphi 0, %s98
      %s101 = sphi 0, %s100
      %s115 = sphi 0, %s101
      %s119 = sphi 0, %s119
      %s121 = sphi 0, %s119
      %s122 = sphi 0, %s121
      %s136 = sphi 0, %s122
      %s140 = sphi 0, %s140
      %s142 = sphi 0, %s140
      %s143 = sphi 0, %s142
      %s157 = sphi 0, %s143
      %s161 = sphi 0, %s161
      %s163 = sphi 0, %s161
      %s164 = sphi 0, %s163
      %s178 = sphi 0, %s164
      %s182 = sphi 0, %s182
      %s184 = sphi 0, %s182
      %s185 = sphi 0, %s184
      %s199 = sphi 0, %s185
      %s203 = sphi 0, %s203
      %s205 = sphi 0, %s203
      %s206 = sphi 0, %s205
      %s220 = sphi 0, %s206
      %s224 = sphi 0, %s224
      %s226 = sphi 0, %s224
      %s227 = sphi 0, %s226
      %s241 = sphi 0, %s227
      %s245 = sphi 0, %s245
      %s247 = sphi 0, %s245
      %s248 = sphi 0, %s247
      %s262 = sphi 0, %s248
      %s266 = sphi 0, %s266
      %s268 = sphi 0, %s266
      %s269 = sphi 0, %s268
      %s283 = sphi 0, %s269
      %s287 = sphi 0, %s287
      %s289 = sphi 0, %s287
      %s290 = sphi 0, %s289
      %s304 = sphi 0, %s290
      %s308 = sphi 0, %s308
      %s310 = sphi 0, %s308
      %s311 = sphi 0, %s310
      %s325 = sphi 0, %s311
      %s329 = sphi 0, %s329
      %s331 = sphi 0, %s329
      %s332 = sphi 0, %s331
      %s346 = sphi 0, %s332
      %s350 = sphi 0, %s350
      %s352 = sphi 0, %s350
      %s353 = sphi 0, %s352
      %s367 = sphi 0, %s353
      %s371 = sphi 0, %s371
      %s373 = sphi 0, %s371
      %s374 = sphi 0, %s373
      %s388 = sphi 0, %s374
      %s392 = sphi 0, %s392
      %s394 = sphi 0, %s392
      %s395 = sphi 0, %s394
      %s409 = sphi 0, %s395
      %s417 = sphi 0, %s419
      %s420 = sphi 0, %s417
      %s421 = sphi 0, %s420
      %s437 = sphi 0, %s421
    $region4: #{tpu_custom_call.1} parent=1 // loop_header_branch
      %34 = sbr.rel (%p32) target = $region8
    $region5: #{tpu_custom_call.1} parent=1 // loop_body
      %s36 = ssub.s32 %s31, 1
      %s37 = ssub.s32 %s31, 2
      %s44 = sadd.s32 1, %s39
      %p45 = scmp.ge.s32.totalorder %s44, 2
      %s46 = scalar_select %p45, 0, %s44
      %s47 = sadd.s32 1, %s38
      %s48 = scalar_select %p45, %s47, %s38
      %p49 = scmp.ge.s32.totalorder %s48, 2
      %s50 = scalar_select %p49, 0, %s48
      %s51 = ssub.s32 %s38, %s50
      %p52 = scmp.eq.s32.totalorder %s51, 0
      %s54 = sadd.s32 %s53, 1
      %s55 = scalar_select %p52, %s53, %s54
      %p58 = pneg %p52
      %p59 = scmp.eq.s32.totalorder %s31, 3
      %p60 = por %p58, %p59
      %p61 = scmp.ne.s32.totalorder %s53, %s56
      %p62 = scmp.eq.s32.totalorder %s31, 0
      %p63 = por %p61, %p62
      %p64 = scmp.ne.s32.totalorder %s53, %s56
      %p65 = scmp.eq.s32.totalorder %s36, 3
      %p66 = por %p64, %p65
      %p67 = scmp.ne.s32.totalorder %s56, %s57
      %p68 = scmp.eq.s32.totalorder %s36, 0
      %p69 = por %p67, %p68
      %p70 = scmp.ne.s32.totalorder %s56, %s57
      %p71 = scmp.eq.s32.totalorder %s37, 3
      %p72 = por %p70, %p71
      %p74 = scmp.ne.s32.totalorder %s57, %s73
      %p75 = scmp.eq.s32.totalorder %s37, 0
      %p76 = por %p74, %p75
      %s78 = sadd.s32 %s77, 1
      %p81 = scmp.eq.s32.totalorder %s31, 3
      %p82 = scmp.ne.s32.totalorder %s77, %s79
      %p83 = scmp.eq.s32.totalorder %s31, 0
      %p84 = por %p82, %p83
      %p85 = scmp.ne.s32.totalorder %s77, %s79
      %p86 = scmp.eq.s32.totalorder %s36, 3
      %p87 = por %p85, %p86
      %p88 = scmp.ne.s32.totalorder %s79, %s80
      %p89 = scmp.eq.s32.totalorder %s36, 0
      %p90 = por %p88, %p89
      %p91 = scmp.ne.s32.totalorder %s79, %s80
      %p92 = scmp.eq.s32.totalorder %s37, 3
      %p93 = por %p91, %p92
      %p95 = scmp.ne.s32.totalorder %s80, %s94
      %p96 = scmp.eq.s32.totalorder %s37, 0
      %p97 = por %p95, %p96
      %s99 = sadd.s32 %s98, 1
      %p102 = scmp.eq.s32.totalorder %s31, 3
      %p103 = scmp.ne.s32.totalorder %s98, %s100
      %p104 = scmp.eq.s32.totalorder %s31, 0
      %p105 = por %p103, %p104
      %p106 = scmp.ne.s32.totalorder %s98, %s100
      %p107 = scmp.eq.s32.totalorder %s36, 3
      %p108 = por %p106, %p107
      %p109 = scmp.ne.s32.totalorder %s100, %s101
      %p110 = scmp.eq.s32.totalorder %s36, 0
      %p111 = por %p109, %p110
      %p112 = scmp.ne.s32.totalorder %s100, %s101
      %p113 = scmp.eq.s32.totalorder %s37, 3
      %p114 = por %p112, %p113
      %p116 = scmp.ne.s32.totalorder %s101, %s115
      %p117 = scmp.eq.s32.totalorder %s37, 0
      %p118 = por %p116, %p117
      %s120 = sadd.s32 %s119, 1
      %p123 = scmp.eq.s32.totalorder %s31, 3
      %p124 = scmp.ne.s32.totalorder %s119, %s121
      %p125 = scmp.eq.s32.totalorder %s31, 0
      %p126 = por %p124, %p125
      %p127 = scmp.ne.s32.totalorder %s119, %s121
      %p128 = scmp.eq.s32.totalorder %s36, 3
      %p129 = por %p127, %p128
      %p130 = scmp.ne.s32.totalorder %s121, %s122
      %p131 = scmp.eq.s32.totalorder %s36, 0
      %p132 = por %p130, %p131
      %p133 = scmp.ne.s32.totalorder %s121, %s122
      %p134 = scmp.eq.s32.totalorder %s37, 3
      %p135 = por %p133, %p134
      %p137 = scmp.ne.s32.totalorder %s122, %s136
      %p138 = scmp.eq.s32.totalorder %s37, 0
      %p139 = por %p137, %p138
      %s141 = sadd.s32 %s140, 1
      %p144 = scmp.eq.s32.totalorder %s31, 3
      %p145 = scmp.ne.s32.totalorder %s140, %s142
      %p146 = scmp.eq.s32.totalorder %s31, 0
      %p147 = por %p145, %p146
      %p148 = scmp.ne.s32.totalorder %s140, %s142
      %p149 = scmp.eq.s32.totalorder %s36, 3
      %p150 = por %p148, %p149
      %p151 = scmp.ne.s32.totalorder %s142, %s143
      %p152 = scmp.eq.s32.totalorder %s36, 0
      %p153 = por %p151, %p152
      %p154 = scmp.ne.s32.totalorder %s142, %s143
      %p155 = scmp.eq.s32.totalorder %s37, 3
      %p156 = por %p154, %p155
      %p158 = scmp.ne.s32.totalorder %s143, %s157
      %p159 = scmp.eq.s32.totalorder %s37, 0
      %p160 = por %p158, %p159
      %s162 = sadd.s32 %s161, 1
      %p165 = scmp.eq.s32.totalorder %s31, 3
      %p166 = scmp.ne.s32.totalorder %s161, %s163
      %p167 = scmp.eq.s32.totalorder %s31, 0
      %p168 = por %p166, %p167
      %p169 = scmp.ne.s32.totalorder %s161, %s163
      %p170 = scmp.eq.s32.totalorder %s36, 3
      %p171 = por %p169, %p170
      %p172 = scmp.ne.s32.totalorder %s163, %s164
      %p173 = scmp.eq.s32.totalorder %s36, 0
      %p174 = por %p172, %p173
      %p175 = scmp.ne.s32.totalorder %s163, %s164
      %p176 = scmp.eq.s32.totalorder %s37, 3
      %p177 = por %p175, %p176
      %p179 = scmp.ne.s32.totalorder %s164, %s178
      %p180 = scmp.eq.s32.totalorder %s37, 0
      %p181 = por %p179, %p180
      %s183 = sadd.s32 %s182, 1
      %p186 = scmp.eq.s32.totalorder %s31, 3
      %p187 = scmp.ne.s32.totalorder %s182, %s184
      %p188 = scmp.eq.s32.totalorder %s31, 0
      %p189 = por %p187, %p188
      %p190 = scmp.ne.s32.totalorder %s182, %s184
      %p191 = scmp.eq.s32.totalorder %s36, 3
      %p192 = por %p190, %p191
      %p193 = scmp.ne.s32.totalorder %s184, %s185
      %p194 = scmp.eq.s32.totalorder %s36, 0
      %p195 = por %p193, %p194
      %p196 = scmp.ne.s32.totalorder %s184, %s185
      %p197 = scmp.eq.s32.totalorder %s37, 3
      %p198 = por %p196, %p197
      %p200 = scmp.ne.s32.totalorder %s185, %s199
      %p201 = scmp.eq.s32.totalorder %s37, 0
      %p202 = por %p200, %p201
      %s204 = sadd.s32 %s203, 1
      %p207 = scmp.eq.s32.totalorder %s31, 3
      %p208 = scmp.ne.s32.totalorder %s203, %s205
      %p209 = scmp.eq.s32.totalorder %s31, 0
      %p210 = por %p208, %p209
      %p211 = scmp.ne.s32.totalorder %s203, %s205
      %p212 = scmp.eq.s32.totalorder %s36, 3
      %p213 = por %p211, %p212
      %p214 = scmp.ne.s32.totalorder %s205, %s206
      %p215 = scmp.eq.s32.totalorder %s36, 0
      %p216 = por %p214, %p215
      %p217 = scmp.ne.s32.totalorder %s205, %s206
      %p218 = scmp.eq.s32.totalorder %s37, 3
      %p219 = por %p217, %p218
      %p221 = scmp.ne.s32.totalorder %s206, %s220
      %p222 = scmp.eq.s32.totalorder %s37, 0
      %p223 = por %p221, %p222
      %s225 = sadd.s32 %s224, 1
      %p228 = scmp.eq.s32.totalorder %s31, 3
      %p229 = scmp.ne.s32.totalorder %s224, %s226
      %p230 = scmp.eq.s32.totalorder %s31, 0
      %p231 = por %p229, %p230
      %p232 = scmp.ne.s32.totalorder %s224, %s226
      %p233 = scmp.eq.s32.totalorder %s36, 3
      %p234 = por %p232, %p233
      %p235 = scmp.ne.s32.totalorder %s226, %s227
      %p236 = scmp.eq.s32.totalorder %s36, 0
      %p237 = por %p235, %p236
      %p238 = scmp.ne.s32.totalorder %s226, %s227
      %p239 = scmp.eq.s32.totalorder %s37, 3
      %p240 = por %p238, %p239
      %p242 = scmp.ne.s32.totalorder %s227, %s241
      %p243 = scmp.eq.s32.totalorder %s37, 0
      %p244 = por %p242, %p243
      %s246 = sadd.s32 %s245, 1
      %p249 = scmp.eq.s32.totalorder %s31, 3
      %p250 = scmp.ne.s32.totalorder %s245, %s247
      %p251 = scmp.eq.s32.totalorder %s31, 0
      %p252 = por %p250, %p251
      %p253 = scmp.ne.s32.totalorder %s245, %s247
      %p254 = scmp.eq.s32.totalorder %s36, 3
      %p255 = por %p253, %p254
      %p256 = scmp.ne.s32.totalorder %s247, %s248
      %p257 = scmp.eq.s32.totalorder %s36, 0
      %p258 = por %p256, %p257
      %p259 = scmp.ne.s32.totalorder %s247, %s248
      %p260 = scmp.eq.s32.totalorder %s37, 3
      %p261 = por %p259, %p260
      %p263 = scmp.ne.s32.totalorder %s248, %s262
      %p264 = scmp.eq.s32.totalorder %s37, 0
      %p265 = por %p263, %p264
      %s267 = sadd.s32 %s266, 1
      %p270 = scmp.eq.s32.totalorder %s31, 3
      %p271 = scmp.ne.s32.totalorder %s266, %s268
      %p272 = scmp.eq.s32.totalorder %s31, 0
      %p273 = por %p271, %p272
      %p274 = scmp.ne.s32.totalorder %s266, %s268
      %p275 = scmp.eq.s32.totalorder %s36, 3
      %p276 = por %p274, %p275
      %p277 = scmp.ne.s32.totalorder %s268, %s269
      %p278 = scmp.eq.s32.totalorder %s36, 0
      %p279 = por %p277, %p278
      %p280 = scmp.ne.s32.totalorder %s268, %s269
      %p281 = scmp.eq.s32.totalorder %s37, 3
      %p282 = por %p280, %p281
      %p284 = scmp.ne.s32.totalorder %s269, %s283
      %p285 = scmp.eq.s32.totalorder %s37, 0
      %p286 = por %p284, %p285
      %s288 = sadd.s32 %s287, 1
      %p291 = scmp.eq.s32.totalorder %s31, 3
      %p292 = scmp.ne.s32.totalorder %s287, %s289
      %p293 = scmp.eq.s32.totalorder %s31, 0
      %p294 = por %p292, %p293
      %p295 = scmp.ne.s32.totalorder %s287, %s289
      %p296 = scmp.eq.s32.totalorder %s36, 3
      %p297 = por %p295, %p296
      %p298 = scmp.ne.s32.totalorder %s289, %s290
      %p299 = scmp.eq.s32.totalorder %s36, 0
      %p300 = por %p298, %p299
      %p301 = scmp.ne.s32.totalorder %s289, %s290
      %p302 = scmp.eq.s32.totalorder %s37, 3
      %p303 = por %p301, %p302
      %p305 = scmp.ne.s32.totalorder %s290, %s304
      %p306 = scmp.eq.s32.totalorder %s37, 0
      %p307 = por %p305, %p306
      %s309 = sadd.s32 %s308, 1
      %p312 = scmp.eq.s32.totalorder %s31, 3
      %p313 = scmp.ne.s32.totalorder %s308, %s310
      %p314 = scmp.eq.s32.totalorder %s31, 0
      %p315 = por %p313, %p314
      %p316 = scmp.ne.s32.totalorder %s308, %s310
      %p317 = scmp.eq.s32.totalorder %s36, 3
      %p318 = por %p316, %p317
      %p319 = scmp.ne.s32.totalorder %s310, %s311
      %p320 = scmp.eq.s32.totalorder %s36, 0
      %p321 = por %p319, %p320
      %p322 = scmp.ne.s32.totalorder %s310, %s311
      %p323 = scmp.eq.s32.totalorder %s37, 3
      %p324 = por %p322, %p323
      %p326 = scmp.ne.s32.totalorder %s311, %s325
      %p327 = scmp.eq.s32.totalorder %s37, 0
      %p328 = por %p326, %p327
      %s330 = sadd.s32 %s329, 1
      %p333 = scmp.eq.s32.totalorder %s31, 3
      %p334 = scmp.ne.s32.totalorder %s329, %s331
      %p335 = scmp.eq.s32.totalorder %s31, 0
      %p336 = por %p334, %p335
      %p337 = scmp.ne.s32.totalorder %s329, %s331
      %p338 = scmp.eq.s32.totalorder %s36, 3
      %p339 = por %p337, %p338
      %p340 = scmp.ne.s32.totalorder %s331, %s332
      %p341 = scmp.eq.s32.totalorder %s36, 0
      %p342 = por %p340, %p341
      %p343 = scmp.ne.s32.totalorder %s331, %s332
      %p344 = scmp.eq.s32.totalorder %s37, 3
      %p345 = por %p343, %p344
      %p347 = scmp.ne.s32.totalorder %s332, %s346
      %p348 = scmp.eq.s32.totalorder %s37, 0
      %p349 = por %p347, %p348
      %s351 = sadd.s32 %s350, 1
      %p354 = scmp.eq.s32.totalorder %s31, 3
      %p355 = scmp.ne.s32.totalorder %s350, %s352
      %p356 = scmp.eq.s32.totalorder %s31, 0
      %p357 = por %p355, %p356
      %p358 = scmp.ne.s32.totalorder %s350, %s352
      %p359 = scmp.eq.s32.totalorder %s36, 3
      %p360 = por %p358, %p359
      %p361 = scmp.ne.s32.totalorder %s352, %s353
      %p362 = scmp.eq.s32.totalorder %s36, 0
      %p363 = por %p361, %p362
      %p364 = scmp.ne.s32.totalorder %s352, %s353
      %p365 = scmp.eq.s32.totalorder %s37, 3
      %p366 = por %p364, %p365
      %p368 = scmp.ne.s32.totalorder %s353, %s367
      %p369 = scmp.eq.s32.totalorder %s37, 0
      %p370 = por %p368, %p369
      %s372 = sadd.s32 %s371, 1
      %p375 = scmp.eq.s32.totalorder %s31, 3
      %p376 = scmp.ne.s32.totalorder %s371, %s373
      %p377 = scmp.eq.s32.totalorder %s31, 0
      %p378 = por %p376, %p377
      %p379 = scmp.ne.s32.totalorder %s371, %s373
      %p380 = scmp.eq.s32.totalorder %s36, 3
      %p381 = por %p379, %p380
      %p382 = scmp.ne.s32.totalorder %s373, %s374
      %p383 = scmp.eq.s32.totalorder %s36, 0
      %p384 = por %p382, %p383
      %p385 = scmp.ne.s32.totalorder %s373, %s374
      %p386 = scmp.eq.s32.totalorder %s37, 3
      %p387 = por %p385, %p386
      %p389 = scmp.ne.s32.totalorder %s374, %s388
      %p390 = scmp.eq.s32.totalorder %s37, 0
      %p391 = por %p389, %p390
      %s393 = sadd.s32 %s392, 1
      %p396 = scmp.eq.s32.totalorder %s31, 3
      %p397 = scmp.ne.s32.totalorder %s392, %s394
      %p398 = scmp.eq.s32.totalorder %s31, 0
      %p399 = por %p397, %p398
      %p400 = scmp.ne.s32.totalorder %s392, %s394
      %p401 = scmp.eq.s32.totalorder %s36, 3
      %p402 = por %p400, %p401
      %p403 = scmp.ne.s32.totalorder %s394, %s395
      %p404 = scmp.eq.s32.totalorder %s36, 0
      %p405 = por %p403, %p404
      %p406 = scmp.ne.s32.totalorder %s394, %s395
      %p407 = scmp.eq.s32.totalorder %s37, 3
      %p408 = por %p406, %p407
      %p410 = scmp.ne.s32.totalorder %s395, %s409
      %p411 = scmp.eq.s32.totalorder %s37, 0
      %p412 = por %p410, %p411
      %s413 = ssub.s32 %s38, %s50
      %s414 = ssub.s32 %s39, %s46
      %s415 = sor.u32 %s413, %s414
      %p416 = scmp.eq.s32.totalorder %s415, 0
      %s418 = sadd.s32 %s417, 1
      %s419 = scalar_select %p416, %s417, %s418
      %p422 = pneg %p416
      %p423 = scmp.eq.s32.totalorder %s31, 3
      %p424 = por %p422, %p423
      %p425 = scmp.ne.s32.totalorder %s417, %s420
      %p426 = scmp.eq.s32.totalorder %s31, 0
      %p427 = por %p425, %p426
      %p428 = scmp.ne.s32.totalorder %s417, %s420
      %p429 = scmp.eq.s32.totalorder %s36, 3
      %p430 = por %p428, %p429
      %p431 = scmp.ne.s32.totalorder %s420, %s421
      %p432 = scmp.eq.s32.totalorder %s36, 0
      %p433 = por %p431, %p432
      %p434 = scmp.ne.s32.totalorder %s420, %s421
      %p435 = scmp.eq.s32.totalorder %s37, 3
      %p436 = por %p434, %p435
      %p438 = scmp.ne.s32.totalorder %s421, %s437
      %p439 = scmp.eq.s32.totalorder %s37, 0
      %p440 = por %p438, %p439
      %p441 = scmp.le.s32.totalorder 1, %s31
      %p442 = scmp.lt.s32.totalorder %s31, 5
      %p443 = pnand %p441, %p442
      %p444 = pneg %p443
      // Predicated region
      $region9: #{tpu_custom_call.1} parent=5 // pred_check
        _
      $region10: #{tpu_custom_call.1} parent=5 // pred_check_branch
        %446 = sbr.rel (%p443) target = $region12
      $region11: #{tpu_custom_call.1} parent=5 // pred_region
        %s447 = ssub.s32 %s31, 1
        // Predicated region
        $region13: #{tpu_custom_call.1} parent=11 // pred_check
          %p448 = pneg %p69
        $region14: #{tpu_custom_call.1} parent=11 // pred_check_branch
          %450 = sbr.rel (%p448) target = $region16
        $region15: #{tpu_custom_call.1} parent=11 // pred_region
          %452 = vsyncadd [#allocation6], 0
          %s453 = smul.addr %s40, 2
          %s454 = smul.addr %s453, 8
          %s455 = scalar_lea.hbm %s0, %s454
          %s456 = sshll.u32 %s455, 4
          %s457 = int_to_ptr.hbm [resolvable:$true] %s456
          %s458 = sshll.u32 [#allocation5], 4
          %s459 = int_to_ptr.vmem [resolvable:$true] %s458
          %464 = dma.hbm_to_vmem [thread:$0]  %s457, 256, %s459, [#allocation6], 128, 128, 8
        $region16: #{tpu_custom_call.1} parent=11 // pred_fallthru
          _
        // Predicated region
        $region17: #{tpu_custom_call.1} parent=11 // pred_check
          %p465 = pneg %p90
        $region18: #{tpu_custom_call.1} parent=11 // pred_check_branch
          %467 = sbr.rel (%p465) target = $region20
        $region19: #{tpu_custom_call.1} parent=11 // pred_region
          %469 = vsyncadd [#allocation9], 0
          %s471 = sshll.u32 %s1, 4
          %s472 = int_to_ptr.hbm [resolvable:$true] %s471
          %s473 = sshll.u32 [#allocation8], 4
          %s474 = int_to_ptr.vmem [resolvable:$true] %s473
          %476 = dma.hbm_to_vmem [thread:$0]  %s472, 16, %s474, [#allocation9]
        $region20: #{tpu_custom_call.1} parent=11 // pred_fallthru
          _
        // Predicated region
        $region21: #{tpu_custom_call.1} parent=11 // pred_check
          %p477 = pneg %p111
        $region22: #{tpu_custom_call.1} parent=11 // pred_check_branch
          %479 = sbr.rel (%p477) target = $region24
        $region23: #{tpu_custom_call.1} parent=11 // pred_region
          _
        $region24: #{tpu_custom_call.1} parent=11 // pred_fallthru
          _
        // Predicated region
        $region25: #{tpu_custom_call.1} parent=11 // pred_check
          %p480 = pneg %p132
        $region26: #{tpu_custom_call.1} parent=11 // pred_check_branch
          %482 = sbr.rel (%p480) target = $region28
        $region27: #{tpu_custom_call.1} parent=11 // pred_region
          %484 = vsyncadd [#allocation9], 0
          %s485 = sshll.u32 %s3, 4
          %s486 = int_to_ptr.hbm [resolvable:$true] %s485
          %s487 = sshll.u32 [#allocation10], 4
          %s488 = int_to_ptr.vmem [resolvable:$true] %s487
          %493 = dma.hbm_to_vmem [thread:$0]  %s486, 1024, %s488, [#allocation9], 64, 64, 4
        $region28: #{tpu_custom_call.1} parent=11 // pred_fallthru
          _
        // Predicated region
        $region29: #{tpu_custom_call.1} parent=11 // pred_check
          %p494 = pneg %p153
        $region30: #{tpu_custom_call.1} parent=11 // pred_check_branch
          %496 = sbr.rel (%p494) target = $region32
        $region31: #{tpu_custom_call.1} parent=11 // pred_region
          %498 = vsyncadd [#allocation12], 0
          %s500 = sshll.u32 %s4, 4
          %s501 = int_to_ptr.hbm [resolvable:$true] %s500
          %s502 = sshll.u32 [#allocation11], 4
          %s503 = int_to_ptr.vmem [resolvable:$true] %s502
          %505 = dma.hbm_to_vmem [thread:$0]  %s501, 16, %s503, [#allocation12]
        $region32: #{tpu_custom_call.1} parent=11 // pred_fallthru
          _
        // Predicated region
        $region33: #{tpu_custom_call.1} parent=11 // pred_check
          %p506 = pneg %p174
        $region34: #{tpu_custom_call.1} parent=11 // pred_check_branch
          %508 = sbr.rel (%p506) target = $region36
        $region35: #{tpu_custom_call.1} parent=11 // pred_region
          %510 = vsyncadd [#allocation12], 0
          %s511 = sshll.u32 %s5, 4
          %s512 = int_to_ptr.hbm [resolvable:$true] %s511
          %s513 = sshll.u32 [#allocation13], 4
          %s514 = int_to_ptr.vmem [resolvable:$true] %s513
          %519 = dma.hbm_to_vmem [thread:$0]  %s512, 1024, %s514, [#allocation12], 64, 64, 4
        $region36: #{tpu_custom_call.1} parent=11 // pred_fallthru
          _
        // Predicated region
        $region37: #{tpu_custom_call.1} parent=11 // pred_check
          %p520 = pneg %p195
        $region38: #{tpu_custom_call.1} parent=11 // pred_check_branch
          %522 = sbr.rel (%p520) target = $region40
        $region39: #{tpu_custom_call.1} parent=11 // pred_region
          _
        $region40: #{tpu_custom_call.1} parent=11 // pred_fallthru
          _
        // Predicated region
        $region41: #{tpu_custom_call.1} parent=11 // pred_check
          %p523 = pneg %p216
        $region42: #{tpu_custom_call.1} parent=11 // pred_check_branch
          %525 = sbr.rel (%p523) target = $region44
        $region43: #{tpu_custom_call.1} parent=11 // pred_region
          %527 = vsyncadd [#allocation15], 0
          %s528 = sshll.u32 %s7, 4
          %s529 = int_to_ptr.hbm [resolvable:$true] %s528
          %s530 = sshll.u32 [#allocation14], 4
          %s531 = int_to_ptr.vmem [resolvable:$true] %s530
          %536 = dma.hbm_to_vmem [thread:$0]  %s529, 1024, %s531, [#allocation15], 64, 64, 4
        $region44: #{tpu_custom_call.1} parent=11 // pred_fallthru
          _
        // Predicated region
        $region45: #{tpu_custom_call.1} parent=11 // pred_check
          %p537 = pneg %p237
        $region46: #{tpu_custom_call.1} parent=11 // pred_check_branch
          %539 = sbr.rel (%p537) target = $region48
        $region47: #{tpu_custom_call.1} parent=11 // pred_region
          _
        $region48: #{tpu_custom_call.1} parent=11 // pred_fallthru
          _
        // Predicated region
        $region49: #{tpu_custom_call.1} parent=11 // pred_check
          %p540 = pneg %p258
        $region50: #{tpu_custom_call.1} parent=11 // pred_check_branch
          %542 = sbr.rel (%p540) target = $region52
        $region51: #{tpu_custom_call.1} parent=11 // pred_region
          %544 = vsyncadd [#allocation15], 0
          %s545 = sshll.u32 %s9, 4
          %s546 = int_to_ptr.hbm [resolvable:$true] %s545
          %s547 = sshll.u32 [#allocation16], 4
          %s548 = int_to_ptr.vmem [resolvable:$true] %s547
          %553 = dma.hbm_to_vmem [thread:$0]  %s546, 1024, %s548, [#allocation15], 64, 64, 4
        $region52: #{tpu_custom_call.1} parent=11 // pred_fallthru
          _
        // Predicated region
        $region53: #{tpu_custom_call.1} parent=11 // pred_check
          %p554 = pneg %p279
        $region54: #{tpu_custom_call.1} parent=11 // pred_check_branch
          %556 = sbr.rel (%p554) target = $region56
        $region55: #{tpu_custom_call.1} parent=11 // pred_region
          _
        $region56: #{tpu_custom_call.1} parent=11 // pred_fallthru
          _
        // Predicated region
        $region57: #{tpu_custom_call.1} parent=11 // pred_check
          %p557 = pneg %p300
        $region58: #{tpu_custom_call.1} parent=11 // pred_check_branch
          %559 = sbr.rel (%p557) target = $region60
        $region59: #{tpu_custom_call.1} parent=11 // pred_region
          _
        $region60: #{tpu_custom_call.1} parent=11 // pred_fallthru
          _
        // Predicated region
        $region61: #{tpu_custom_call.1} parent=11 // pred_check
          %p560 = pneg %p321
        $region62: #{tpu_custom_call.1} parent=11 // pred_check_branch
          %562 = sbr.rel (%p560) target = $region64
        $region63: #{tpu_custom_call.1} parent=11 // pred_region
          _
        $region64: #{tpu_custom_call.1} parent=11 // pred_fallthru
          _
        // Predicated region
        $region65: #{tpu_custom_call.1} parent=11 // pred_check
          %p563 = pneg %p342
        $region66: #{tpu_custom_call.1} parent=11 // pred_check_branch
          %565 = sbr.rel (%p563) target = $region68
        $region67: #{tpu_custom_call.1} parent=11 // pred_region
          %567 = vsyncadd [#allocation18], 0
          %s568 = sshll.u32 %s13, 4
          %s569 = int_to_ptr.hbm [resolvable:$true] %s568
          %s570 = sshll.u32 [#allocation17], 4
          %s571 = int_to_ptr.vmem [resolvable:$true] %s570
          %576 = dma.hbm_to_vmem [thread:$0]  %s569, 2048, %s571, [#allocation18], 128, 128, 8
        $region68: #{tpu_custom_call.1} parent=11 // pred_fallthru
          _
        // Predicated region
        $region69: #{tpu_custom_call.1} parent=11 // pred_check
          %p577 = pneg %p363
        $region70: #{tpu_custom_call.1} parent=11 // pred_check_branch
          %579 = sbr.rel (%p577) target = $region72
        $region71: #{tpu_custom_call.1} parent=11 // pred_region
          _
        $region72: #{tpu_custom_call.1} parent=11 // pred_fallthru
          _
        // Predicated region
        $region73: #{tpu_custom_call.1} parent=11 // pred_check
          %p580 = pneg %p384
        $region74: #{tpu_custom_call.1} parent=11 // pred_check_branch
          %582 = sbr.rel (%p580) target = $region76
        $region75: #{tpu_custom_call.1} parent=11 // pred_region
          %584 = vsyncadd [#allocation18], 0
          %s585 = sshll.u32 %s15, 4
          %s586 = int_to_ptr.hbm [resolvable:$true] %s585
          %s587 = sshll.u32 [#allocation19], 4
          %s588 = int_to_ptr.vmem [resolvable:$true] %s587
          %593 = dma.hbm_to_vmem [thread:$0]  %s586, 2048, %s588, [#allocation18], 64, 64, 4
        $region76: #{tpu_custom_call.1} parent=11 // pred_fallthru
          _
        // Predicated region
        $region77: #{tpu_custom_call.1} parent=11 // pred_check
          %p594 = pneg %p405
        $region78: #{tpu_custom_call.1} parent=11 // pred_check_branch
          %596 = sbr.rel (%p594) target = $region80
        $region79: #{tpu_custom_call.1} parent=11 // pred_region
          _
        $region80: #{tpu_custom_call.1} parent=11 // pred_fallthru
          _
      $region12: #{tpu_custom_call.1} parent=5 // pred_fallthru
        _
      %p597 = scmp.lt.s32.totalorder %s31, 4
      // Predicated region
      $region81: #{tpu_custom_call.1} parent=5 // pred_check
        %p598 = pneg %p597
      $region82: #{tpu_custom_call.1} parent=5 // pred_check_branch
        %600 = sbr.rel (%p598) target = $region84
      $region83: #{tpu_custom_call.1} parent=5 // pred_region
        _
      $region84: #{tpu_custom_call.1} parent=5 // pred_fallthru
        _
      %p601 = scmp.le.s32.totalorder 1, %s31
      %p602 = scmp.lt.s32.totalorder %s31, 5
      %p603 = pnand %p601, %p602
      %p604 = pneg %p603
      // Predicated region
      $region85: #{tpu_custom_call.1} parent=5 // pred_check
        _
      $region86: #{tpu_custom_call.1} parent=5 // pred_check_branch
        %606 = sbr.rel (%p603) target = $region88
      $region87: #{tpu_custom_call.1} parent=5 // pred_region
        %s607 = ssub.s32 %s31, 1
        // Predicated region
        $region89: #{tpu_custom_call.1} parent=87 // pred_check
          %p608 = pneg %p69
        $region90: #{tpu_custom_call.1} parent=87 // pred_check_branch
          %610 = sbr.rel (%p608) target = $region92
        $region91: #{tpu_custom_call.1} parent=87 // pred_region
          %612 = dma.done [#allocation6], 256
        $region92: #{tpu_custom_call.1} parent=87 // pred_fallthru
          _
        // Predicated region
        $region93: #{tpu_custom_call.1} parent=87 // pred_check
          %p613 = pneg %p90
        $region94: #{tpu_custom_call.1} parent=87 // pred_check_branch
          %615 = sbr.rel (%p613) target = $region96
        $region95: #{tpu_custom_call.1} parent=87 // pred_region
          %617 = dma.done [#allocation9], 16
        $region96: #{tpu_custom_call.1} parent=87 // pred_fallthru
          _
        // Predicated region
        $region97: #{tpu_custom_call.1} parent=87 // pred_check
          %p618 = pneg %p132
        $region98: #{tpu_custom_call.1} parent=87 // pred_check_branch
          %620 = sbr.rel (%p618) target = $region100
        $region99: #{tpu_custom_call.1} parent=87 // pred_region
          %622 = dma.done [#allocation9], 1024
        $region100: #{tpu_custom_call.1} parent=87 // pred_fallthru
          _
        // Predicated region
        $region101: #{tpu_custom_call.1} parent=87 // pred_check
          %p623 = pneg %p153
        $region102: #{tpu_custom_call.1} parent=87 // pred_check_branch
          %625 = sbr.rel (%p623) target = $region104
        $region103: #{tpu_custom_call.1} parent=87 // pred_region
          %627 = dma.done [#allocation12], 16
        $region104: #{tpu_custom_call.1} parent=87 // pred_fallthru
          _
        // Predicated region
        $region105: #{tpu_custom_call.1} parent=87 // pred_check
          %p628 = pneg %p174
        $region106: #{tpu_custom_call.1} parent=87 // pred_check_branch
          %630 = sbr.rel (%p628) target = $region108
        $region107: #{tpu_custom_call.1} parent=87 // pred_region
          %632 = dma.done [#allocation12], 1024
        $region108: #{tpu_custom_call.1} parent=87 // pred_fallthru
          _
        // Predicated region
        $region109: #{tpu_custom_call.1} parent=87 // pred_check
          %p633 = pneg %p216
        $region110: #{tpu_custom_call.1} parent=87 // pred_check_branch
          %635 = sbr.rel (%p633) target = $region112
        $region111: #{tpu_custom_call.1} parent=87 // pred_region
          %637 = dma.done [#allocation15], 1024
        $region112: #{tpu_custom_call.1} parent=87 // pred_fallthru
          _
        // Predicated region
        $region113: #{tpu_custom_call.1} parent=87 // pred_check
          %p638 = pneg %p258
        $region114: #{tpu_custom_call.1} parent=87 // pred_check_branch
          %640 = sbr.rel (%p638) target = $region116
        $region115: #{tpu_custom_call.1} parent=87 // pred_region
          %642 = dma.done [#allocation15], 1024
        $region116: #{tpu_custom_call.1} parent=87 // pred_fallthru
          _
        // Predicated region
        $region117: #{tpu_custom_call.1} parent=87 // pred_check
          %p643 = pneg %p342
        $region118: #{tpu_custom_call.1} parent=87 // pred_check_branch
          %645 = sbr.rel (%p643) target = $region120
        $region119: #{tpu_custom_call.1} parent=87 // pred_region
          %647 = dma.done [#allocation18], 2048
        $region120: #{tpu_custom_call.1} parent=87 // pred_fallthru
          _
        // Predicated region
        $region121: #{tpu_custom_call.1} parent=87 // pred_check
          %p648 = pneg %p384
        $region122: #{tpu_custom_call.1} parent=87 // pred_check_branch
          %650 = sbr.rel (%p648) target = $region124
        $region123: #{tpu_custom_call.1} parent=87 // pred_region
          %652 = dma.done [#allocation18], 2048
        $region124: #{tpu_custom_call.1} parent=87 // pred_fallthru
          _
        %p653 = pneg %p69
        %p654 = pneg %p66
        %p655 = pneg %p90
        %p656 = pneg %p87
        %p657 = pneg %p111
        %p658 = pneg %p108
        %p659 = pneg %p132
        %p660 = pneg %p129
        %p661 = pneg %p153
        %p662 = pneg %p150
        %p663 = pneg %p174
        %p664 = pneg %p171
        %p665 = pneg %p195
        %p666 = pneg %p192
        %p667 = pneg %p216
        %p668 = pneg %p213
        %p669 = pneg %p237
        %p670 = pneg %p234
        %p671 = pneg %p258
        %p672 = pneg %p255
        %p673 = pneg %p279
        %p674 = pneg %p276
        %p675 = pneg %p300
        %p676 = pneg %p297
        %p677 = pneg %p321
        %p678 = pneg %p318
        %p679 = pneg %p342
        %p680 = pneg %p339
        %p681 = pneg %p363
        %p682 = pneg %p360
        %p683 = pneg %p384
        %p684 = pneg %p381
        %p685 = pneg %p405
        %p686 = pneg %p402
        %p687 = pneg %p433
        %p688 = pneg %p430
        %s689 = sand.u32 %s420, 1
        %s690 = scalar_lea.sflag [#allocation7], %s689
        %s691 = sand.u32 %s420, 1
        %s692 = smul.addr %s691, 8
        %s693 = scalar_lea.vmem [#allocation20], %s692
        %p695 = scmp.eq.s32.totalorder %s41, 0
        // Predicated region
        $region125: #{tpu_custom_call.1} parent=87 // pred_check
          %p696 = pneg %p695
        $region126: #{tpu_custom_call.1} parent=87 // pred_check_branch
          %698 = sbr.rel (%p696) target = $region128
        $region127: #{tpu_custom_call.1} parent=87 // pred_region
          %v699 = vld [vmem:[#allocation5] sm:$0xff]
          %v700 = vld [vmem:[#allocation5 + $0x8] sm:$0xff]
          %v701 = vld [vmem:[#allocation8] sm:$0x1]
          %v702 = vld [vmem:[%s2] sm:$0x1]
          %703 = vadd.xlane.f32.xlu0 %v699
          %v704 = vpop.xlane.xlu0 %703
          %705 = vadd.xlane.f32.xlu0 %v700
          %v706 = vpop.xlane.xlu0 %705
          %v707 = vrcp.pop 128.0
          %v708 = vmul.f32 128.0, %v707
          %v709 = vsub.f32 1.0, %v708
          %v710 = vmul.f32 %v707, %v709
          %v711 = vadd.f32 %v707, %v710
          %vm712 = vweird.f32 %v707
          %v713 = vsel %vm712, %v707, %v711
          %v714 = vmul.f32 %v704, %v713
          %v715 = vmul.f32 %v706, %v713
          %v716 = vsub.f32 %v699, %v714
          %v717 = vsub.f32 %v700, %v715
          %v718 = vmul.f32 %v716, %v716
          %v719 = vmul.f32 %v717, %v717
          %720 = vadd.xlane.f32.xlu0 %v718
          %v721 = vpop.xlane.xlu0 %720
          %722 = vadd.xlane.f32.xlu0 %v719
          %v723 = vpop.xlane.xlu0 %722
          %v724 = vmul.f32 %v721, %v713
          %v725 = vmul.f32 %v723, %v713
          %v726 = vadd.f32 %v724, 1e-06
          %v727 = vadd.f32 %v725, 1e-06
          %v728 = vrsqrt.pop %v726
          %v729 = vmul.f32 %v728, %v726
          %v730 = vmul.f32 %v729, %v728
          %v731 = vmul.f32 0.5, %v730
          %v732 = vsub.f32 1.5, %v731
          %v733 = vmul.f32 %v728, %v732
          %vm734 = vweird.f32 %v726
          %vm735 = vweird.f32 %v728
          %vm736 = vmor %vm734, %vm735
          %v737 = vsel %vm736, %v728, %v733
          %v738 = vrsqrt.pop %v727
          %v739 = vmul.f32 %v738, %v727
          %v740 = vmul.f32 %v739, %v738
          %v741 = vmul.f32 0.5, %v740
          %v742 = vsub.f32 1.5, %v741
          %v743 = vmul.f32 %v738, %v742
          %vm744 = vweird.f32 %v727
          %vm745 = vweird.f32 %v738
          %vm746 = vmor %vm744, %vm745
          %v747 = vsel %vm746, %v738, %v743
          %v748 = vmul.f32 %v716, %v737
          %v749 = vmul.f32 %v717, %v747
          %v751 = vperm.slane %v701, 0
          %v753 = vmul.f32 %v748, %v751
          %v754 = vmul.f32 %v749, %v751
          %v756 = vperm.slane %v702, 0
          %v758 = vadd.f32 %v753, %v756
          %v759 = vadd.f32 %v754, %v756
          %v760 = vpack.c.bf16 %v759, %v758
          %v761 = vld [vmem:[#allocation13] sm:$0xf]
          %v762 = vld [vmem:[#allocation13 + $0x4] sm:$0xf]
          %v763 = vld [vmem:[#allocation13 + $0x8] sm:$0xf]
          %v764 = vld [vmem:[#allocation13 + $0xc] sm:$0xf]
          %v765 = vld [vmem:[#allocation13 + $0x10] sm:$0xf]
          %v766 = vld [vmem:[#allocation13 + $0x14] sm:$0xf]
          %v767 = vld [vmem:[#allocation13 + $0x18] sm:$0xf]
          %v768 = vld [vmem:[#allocation13 + $0x1c] sm:$0xf]
          %v769 = vld [vmem:[#allocation13 + $0x20] sm:$0xf]
          %v770 = vld [vmem:[#allocation13 + $0x24] sm:$0xf]
          %v771 = vld [vmem:[#allocation13 + $0x28] sm:$0xf]
          %v772 = vld [vmem:[#allocation13 + $0x2c] sm:$0xf]
          %v773 = vld [vmem:[#allocation13 + $0x30] sm:$0xf]
          %v774 = vld [vmem:[#allocation13 + $0x34] sm:$0xf]
          %v775 = vld [vmem:[#allocation13 + $0x38] sm:$0xf]
          %v776 = vld [vmem:[#allocation13 + $0x3c] sm:$0xf]
          %v777 = vld [vmem:[%s6] sm:$0x1]
          %v779 = vperm.slane %v777, 0
          %v797 = vunpack.c.l.b16 %v761
          %v798 = vunpack.c.l.b16 %v762
          %v799 = vunpack.c.l.b16 %v763
          %v800 = vunpack.c.l.b16 %v764
          %v801 = vunpack.c.l.b16 %v765
          %v802 = vunpack.c.l.b16 %v766
          %v803 = vunpack.c.l.b16 %v767
          %v804 = vunpack.c.l.b16 %v768
          %v805 = vunpack.c.l.b16 %v769
          %v806 = vunpack.c.l.b16 %v770
          %v807 = vunpack.c.l.b16 %v771
          %v808 = vunpack.c.l.b16 %v772
          %v809 = vunpack.c.l.b16 %v773
          %v810 = vunpack.c.l.b16 %v774
          %v811 = vunpack.c.l.b16 %v775
          %v812 = vunpack.c.l.b16 %v776
          %v813 = vpack.c.b16 %v798, %v797
          %v814 = vpack.c.b16 %v800, %v799
          %v815 = vpack.c.b16 %v802, %v801
          %v816 = vpack.c.b16 %v804, %v803
          %v817 = vpack.c.b16 %v806, %v805
          %v818 = vpack.c.b16 %v808, %v807
          %v819 = vpack.c.b16 %v810, %v809
          %v820 = vpack.c.b16 %v812, %v811
          %829 = vmatpush.bf16.msra.mxu0 %v820
          %830 = vmatpush.bf16.msra.mxu0 %v819
          %831 = vmatpush.bf16.msra.mxu0 %v818
          %832 = vmatpush.bf16.msra.mxu0 %v817
          %833 = vmatpush.bf16.msra.mxu0 %v816
          %834 = vmatpush.bf16.msra.mxu0 %v815
          %835 = vmatpush.bf16.msra.mxu0 %v814
          %836 = vmatpush.bf16.msra.mxu0 %v813
          %837 = vmatmul.bf16.gmra.mxu0 %v760
          %v838 = vpop.f32.mrf.mxu0
          %v839 = vadd.f32 %v779, %v838
          %v840 = vpop.f32.mrf.mxu0
          %v841 = vadd.f32 %v779, %v840
          %842 = vdwg.mxu0
          %v843 = vpack.c.bf16 %v839, %v839
          %v844 = vpack.c.bf16 %v841, %v841
          %847 = vrot.lane.b32.xlu0 %v843, 96
          %v848 = vpop.permute.xlu0 %847
          %849 = vrot.lane.b32.xlu0 %v844, 96
          %v850 = vpop.permute.xlu0 %849
          %851 = vrot.lane.b32.xlu0 %v843, 64
          %v852 = vpop.permute.xlu0 %851
          %853 = vrot.lane.b32.xlu0 %v844, 64
          %v854 = vpop.permute.xlu0 %853
          %855 = vrot.lane.b32.xlu0 %v843, 32
          %v856 = vpop.permute.xlu0 %855
          %857 = vrot.lane.b32.xlu0 %v844, 32
          %v858 = vpop.permute.xlu0 %857
          %v861 = vpack.i.b16 %v848, %v843
          %v862 = vshrl.u32 %v843, 16
          %v863 = vshrl.u32 %v848, 16
          %v864 = vpack.i.b16 %v863, %v862
          %v867 = vpack.i.b16 %v856, %v852
          %v868 = vshrl.u32 %v852, 16
          %v869 = vshrl.u32 %v856, 16
          %v870 = vpack.i.b16 %v869, %v868
          %v873 = vpack.i.b16 %v850, %v844
          %v874 = vshrl.u32 %v844, 16
          %v875 = vshrl.u32 %v850, 16
          %v876 = vpack.i.b16 %v875, %v874
          %v879 = vpack.i.b16 %v858, %v854
          %v880 = vshrl.u32 %v854, 16
          %v881 = vshrl.u32 %v858, 16
          %v882 = vpack.i.b16 %v881, %v880
          %v885 = vunpack.c.l.s4 1983009808
          %v886 = vunpack.c.0.s8 %v885
          %v887 = vperm.slane %v861, %v886
          %v890 = vunpack.c.l.s4 1983009808
          %v891 = vunpack.c.0.s8 %v890
          %v892 = vperm.slane %v867, %v891
          %v893 = vrot.slane %v892, 4
          %vm894 = vcmask 1047556
          %v895 = vsel %vm894, %v893, %v887
          %v896 = vrot.slane %v887, 4
          %v897 = vsel %vm894, %v892, %v896
          %v899 = vunpack.c.l.s4 1934713408
          %v900 = vunpack.c.0.s8 %v899
          %v901 = vperm.slane %v895, %v900
          %v903 = vunpack.c.l.s4 1934713408
          %v904 = vunpack.c.0.s8 %v903
          %v905 = vperm.slane %v897, %v904
          %v906 = vrot.slane %v901, 4
          %v907 = vsel %vm894, 0, %v906
          %v908 = vrot.slane %v905, 4
          %v909 = vsel %vm894, 0, %v908
          %v912 = vunpack.c.l.s4 1983009808
          %v913 = vunpack.c.0.s8 %v912
          %v914 = vperm.slane %v864, %v913
          %v917 = vunpack.c.l.s4 1983009808
          %v918 = vunpack.c.0.s8 %v917
          %v919 = vperm.slane %v870, %v918
          %v920 = vrot.slane %v919, 4
          %v921 = vsel %vm894, %v920, %v914
          %v922 = vrot.slane %v914, 4
          %v923 = vsel %vm894, %v919, %v922
          %v925 = vunpack.c.l.s4 1934713408
          %v926 = vunpack.c.0.s8 %v925
          %v927 = vperm.slane %v921, %v926
          %v929 = vunpack.c.l.s4 1934713408
          %v930 = vunpack.c.0.s8 %v929
          %v931 = vperm.slane %v923, %v930
          %v932 = vrot.slane %v927, 4
          %v933 = vsel %vm894, 0, %v932
          %v934 = vrot.slane %v931, 4
          %v935 = vsel %vm894, 0, %v934
          %v938 = vunpack.c.l.s4 1983009808
          %v939 = vunpack.c.0.s8 %v938
          %v940 = vperm.slane %v873, %v939
          %v943 = vunpack.c.l.s4 1983009808
          %v944 = vunpack.c.0.s8 %v943
          %v945 = vperm.slane %v879, %v944
          %v946 = vrot.slane %v945, 4
          %v947 = vsel %vm894, %v946, %v940
          %v948 = vrot.slane %v940, 4
          %v949 = vsel %vm894, %v945, %v948
          %v951 = vunpack.c.l.s4 1934713408
          %v952 = vunpack.c.0.s8 %v951
          %v953 = vperm.slane %v947, %v952
          %v955 = vunpack.c.l.s4 1934713408
          %v956 = vunpack.c.0.s8 %v955
          %v957 = vperm.slane %v949, %v956
          %v958 = vrot.slane %v953, 4
          %v959 = vsel %vm894, 0, %v958
          %v960 = vrot.slane %v957, 4
          %v961 = vsel %vm894, 0, %v960
          %v964 = vunpack.c.l.s4 1983009808
          %v965 = vunpack.c.0.s8 %v964
          %v966 = vperm.slane %v876, %v965
          %v969 = vunpack.c.l.s4 1983009808
          %v970 = vunpack.c.0.s8 %v969
          %v971 = vperm.slane %v882, %v970
          %v972 = vrot.slane %v971, 4
          %v973 = vsel %vm894, %v972, %v966
          %v974 = vrot.slane %v966, 4
          %v975 = vsel %vm894, %v971, %v974
          %v977 = vunpack.c.l.s4 1934713408
          %v978 = vunpack.c.0.s8 %v977
          %v979 = vperm.slane %v973, %v978
          %v981 = vunpack.c.l.s4 1934713408
          %v982 = vunpack.c.0.s8 %v981
          %v983 = vperm.slane %v975, %v982
          %v984 = vrot.slane %v979, 4
          %v985 = vsel %vm894, 0, %v984
          %v986 = vrot.slane %v983, 4
          %v987 = vsel %vm894, 0, %v986
          %v988 = vsel %vm894, %v908, %v901
          %v990 = vunpack.c.l.s4 1983009808
          %v991 = vunpack.c.0.s8 %v990
          %v992 = vperm.slane %v988, %v991
          %v993 = vrot.slane %v909, 4
          %v994 = vsel %vm894, %v993, %v907
          %v996 = vunpack.c.l.s4 1983009808
          %v997 = vunpack.c.0.s8 %v996
          %v998 = vperm.slane %v994, %v997
          %v999 = vrot.slane %v998, 4
          %v1000 = vsel %vm894, %v999, %v992
          %v1002 = vunpack.c.l.s4 1934713408
          %v1003 = vunpack.c.0.s8 %v1002
          %v1004 = vperm.slane %v1000, %v1003
          %v1005 = vrot.slane %v1004, 4
          %v1006 = vsel %vm894, 0, %v1005
          %v1007 = vsel %vm894, %v934, %v927
          %v1009 = vunpack.c.l.s4 1983009808
          %v1010 = vunpack.c.0.s8 %v1009
          %v1011 = vperm.slane %v1007, %v1010
          %v1012 = vrot.slane %v935, 4
          %v1013 = vsel %vm894, %v1012, %v933
          %v1015 = vunpack.c.l.s4 1983009808
          %v1016 = vunpack.c.0.s8 %v1015
          %v1017 = vperm.slane %v1013, %v1016
          %v1018 = vrot.slane %v1017, 4
          %v1019 = vsel %vm894, %v1018, %v1011
          %v1021 = vunpack.c.l.s4 1934713408
          %v1022 = vunpack.c.0.s8 %v1021
          %v1023 = vperm.slane %v1019, %v1022
          %v1024 = vrot.slane %v1023, 4
          %v1025 = vsel %vm894, 0, %v1024
          %v1026 = vsel %vm894, %v960, %v953
          %v1028 = vunpack.c.l.s4 1983009808
          %v1029 = vunpack.c.0.s8 %v1028
          %v1030 = vperm.slane %v1026, %v1029
          %v1031 = vrot.slane %v961, 4
          %v1032 = vsel %vm894, %v1031, %v959
          %v1034 = vunpack.c.l.s4 1983009808
          %v1035 = vunpack.c.0.s8 %v1034
          %v1036 = vperm.slane %v1032, %v1035
          %v1037 = vrot.slane %v1036, 4
          %v1038 = vsel %vm894, %v1037, %v1030
          %v1040 = vunpack.c.l.s4 1934713408
          %v1041 = vunpack.c.0.s8 %v1040
          %v1042 = vperm.slane %v1038, %v1041
          %v1043 = vrot.slane %v1042, 4
          %v1044 = vsel %vm894, 0, %v1043
          %v1045 = vsel %vm894, %v986, %v979
          %v1047 = vunpack.c.l.s4 1983009808
          %v1048 = vunpack.c.0.s8 %v1047
          %v1049 = vperm.slane %v1045, %v1048
          %v1050 = vrot.slane %v987, 4
          %v1051 = vsel %vm894, %v1050, %v985
          %v1053 = vunpack.c.l.s4 1983009808
          %v1054 = vunpack.c.0.s8 %v1053
          %v1055 = vperm.slane %v1051, %v1054
          %v1056 = vrot.slane %v1055, 4
          %v1057 = vsel %vm894, %v1056, %v1049
          %v1059 = vunpack.c.l.s4 1934713408
          %v1060 = vunpack.c.0.s8 %v1059
          %v1061 = vperm.slane %v1057, %v1060
          %v1062 = vrot.slane %v1061, 4
          %v1063 = vsel %vm894, 0, %v1062
          %v1066 = vpack.i.b16 %v1023, %v1004
          %v1068 = vshrl.u32 %v1004, 16
          %v1069 = vshrl.u32 %v1023, 16
          %v1070 = vpack.i.b16 %v1069, %v1068
          %v1074 = vpack.i.b16 %v1025, %v1006
          %v1076 = vshrl.u32 %v1006, 16
          %v1077 = vshrl.u32 %v1025, 16
          %v1078 = vpack.i.b16 %v1077, %v1076
          %v1082 = vpack.i.b16 %v1061, %v1042
          %v1084 = vshrl.u32 %v1042, 16
          %v1085 = vshrl.u32 %v1061, 16
          %v1086 = vpack.i.b16 %v1085, %v1084
          %v1090 = vpack.i.b16 %v1063, %v1044
          %v1092 = vshrl.u32 %v1044, 16
          %v1093 = vshrl.u32 %v1063, 16
          %v1094 = vpack.i.b16 %v1093, %v1092
          %vm1096 = vcmask 257024
          %1097 = vst.msk [vmem:[#allocation2] sm:$0xf] %vm1096, %v1066
          %1098 = vst.msk [vmem:[#allocation2 + $0x4] sm:$0xf] %vm1096, %v1082
          %1099 = vst.msk [vmem:[#allocation2 + $0x8] sm:$0xf] %vm1096, %v1070
          %1100 = vst.msk [vmem:[#allocation2 + $0xc] sm:$0xf] %vm1096, %v1086
          %1101 = vst.msk [vmem:[#allocation2 + $0x10] sm:$0xf] %vm1096, %v1074
          %1102 = vst.msk [vmem:[#allocation2 + $0x14] sm:$0xf] %vm1096, %v1090
          %1103 = vst.msk [vmem:[#allocation2 + $0x18] sm:$0xf] %vm1096, %v1078
          %1104 = vst.msk [vmem:[#allocation2 + $0x1c] sm:$0xf] %vm1096, %v1094
          %v1105 = vld [vmem:[#allocation14] sm:$0xf]
          %v1106 = vld [vmem:[#allocation14 + $0x4] sm:$0xf]
          %v1107 = vld [vmem:[#allocation14 + $0x8] sm:$0xf]
          %v1108 = vld [vmem:[#allocation14 + $0xc] sm:$0xf]
          %v1109 = vld [vmem:[#allocation14 + $0x10] sm:$0xf]
          %v1110 = vld [vmem:[#allocation14 + $0x14] sm:$0xf]
          %v1111 = vld [vmem:[#allocation14 + $0x18] sm:$0xf]
          %v1112 = vld [vmem:[#allocation14 + $0x1c] sm:$0xf]
          %v1113 = vld [vmem:[#allocation14 + $0x20] sm:$0xf]
          %v1114 = vld [vmem:[#allocation14 + $0x24] sm:$0xf]
          %v1115 = vld [vmem:[#allocation14 + $0x28] sm:$0xf]
          %v1116 = vld [vmem:[#allocation14 + $0x2c] sm:$0xf]
          %v1117 = vld [vmem:[#allocation14 + $0x30] sm:$0xf]
          %v1118 = vld [vmem:[#allocation14 + $0x34] sm:$0xf]
          %v1119 = vld [vmem:[#allocation14 + $0x38] sm:$0xf]
          %v1120 = vld [vmem:[#allocation14 + $0x3c] sm:$0xf]
          %v1121 = vld [vmem:[%s8] sm:$0x1]
          %v1123 = vperm.slane %v1121, 0
          %v1141 = vunpack.c.l.b16 %v1105
          %v1142 = vunpack.c.l.b16 %v1106
          %v1143 = vunpack.c.l.b16 %v1107
          %v1144 = vunpack.c.l.b16 %v1108
          %v1145 = vunpack.c.l.b16 %v1109
          %v1146 = vunpack.c.l.b16 %v1110
          %v1147 = vunpack.c.l.b16 %v1111
          %v1148 = vunpack.c.l.b16 %v1112
          %v1149 = vunpack.c.l.b16 %v1113
          %v1150 = vunpack.c.l.b16 %v1114
          %v1151 = vunpack.c.l.b16 %v1115
          %v1152 = vunpack.c.l.b16 %v1116
          %v1153 = vunpack.c.l.b16 %v1117
          %v1154 = vunpack.c.l.b16 %v1118
          %v1155 = vunpack.c.l.b16 %v1119
          %v1156 = vunpack.c.l.b16 %v1120
          %v1157 = vpack.c.b16 %v1142, %v1141
          %v1158 = vpack.c.b16 %v1144, %v1143
          %v1159 = vpack.c.b16 %v1146, %v1145
          %v1160 = vpack.c.b16 %v1148, %v1147
          %v1161 = vpack.c.b16 %v1150, %v1149
          %v1162 = vpack.c.b16 %v1152, %v1151
          %v1163 = vpack.c.b16 %v1154, %v1153
          %v1164 = vpack.c.b16 %v1156, %v1155
          %1173 = vmatpush.bf16.msra.mxu0 %v1164
          %1174 = vmatpush.bf16.msra.mxu0 %v1163
          %1175 = vmatpush.bf16.msra.mxu0 %v1162
          %1176 = vmatpush.bf16.msra.mxu0 %v1161
          %1177 = vmatpush.bf16.msra.mxu0 %v1160
          %1178 = vmatpush.bf16.msra.mxu0 %v1159
          %1179 = vmatpush.bf16.msra.mxu0 %v1158
          %1180 = vmatpush.bf16.msra.mxu0 %v1157
          %1181 = vmatmul.bf16.gmra.mxu0 %v760
          %v1182 = vpop.f32.mrf.mxu0
          %v1183 = vadd.f32 %v1123, %v1182
          %v1184 = vpop.f32.mrf.mxu0
          %v1185 = vadd.f32 %v1123, %v1184
          %1186 = vdwg.mxu0
          %v1187 = vpack.c.bf16 %v1183, %v1183
          %v1188 = vpack.c.bf16 %v1185, %v1185
          %1191 = vrot.lane.b32.xlu0 %v1187, 96
          %v1192 = vpop.permute.xlu0 %1191
          %1193 = vrot.lane.b32.xlu0 %v1188, 96
          %v1194 = vpop.permute.xlu0 %1193
          %1195 = vrot.lane.b32.xlu0 %v1187, 64
          %v1196 = vpop.permute.xlu0 %1195
          %1197 = vrot.lane.b32.xlu0 %v1188, 64
          %v1198 = vpop.permute.xlu0 %1197
          %1199 = vrot.lane.b32.xlu0 %v1187, 32
          %v1200 = vpop.permute.xlu0 %1199
          %1201 = vrot.lane.b32.xlu0 %v1188, 32
          %v1202 = vpop.permute.xlu0 %1201
          %v1205 = vpack.i.b16 %v1192, %v1187
          %v1206 = vshrl.u32 %v1187, 16
          %v1207 = vshrl.u32 %v1192, 16
          %v1208 = vpack.i.b16 %v1207, %v1206
          %v1211 = vpack.i.b16 %v1200, %v1196
          %v1212 = vshrl.u32 %v1196, 16
          %v1213 = vshrl.u32 %v1200, 16
          %v1214 = vpack.i.b16 %v1213, %v1212
          %v1217 = vpack.i.b16 %v1194, %v1188
          %v1218 = vshrl.u32 %v1188, 16
          %v1219 = vshrl.u32 %v1194, 16
          %v1220 = vpack.i.b16 %v1219, %v1218
          %v1223 = vpack.i.b16 %v1202, %v1198
          %v1224 = vshrl.u32 %v1198, 16
          %v1225 = vshrl.u32 %v1202, 16
          %v1226 = vpack.i.b16 %v1225, %v1224
          %v1229 = vunpack.c.l.s4 1983009808
          %v1230 = vunpack.c.0.s8 %v1229
          %v1231 = vperm.slane %v1205, %v1230
          %v1234 = vunpack.c.l.s4 1983009808
          %v1235 = vunpack.c.0.s8 %v1234
          %v1236 = vperm.slane %v1211, %v1235
          %v1237 = vrot.slane %v1236, 4
          %v1238 = vsel %vm894, %v1237, %v1231
          %v1239 = vrot.slane %v1231, 4
          %v1240 = vsel %vm894, %v1236, %v1239
          %v1242 = vunpack.c.l.s4 1934713408
          %v1243 = vunpack.c.0.s8 %v1242
          %v1244 = vperm.slane %v1238, %v1243
          %v1246 = vunpack.c.l.s4 1934713408
          %v1247 = vunpack.c.0.s8 %v1246
          %v1248 = vperm.slane %v1240, %v1247
          %v1249 = vrot.slane %v1244, 4
          %v1250 = vsel %vm894, 0, %v1249
          %v1251 = vrot.slane %v1248, 4
          %v1252 = vsel %vm894, 0, %v1251
          %v1255 = vunpack.c.l.s4 1983009808
          %v1256 = vunpack.c.0.s8 %v1255
          %v1257 = vperm.slane %v1208, %v1256
          %v1260 = vunpack.c.l.s4 1983009808
          %v1261 = vunpack.c.0.s8 %v1260
          %v1262 = vperm.slane %v1214, %v1261
          %v1263 = vrot.slane %v1262, 4
          %v1264 = vsel %vm894, %v1263, %v1257
          %v1265 = vrot.slane %v1257, 4
          %v1266 = vsel %vm894, %v1262, %v1265
          %v1268 = vunpack.c.l.s4 1934713408
          %v1269 = vunpack.c.0.s8 %v1268
          %v1270 = vperm.slane %v1264, %v1269
          %v1272 = vunpack.c.l.s4 1934713408
          %v1273 = vunpack.c.0.s8 %v1272
          %v1274 = vperm.slane %v1266, %v1273
          %v1275 = vrot.slane %v1270, 4
          %v1276 = vsel %vm894, 0, %v1275
          %v1277 = vrot.slane %v1274, 4
          %v1278 = vsel %vm894, 0, %v1277
          %v1281 = vunpack.c.l.s4 1983009808
          %v1282 = vunpack.c.0.s8 %v1281
          %v1283 = vperm.slane %v1217, %v1282
          %v1286 = vunpack.c.l.s4 1983009808
          %v1287 = vunpack.c.0.s8 %v1286
          %v1288 = vperm.slane %v1223, %v1287
          %v1289 = vrot.slane %v1288, 4
          %v1290 = vsel %vm894, %v1289, %v1283
          %v1291 = vrot.slane %v1283, 4
          %v1292 = vsel %vm894, %v1288, %v1291
          %v1294 = vunpack.c.l.s4 1934713408
          %v1295 = vunpack.c.0.s8 %v1294
          %v1296 = vperm.slane %v1290, %v1295
          %v1298 = vunpack.c.l.s4 1934713408
          %v1299 = vunpack.c.0.s8 %v1298
          %v1300 = vperm.slane %v1292, %v1299
          %v1301 = vrot.slane %v1296, 4
          %v1302 = vsel %vm894, 0, %v1301
          %v1303 = vrot.slane %v1300, 4
          %v1304 = vsel %vm894, 0, %v1303
          %v1307 = vunpack.c.l.s4 1983009808
          %v1308 = vunpack.c.0.s8 %v1307
          %v1309 = vperm.slane %v1220, %v1308
          %v1312 = vunpack.c.l.s4 1983009808
          %v1313 = vunpack.c.0.s8 %v1312
          %v1314 = vperm.slane %v1226, %v1313
          %v1315 = vrot.slane %v1314, 4
          %v1316 = vsel %vm894, %v1315, %v1309
          %v1317 = vrot.slane %v1309, 4
          %v1318 = vsel %vm894, %v1314, %v1317
          %v1320 = vunpack.c.l.s4 1934713408
          %v1321 = vunpack.c.0.s8 %v1320
          %v1322 = vperm.slane %v1316, %v1321
          %v1324 = vunpack.c.l.s4 1934713408
          %v1325 = vunpack.c.0.s8 %v1324
          %v1326 = vperm.slane %v1318, %v1325
          %v1327 = vrot.slane %v1322, 4
          %v1328 = vsel %vm894, 0, %v1327
          %v1329 = vrot.slane %v1326, 4
          %v1330 = vsel %vm894, 0, %v1329
          %v1331 = vsel %vm894, %v1251, %v1244
          %v1333 = vunpack.c.l.s4 1983009808
          %v1334 = vunpack.c.0.s8 %v1333
          %v1335 = vperm.slane %v1331, %v1334
          %v1336 = vrot.slane %v1252, 4
          %v1337 = vsel %vm894, %v1336, %v1250
          %v1339 = vunpack.c.l.s4 1983009808
          %v1340 = vunpack.c.0.s8 %v1339
          %v1341 = vperm.slane %v1337, %v1340
          %v1342 = vrot.slane %v1341, 4
          %v1343 = vsel %vm894, %v1342, %v1335
          %v1345 = vunpack.c.l.s4 1934713408
          %v1346 = vunpack.c.0.s8 %v1345
          %v1347 = vperm.slane %v1343, %v1346
          %v1348 = vrot.slane %v1347, 4
          %v1349 = vsel %vm894, 0, %v1348
          %v1350 = vsel %vm894, %v1277, %v1270
          %v1352 = vunpack.c.l.s4 1983009808
          %v1353 = vunpack.c.0.s8 %v1352
          %v1354 = vperm.slane %v1350, %v1353
          %v1355 = vrot.slane %v1278, 4
          %v1356 = vsel %vm894, %v1355, %v1276
          %v1358 = vunpack.c.l.s4 1983009808
          %v1359 = vunpack.c.0.s8 %v1358
          %v1360 = vperm.slane %v1356, %v1359
          %v1361 = vrot.slane %v1360, 4
          %v1362 = vsel %vm894, %v1361, %v1354
          %v1364 = vunpack.c.l.s4 1934713408
          %v1365 = vunpack.c.0.s8 %v1364
          %v1366 = vperm.slane %v1362, %v1365
          %v1367 = vrot.slane %v1366, 4
          %v1368 = vsel %vm894, 0, %v1367
          %v1369 = vsel %vm894, %v1303, %v1296
          %v1371 = vunpack.c.l.s4 1983009808
          %v1372 = vunpack.c.0.s8 %v1371
          %v1373 = vperm.slane %v1369, %v1372
          %v1374 = vrot.slane %v1304, 4
          %v1375 = vsel %vm894, %v1374, %v1302
          %v1377 = vunpack.c.l.s4 1983009808
          %v1378 = vunpack.c.0.s8 %v1377
          %v1379 = vperm.slane %v1375, %v1378
          %v1380 = vrot.slane %v1379, 4
          %v1381 = vsel %vm894, %v1380, %v1373
          %v1383 = vunpack.c.l.s4 1934713408
          %v1384 = vunpack.c.0.s8 %v1383
          %v1385 = vperm.slane %v1381, %v1384
          %v1386 = vrot.slane %v1385, 4
          %v1387 = vsel %vm894, 0, %v1386
          %v1388 = vsel %vm894, %v1329, %v1322
          %v1390 = vunpack.c.l.s4 1983009808
          %v1391 = vunpack.c.0.s8 %v1390
          %v1392 = vperm.slane %v1388, %v1391
          %v1393 = vrot.slane %v1330, 4
          %v1394 = vsel %vm894, %v1393, %v1328
          %v1396 = vunpack.c.l.s4 1983009808
          %v1397 = vunpack.c.0.s8 %v1396
          %v1398 = vperm.slane %v1394, %v1397
          %v1399 = vrot.slane %v1398, 4
          %v1400 = vsel %vm894, %v1399, %v1392
          %v1402 = vunpack.c.l.s4 1934713408
          %v1403 = vunpack.c.0.s8 %v1402
          %v1404 = vperm.slane %v1400, %v1403
          %v1405 = vrot.slane %v1404, 4
          %v1406 = vsel %vm894, 0, %v1405
          %v1409 = vpack.i.b16 %v1366, %v1347
          %v1411 = vshrl.u32 %v1347, 16
          %v1412 = vshrl.u32 %v1366, 16
          %v1413 = vpack.i.b16 %v1412, %v1411
          %v1417 = vpack.i.b16 %v1368, %v1349
          %v1419 = vshrl.u32 %v1349, 16
          %v1420 = vshrl.u32 %v1368, 16
          %v1421 = vpack.i.b16 %v1420, %v1419
          %v1425 = vpack.i.b16 %v1404, %v1385
          %v1427 = vshrl.u32 %v1385, 16
          %v1428 = vshrl.u32 %v1404, 16
          %v1429 = vpack.i.b16 %v1428, %v1427
          %v1433 = vpack.i.b16 %v1406, %v1387
          %v1435 = vshrl.u32 %v1387, 16
          %v1436 = vshrl.u32 %v1406, 16
          %v1437 = vpack.i.b16 %v1436, %v1435
          %1439 = vst.msk [vmem:[#allocation3] sm:$0xf] %vm1096, %v1409
          %1440 = vst.msk [vmem:[#allocation3 + $0x4] sm:$0xf] %vm1096, %v1425
          %1441 = vst.msk [vmem:[#allocation3 + $0x8] sm:$0xf] %vm1096, %v1413
          %1442 = vst.msk [vmem:[#allocation3 + $0xc] sm:$0xf] %vm1096, %v1429
          %1443 = vst.msk [vmem:[#allocation3 + $0x10] sm:$0xf] %vm1096, %v1417
          %1444 = vst.msk [vmem:[#allocation3 + $0x14] sm:$0xf] %vm1096, %v1433
          %1445 = vst.msk [vmem:[#allocation3 + $0x18] sm:$0xf] %vm1096, %v1421
          %1446 = vst.msk [vmem:[#allocation3 + $0x1c] sm:$0xf] %vm1096, %v1437
        $region128: #{tpu_custom_call.1} parent=87 // pred_fallthru
          _
        %s1447 = smul.u32 %s41, 8
        %s1448 = scalar_lea.vmem [#allocation5], %s1447
        %v1449 = vld [vmem:[%s1448] sm:$0xff]
        %v1450 = vld [vmem:[#allocation8] sm:$0x1]
        %v1451 = vld [vmem:[%s2] sm:$0x1]
        %1452 = vadd.xlane.f32.xlu0 %v1449
        %v1453 = vpop.xlane.xlu0 %1452
        %v1454 = vrcp.pop 128.0
        %v1455 = vmul.f32 128.0, %v1454
        %v1456 = vsub.f32 1.0, %v1455
        %v1457 = vmul.f32 %v1454, %v1456
        %v1458 = vadd.f32 %v1454, %v1457
        %vm1459 = vweird.f32 %v1454
        %v1460 = vsel %vm1459, %v1454, %v1458
        %v1461 = vmul.f32 %v1453, %v1460
        %v1462 = vsub.f32 %v1449, %v1461
        %v1463 = vmul.f32 %v1462, %v1462
        %1464 = vadd.xlane.f32.xlu0 %v1463
        %v1465 = vpop.xlane.xlu0 %1464
        %v1466 = vmul.f32 %v1465, %v1460
        %v1467 = vadd.f32 %v1466, 1e-06
        %v1468 = vrsqrt.pop %v1467
        %v1469 = vmul.f32 %v1468, %v1467
        %v1470 = vmul.f32 %v1469, %v1468
        %v1471 = vmul.f32 0.5, %v1470
        %v1472 = vsub.f32 1.5, %v1471
        %v1473 = vmul.f32 %v1468, %v1472
        %vm1474 = vweird.f32 %v1467
        %vm1475 = vweird.f32 %v1468
        %vm1476 = vmor %vm1474, %vm1475
        %v1477 = vsel %vm1476, %v1468, %v1473
        %v1478 = vmul.f32 %v1462, %v1477
        %v1480 = vperm.slane %v1450, 0
        %v1482 = vmul.f32 %v1478, %v1480
        %v1484 = vperm.slane %v1451, 0
        %v1486 = vadd.f32 %v1482, %v1484
        %v1487 = vpack.c.bf16 %v1486, %v1486
        %v1488 = vld [vmem:[#allocation10] sm:$0xf]
        %v1489 = vld [vmem:[#allocation10 + $0x4] sm:$0xf]
        %v1490 = vld [vmem:[#allocation10 + $0x8] sm:$0xf]
        %v1491 = vld [vmem:[#allocation10 + $0xc] sm:$0xf]
        %v1492 = vld [vmem:[#allocation10 + $0x10] sm:$0xf]
        %v1493 = vld [vmem:[#allocation10 + $0x14] sm:$0xf]
        %v1494 = vld [vmem:[#allocation10 + $0x18] sm:$0xf]
        %v1495 = vld [vmem:[#allocation10 + $0x1c] sm:$0xf]
        %v1496 = vld [vmem:[#allocation10 + $0x20] sm:$0xf]
        %v1497 = vld [vmem:[#allocation10 + $0x24] sm:$0xf]
        %v1498 = vld [vmem:[#allocation10 + $0x28] sm:$0xf]
        %v1499 = vld [vmem:[#allocation10 + $0x2c] sm:$0xf]
        %v1500 = vld [vmem:[#allocation10 + $0x30] sm:$0xf]
        %v1501 = vld [vmem:[#allocation10 + $0x34] sm:$0xf]
        %v1502 = vld [vmem:[#allocation10 + $0x38] sm:$0xf]
        %v1503 = vld [vmem:[#allocation10 + $0x3c] sm:$0xf]
        %v1504 = vld [vmem:[#allocation11] sm:$0x1]
        %v1506 = vperm.slane %v1504, 0
        %v1524 = vunpack.c.l.b16 %v1488
        %v1525 = vunpack.c.l.b16 %v1489
        %v1526 = vunpack.c.l.b16 %v1490
        %v1527 = vunpack.c.l.b16 %v1491
        %v1528 = vunpack.c.l.b16 %v1492
        %v1529 = vunpack.c.l.b16 %v1493
        %v1530 = vunpack.c.l.b16 %v1494
        %v1531 = vunpack.c.l.b16 %v1495
        %v1532 = vunpack.c.l.b16 %v1496
        %v1533 = vunpack.c.l.b16 %v1497
        %v1534 = vunpack.c.l.b16 %v1498
        %v1535 = vunpack.c.l.b16 %v1499
        %v1536 = vunpack.c.l.b16 %v1500
        %v1537 = vunpack.c.l.b16 %v1501
        %v1538 = vunpack.c.l.b16 %v1502
        %v1539 = vunpack.c.l.b16 %v1503
        %v1540 = vpack.c.b16 %v1525, %v1524
        %v1541 = vpack.c.b16 %v1527, %v1526
        %v1542 = vpack.c.b16 %v1529, %v1528
        %v1543 = vpack.c.b16 %v1531, %v1530
        %v1544 = vpack.c.b16 %v1533, %v1532
        %v1545 = vpack.c.b16 %v1535, %v1534
        %v1546 = vpack.c.b16 %v1537, %v1536
        %v1547 = vpack.c.b16 %v1539, %v1538
        %1556 = vmatpush.bf16.msra.mxu0 %v1547
        %1557 = vmatpush.bf16.msra.mxu0 %v1546
        %1558 = vmatpush.bf16.msra.mxu0 %v1545
        %1559 = vmatpush.bf16.msra.mxu0 %v1544
        %1560 = vmatpush.bf16.msra.mxu0 %v1543
        %1561 = vmatpush.bf16.msra.mxu0 %v1542
        %1562 = vmatpush.bf16.msra.mxu0 %v1541
        %1563 = vmatpush.bf16.msra.mxu0 %v1540
        %1564 = vmatmul.bf16.gmra.mxu0 %v1487
        %v1565 = vpop.f32.mrf.mxu0
        %v1566 = vadd.f32 %v1506, %v1565
        %v1567 = vpop.f32.mrf.mxu0
        %1568 = vdwg.mxu0
        %v1569 = vmul.f32 %v1566, 0.17677669
        %1571 = vrot.lane.b32.xlu0 %v1569, 96
        %v1572 = vpop.permute.xlu0 %1571
        %1574 = vrot.lane.b32.xlu0 %v1569, 64
        %v1575 = vpop.permute.xlu0 %1574
        %1577 = vrot.lane.b32.xlu0 %v1569, 32
        %v1578 = vpop.permute.xlu0 %1577
        %v1580 = vrot.slane %v1575, 4
        %vm1581 = vcmask 1047556
        %v1582 = vsel %vm1581, %v1580, %v1569
        %v1583 = vrot.slane %v1569, 4
        %v1584 = vsel %vm1581, %v1575, %v1583
        %v1586 = vunpack.c.l.s4 1983009808
        %v1587 = vunpack.c.0.s8 %v1586
        %v1588 = vperm.slane %v1582, %v1587
        %v1590 = vunpack.c.l.s4 1983009808
        %v1591 = vunpack.c.0.s8 %v1590
        %v1592 = vperm.slane %v1584, %v1591
        %v1593 = vrot.slane %v1578, 4
        %v1594 = vsel %vm1581, %v1593, %v1572
        %v1595 = vrot.slane %v1572, 4
        %v1596 = vsel %vm1581, %v1578, %v1595
        %v1598 = vunpack.c.l.s4 1983009808
        %v1599 = vunpack.c.0.s8 %v1598
        %v1600 = vperm.slane %v1594, %v1599
        %v1602 = vunpack.c.l.s4 1983009808
        %v1603 = vunpack.c.0.s8 %v1602
        %v1604 = vperm.slane %v1596, %v1603
        %v1605 = vrot.slane %v1600, 4
        %v1606 = vsel %vm1581, %v1605, %v1588
        %v1607 = vrot.slane %v1588, 4
        %v1608 = vsel %vm1581, %v1600, %v1607
        %v1610 = vunpack.c.l.s4 1934713408
        %v1611 = vunpack.c.0.s8 %v1610
        %v1612 = vperm.slane %v1606, %v1611
        %v1614 = vunpack.c.l.s4 1934713408
        %v1615 = vunpack.c.0.s8 %v1614
        %v1616 = vperm.slane %v1608, %v1615
        %v1617 = vrot.slane %v1604, 4
        %v1618 = vsel %vm1581, %v1617, %v1592
        %v1619 = vrot.slane %v1592, 4
        %v1620 = vsel %vm1581, %v1604, %v1619
        %v1622 = vunpack.c.l.s4 1934713408
        %v1623 = vunpack.c.0.s8 %v1622
        %v1624 = vperm.slane %v1618, %v1623
        %v1626 = vunpack.c.l.s4 1934713408
        %v1627 = vunpack.c.0.s8 %v1626
        %v1628 = vperm.slane %v1620, %v1627
        %v1629 = vrot.slane %v1612, 4
        %v1630 = vsel %vm1581, 0.0, %v1629
        %v1631 = vrot.slane %v1616, 4
        %v1632 = vsel %vm1581, 0.0, %v1631
        %v1633 = vrot.slane %v1624, 4
        %v1634 = vsel %vm1581, 0.0, %v1633
        %v1635 = vrot.slane %v1628, 4
        %v1636 = vsel %vm1581, 0.0, %v1635
        %v1637 = vsel %vm1581, %v1631, %v1612
        %v1639 = vunpack.c.l.s4 1983009808
        %v1640 = vunpack.c.0.s8 %v1639
        %v1641 = vperm.slane %v1637, %v1640
        %v1642 = vrot.slane %v1632, 4
        %v1643 = vsel %vm1581, %v1642, %v1630
        %v1645 = vunpack.c.l.s4 1983009808
        %v1646 = vunpack.c.0.s8 %v1645
        %v1647 = vperm.slane %v1643, %v1646
        %v1648 = vsel %vm1581, %v1635, %v1624
        %v1650 = vunpack.c.l.s4 1983009808
        %v1651 = vunpack.c.0.s8 %v1650
        %v1652 = vperm.slane %v1648, %v1651
        %v1653 = vrot.slane %v1636, 4
        %v1654 = vsel %vm1581, %v1653, %v1634
        %v1656 = vunpack.c.l.s4 1983009808
        %v1657 = vunpack.c.0.s8 %v1656
        %v1658 = vperm.slane %v1654, %v1657
        %v1659 = vrot.slane %v1647, 4
        %v1660 = vsel %vm1581, %v1659, %v1641
        %v1661 = vrot.slane %v1641, 4
        %v1662 = vsel %vm1581, %v1647, %v1661
        %v1664 = vunpack.c.l.s4 1934713408
        %v1665 = vunpack.c.0.s8 %v1664
        %v1666 = vperm.slane %v1660, %v1665
        %v1668 = vunpack.c.l.s4 1934713408
        %v1669 = vunpack.c.0.s8 %v1668
        %v1670 = vperm.slane %v1662, %v1669
        %v1671 = vrot.slane %v1658, 4
        %v1672 = vsel %vm1581, %v1671, %v1652
        %v1673 = vrot.slane %v1652, 4
        %v1674 = vsel %vm1581, %v1658, %v1673
        %v1676 = vunpack.c.l.s4 1934713408
        %v1677 = vunpack.c.0.s8 %v1676
        %v1678 = vperm.slane %v1672, %v1677
        %v1680 = vunpack.c.l.s4 1934713408
        %v1681 = vunpack.c.0.s8 %v1680
        %v1682 = vperm.slane %v1674, %v1681
        %v1683 = vrot.slane %v1678, 4
        %v1684 = vsel %vm1581, %v1683, %v1666
        %v1685 = vrot.slane %v1666, 4
        %v1686 = vsel %vm1581, %v1678, %v1685
        %v1687 = vrot.slane %v1682, 4
        %v1688 = vsel %vm1581, %v1687, %v1670
        %v1689 = vrot.slane %v1670, 4
        %v1690 = vsel %vm1581, %v1682, %v1689
        %v1691 = vpack.c.bf16 %v1684, %v1684
        %v1692 = vpack.c.bf16 %v1686, %v1686
        %v1693 = vpack.c.bf16 %v1688, %v1688
        %v1694 = vpack.c.bf16 %v1690, %v1690
        %vm1695 = vcmask 257024
        %1696 = vst.msk [vmem:[#allocation4] sm:$0xf] %vm1695, %v1691
        %1697 = vst.msk [vmem:[#allocation4 + $0x4] sm:$0xf] %vm1695, %v1692
        %1698 = vst.msk [vmem:[#allocation4 + $0x8] sm:$0xf] %vm1695, %v1693
        %1699 = vst.msk [vmem:[#allocation4 + $0xc] sm:$0xf] %vm1695, %v1694
        %v1700 = vld [vmem:[#allocation4] sm:$0xf]
        %v1701 = vld [vmem:[#allocation4 + $0x4] sm:$0xf]
        %v1702 = vld [vmem:[#allocation4 + $0x8] sm:$0xf]
        %v1703 = vld [vmem:[#allocation4 + $0xc] sm:$0xf]
        %v1704 = vld [vmem:[#allocation2] sm:$0xf]
        %v1705 = vld [vmem:[#allocation2 + $0x4] sm:$0xf]
        %v1706 = vld [vmem:[#allocation2 + $0x8] sm:$0xf]
        %v1707 = vld [vmem:[#allocation2 + $0xc] sm:$0xf]
        %v1708 = vld [vmem:[#allocation2 + $0x10] sm:$0xf]
        %v1709 = vld [vmem:[#allocation2 + $0x14] sm:$0xf]
        %v1710 = vld [vmem:[#allocation2 + $0x18] sm:$0xf]
        %v1711 = vld [vmem:[#allocation2 + $0x1c] sm:$0xf]
        %v1712 = vld [vmem:[#allocation3] sm:$0xf]
        %v1713 = vld [vmem:[#allocation3 + $0x4] sm:$0xf]
        %v1714 = vld [vmem:[#allocation3 + $0x8] sm:$0xf]
        %v1715 = vld [vmem:[#allocation3 + $0xc] sm:$0xf]
        %v1716 = vld [vmem:[#allocation3 + $0x10] sm:$0xf]
        %v1717 = vld [vmem:[#allocation3 + $0x14] sm:$0xf]
        %v1718 = vld [vmem:[#allocation3 + $0x18] sm:$0xf]
        %v1719 = vld [vmem:[#allocation3 + $0x1c] sm:$0xf]
        %v1722 = vunpack.c.l.b16 %v1704
        %v1723 = vunpack.c.l.b16 %v1705
        %v1724 = vpack.c.b16 %v1723, %v1722
        %vm1725 = vcmask 261120
        %v1727 = vsel %vm1725, %v1700, 0
        %v1730 = vsel %vm1725, %v1724, 0
        %1732 = vmatpush.bf16.xpose.msra.mxu0 0
        %1733 = vmatpush.bf16.xpose.msra.mxu0 0
        %1734 = vmatpush.bf16.xpose.msra.mxu0 0
        %1735 = vmatpush.bf16.xpose.msra.mxu0 0
        %1736 = vmatpush.bf16.xpose.msra.mxu0 0
        %1737 = vmatpush.bf16.xpose.msra.mxu0 0
        %1738 = vmatpush.bf16.xpose.msra.mxu0 0
        %1739 = vmatpush.bf16.xpose.msra.mxu0 %v1730
        %1740 = vmatmul.bf16.gmra.mxu0 %v1727
        %v1741 = vpop.f32.mrf.mxu0
        %v1742 = vadd.f32 0.0, %v1741
        %v1743 = vpop.f32.mrf.mxu0
        %1744 = vdwg.mxu0
        %v1747 = vunpack.c.l.b16 %v1706
        %v1748 = vunpack.c.l.b16 %v1707
        %v1749 = vpack.c.b16 %v1748, %v1747
        %v1751 = vsel %vm1725, %v1701, 0
        %v1754 = vsel %vm1725, %v1749, 0
        %1756 = vmatpush.bf16.xpose.msra.mxu0 0
        %1757 = vmatpush.bf16.xpose.msra.mxu0 0
        %1758 = vmatpush.bf16.xpose.msra.mxu0 0
        %1759 = vmatpush.bf16.xpose.msra.mxu0 0
        %1760 = vmatpush.bf16.xpose.msra.mxu0 0
        %1761 = vmatpush.bf16.xpose.msra.mxu0 0
        %1762 = vmatpush.bf16.xpose.msra.mxu0 0
        %1763 = vmatpush.bf16.xpose.msra.mxu0 %v1754
        %1764 = vmatmul.bf16.gmra.mxu0 %v1751
        %v1765 = vpop.f32.mrf.mxu0
        %v1766 = vadd.f32 0.0, %v1765
        %v1767 = vpop.f32.mrf.mxu0
        %1768 = vdwg.mxu0
        %v1771 = vunpack.c.l.b16 %v1708
        %v1772 = vunpack.c.l.b16 %v1709
        %v1773 = vpack.c.b16 %v1772, %v1771
        %v1775 = vsel %vm1725, %v1702, 0
        %v1778 = vsel %vm1725, %v1773, 0
        %1780 = vmatpush.bf16.xpose.msra.mxu0 0
        %1781 = vmatpush.bf16.xpose.msra.mxu0 0
        %1782 = vmatpush.bf16.xpose.msra.mxu0 0
        %1783 = vmatpush.bf16.xpose.msra.mxu0 0
        %1784 = vmatpush.bf16.xpose.msra.mxu0 0
        %1785 = vmatpush.bf16.xpose.msra.mxu0 0
        %1786 = vmatpush.bf16.xpose.msra.mxu0 0
        %1787 = vmatpush.bf16.xpose.msra.mxu0 %v1778
        %1788 = vmatmul.bf16.gmra.mxu0 %v1775
        %v1789 = vpop.f32.mrf.mxu0
        %v1790 = vadd.f32 0.0, %v1789
        %v1791 = vpop.f32.mrf.mxu0
        %1792 = vdwg.mxu0
        %v1795 = vunpack.c.l.b16 %v1710
        %v1796 = vunpack.c.l.b16 %v1711
        %v1797 = vpack.c.b16 %v1796, %v1795
        %v1799 = vsel %vm1725, %v1703, 0
        %v1802 = vsel %vm1725, %v1797, 0
        %1804 = vmatpush.bf16.xpose.msra.mxu0 0
        %1805 = vmatpush.bf16.xpose.msra.mxu0 0
        %1806 = vmatpush.bf16.xpose.msra.mxu0 0
        %1807 = vmatpush.bf16.xpose.msra.mxu0 0
        %1808 = vmatpush.bf16.xpose.msra.mxu0 0
        %1809 = vmatpush.bf16.xpose.msra.mxu0 0
        %1810 = vmatpush.bf16.xpose.msra.mxu0 0
        %1811 = vmatpush.bf16.xpose.msra.mxu0 %v1802
        %1812 = vmatmul.bf16.gmra.mxu0 %v1799
        %v1813 = vpop.f32.mrf.mxu0
        %v1814 = vadd.f32 0.0, %v1813
        %v1815 = vpop.f32.mrf.mxu0
        %1816 = vdwg.mxu0
        %vm1817 = vcmask 130048
        %v1818 = vsel %vm1817, %v1742, -inf
        %1819 = vmax.xlane.f32.xlu0 %v1818
        %v1820 = vpop.xlane.xlu0 %1819
        %v1821 = vsel %vm1817, %v1766, -inf
        %1822 = vmax.xlane.f32.xlu0 %v1821
        %v1823 = vpop.xlane.xlu0 %1822
        %v1824 = vsel %vm1817, %v1790, -inf
        %1825 = vmax.xlane.f32.xlu0 %v1824
        %v1826 = vpop.xlane.xlu0 %1825
        %v1827 = vsel %vm1817, %v1814, -inf
        %1828 = vmax.xlane.f32.xlu0 %v1827
        %v1829 = vpop.xlane.xlu0 %1828
        %v1830 = vsub.f32 %v1742, %v1820
        %v1831 = vsub.f32 %v1766, %v1823
        %v1832 = vsub.f32 %v1790, %v1826
        %v1833 = vsub.f32 %v1814, %v1829
        %v1834 = vmul.f32 %v1830, 1.442695
        %v1835 = vpow.pop %v1834
        %v1836 = vmul.f32 %v1831, 1.442695
        %v1837 = vpow.pop %v1836
        %v1838 = vmul.f32 %v1832, 1.442695
        %v1839 = vpow.pop %v1838
        %v1840 = vmul.f32 %v1833, 1.442695
        %v1841 = vpow.pop %v1840
        %v1842 = vsel %vm1817, %v1835, 0.0
        %1843 = vadd.xlane.f32.xlu0 %v1842
        %v1844 = vpop.xlane.xlu0 %1843
        %v1845 = vsel %vm1817, %v1837, 0.0
        %1846 = vadd.xlane.f32.xlu0 %v1845
        %v1847 = vpop.xlane.xlu0 %1846
        %v1848 = vsel %vm1817, %v1839, 0.0
        %1849 = vadd.xlane.f32.xlu0 %v1848
        %v1850 = vpop.xlane.xlu0 %1849
        %v1851 = vsel %vm1817, %v1841, 0.0
        %1852 = vadd.xlane.f32.xlu0 %v1851
        %v1853 = vpop.xlane.xlu0 %1852
        %v1854 = vrcp.pop %v1844
        %v1855 = vrcp.pop %v1847
        %v1856 = vrcp.pop %v1850
        %v1857 = vrcp.pop %v1853
        %v1858 = vmul.f32 %v1835, %v1854
        %v1859 = vmul.f32 %v1837, %v1855
        %v1860 = vmul.f32 %v1839, %v1856
        %v1861 = vmul.f32 %v1841, %v1857
        %v1862 = vpack.c.bf16 %v1858, %v1858
        %v1863 = vpack.c.bf16 %v1859, %v1859
        %v1864 = vpack.c.bf16 %v1860, %v1860
        %v1865 = vpack.c.bf16 %v1861, %v1861
        %v1868 = vunpack.c.l.b16 %v1712
        %v1869 = vunpack.c.l.b16 %v1713
        %v1870 = vpack.c.b16 %v1869, %v1868
        %v1873 = vsel %vm1817, %v1862, 0
        %1875 = vmatpush.bf16.msra.mxu0 0
        %1876 = vmatpush.bf16.msra.mxu0 0
        %1877 = vmatpush.bf16.msra.mxu0 0
        %1878 = vmatpush.bf16.msra.mxu0 0
        %1879 = vmatpush.bf16.msra.mxu0 0
        %1880 = vmatpush.bf16.msra.mxu0 0
        %1881 = vmatpush.bf16.msra.mxu0 0
        %1882 = vmatpush.bf16.msra.mxu0 %v1870
        %1883 = vmatmul.bf16.gmra.mxu0 %v1873
        %v1884 = vpop.f32.mrf.mxu0
        %v1885 = vadd.f32 0.0, %v1884
        %v1886 = vpop.f32.mrf.mxu0
        %1887 = vdwg.mxu0
        %v1890 = vunpack.c.l.b16 %v1714
        %v1891 = vunpack.c.l.b16 %v1715
        %v1892 = vpack.c.b16 %v1891, %v1890
        %v1895 = vsel %vm1817, %v1863, 0
        %1897 = vmatpush.bf16.msra.mxu0 0
        %1898 = vmatpush.bf16.msra.mxu0 0
        %1899 = vmatpush.bf16.msra.mxu0 0
        %1900 = vmatpush.bf16.msra.mxu0 0
        %1901 = vmatpush.bf16.msra.mxu0 0
        %1902 = vmatpush.bf16.msra.mxu0 0
        %1903 = vmatpush.bf16.msra.mxu0 0
        %1904 = vmatpush.bf16.msra.mxu0 %v1892
        %1905 = vmatmul.bf16.gmra.mxu0 %v1895
        %v1906 = vpop.f32.mrf.mxu0
        %v1907 = vadd.f32 0.0, %v1906
        %v1908 = vpop.f32.mrf.mxu0
        %1909 = vdwg.mxu0
        %v1912 = vunpack.c.l.b16 %v1716
        %v1913 = vunpack.c.l.b16 %v1717
        %v1914 = vpack.c.b16 %v1913, %v1912
        %v1917 = vsel %vm1817, %v1864, 0
        %1919 = vmatpush.bf16.msra.mxu0 0
        %1920 = vmatpush.bf16.msra.mxu0 0
        %1921 = vmatpush.bf16.msra.mxu0 0
        %1922 = vmatpush.bf16.msra.mxu0 0
        %1923 = vmatpush.bf16.msra.mxu0 0
        %1924 = vmatpush.bf16.msra.mxu0 0
        %1925 = vmatpush.bf16.msra.mxu0 0
        %1926 = vmatpush.bf16.msra.mxu0 %v1914
        %1927 = vmatmul.bf16.gmra.mxu0 %v1917
        %v1928 = vpop.f32.mrf.mxu0
        %v1929 = vadd.f32 0.0, %v1928
        %v1930 = vpop.f32.mrf.mxu0
        %1931 = vdwg.mxu0
        %v1934 = vunpack.c.l.b16 %v1718
        %v1935 = vunpack.c.l.b16 %v1719
        %v1936 = vpack.c.b16 %v1935, %v1934
        %v1939 = vsel %vm1817, %v1865, 0
        %1941 = vmatpush.bf16.msra.mxu0 0
        %1942 = vmatpush.bf16.msra.mxu0 0
        %1943 = vmatpush.bf16.msra.mxu0 0
        %1944 = vmatpush.bf16.msra.mxu0 0
        %1945 = vmatpush.bf16.msra.mxu0 0
        %1946 = vmatpush.bf16.msra.mxu0 0
        %1947 = vmatpush.bf16.msra.mxu0 0
        %1948 = vmatpush.bf16.msra.mxu0 %v1936
        %1949 = vmatmul.bf16.gmra.mxu0 %v1939
        %v1950 = vpop.f32.mrf.mxu0
        %v1951 = vadd.f32 0.0, %v1950
        %v1952 = vpop.f32.mrf.mxu0
        %1953 = vdwg.mxu0
        %v1954 = vpack.c.bf16 %v1885, %v1885
        %v1955 = vpack.c.bf16 %v1907, %v1907
        %v1956 = vpack.c.bf16 %v1929, %v1929
        %v1957 = vpack.c.bf16 %v1951, %v1951
        %v1960 = vpack.i.b16 %v1955, %v1954
        %v1961 = vshrl.u32 %v1954, 16
        %v1962 = vshrl.u32 %v1955, 16
        %v1963 = vpack.i.b16 %v1962, %v1961
        %v1966 = vpack.i.b16 %v1957, %v1956
        %v1967 = vshrl.u32 %v1956, 16
        %v1968 = vshrl.u32 %v1957, 16
        %v1969 = vpack.i.b16 %v1968, %v1967
        %v1972 = vunpack.c.l.s4 1983009808
        %v1973 = vunpack.c.0.s8 %v1972
        %v1974 = vperm.slane %v1960, %v1973
        %v1977 = vunpack.c.l.s4 1983009808
        %v1978 = vunpack.c.0.s8 %v1977
        %v1979 = vperm.slane %v1966, %v1978
        %v1980 = vrot.slane %v1979, 4
        %vm1981 = vcmask 1047556
        %v1982 = vsel %vm1981, %v1980, %v1974
        %v1983 = vrot.slane %v1974, 4
        %v1984 = vsel %vm1981, %v1979, %v1983
        %v1986 = vunpack.c.l.s4 1934713408
        %v1987 = vunpack.c.0.s8 %v1986
        %v1988 = vperm.slane %v1982, %v1987
        %v1990 = vunpack.c.l.s4 1934713408
        %v1991 = vunpack.c.0.s8 %v1990
        %v1992 = vperm.slane %v1984, %v1991
        %v1993 = vrot.slane %v1988, 4
        %v1994 = vsel %vm1981, 0, %v1993
        %v1995 = vrot.slane %v1992, 4
        %v1996 = vsel %vm1981, 0, %v1995
        %v1999 = vunpack.c.l.s4 1983009808
        %v2000 = vunpack.c.0.s8 %v1999
        %v2001 = vperm.slane %v1963, %v2000
        %v2004 = vunpack.c.l.s4 1983009808
        %v2005 = vunpack.c.0.s8 %v2004
        %v2006 = vperm.slane %v1969, %v2005
        %v2007 = vrot.slane %v2006, 4
        %v2008 = vsel %vm1981, %v2007, %v2001
        %v2009 = vrot.slane %v2001, 4
        %v2010 = vsel %vm1981, %v2006, %v2009
        %v2012 = vunpack.c.l.s4 1934713408
        %v2013 = vunpack.c.0.s8 %v2012
        %v2014 = vperm.slane %v2008, %v2013
        %v2016 = vunpack.c.l.s4 1934713408
        %v2017 = vunpack.c.0.s8 %v2016
        %v2018 = vperm.slane %v2010, %v2017
        %v2019 = vrot.slane %v2014, 4
        %v2020 = vsel %vm1981, 0, %v2019
        %v2021 = vrot.slane %v2018, 4
        %v2022 = vsel %vm1981, 0, %v2021
        %v2023 = vsel %vm1981, %v1995, %v1988
        %v2025 = vunpack.c.l.s4 1983009808
        %v2026 = vunpack.c.0.s8 %v2025
        %v2027 = vperm.slane %v2023, %v2026
        %v2028 = vrot.slane %v1996, 4
        %v2029 = vsel %vm1981, %v2028, %v1994
        %v2031 = vunpack.c.l.s4 1983009808
        %v2032 = vunpack.c.0.s8 %v2031
        %v2033 = vperm.slane %v2029, %v2032
        %v2034 = vrot.slane %v2033, 4
        %v2035 = vsel %vm1981, %v2034, %v2027
        %v2037 = vunpack.c.l.s4 1934713408
        %v2038 = vunpack.c.0.s8 %v2037
        %v2039 = vperm.slane %v2035, %v2038
        %v2040 = vrot.slane %v2039, 4
        %v2041 = vsel %vm1981, 0, %v2040
        %v2042 = vsel %vm1981, %v2021, %v2014
        %v2044 = vunpack.c.l.s4 1983009808
        %v2045 = vunpack.c.0.s8 %v2044
        %v2046 = vperm.slane %v2042, %v2045
        %v2047 = vrot.slane %v2022, 4
        %v2048 = vsel %vm1981, %v2047, %v2020
        %v2050 = vunpack.c.l.s4 1983009808
        %v2051 = vunpack.c.0.s8 %v2050
        %v2052 = vperm.slane %v2048, %v2051
        %v2053 = vrot.slane %v2052, 4
        %v2054 = vsel %vm1981, %v2053, %v2046
        %v2056 = vunpack.c.l.s4 1934713408
        %v2057 = vunpack.c.0.s8 %v2056
        %v2058 = vperm.slane %v2054, %v2057
        %v2059 = vrot.slane %v2058, 4
        %v2060 = vsel %vm1981, 0, %v2059
        %v2063 = vpack.i.b16 %v2058, %v2039
        %v2064 = vshrl.u32 %v2039, 16
        %v2065 = vshrl.u32 %v2058, 16
        %v2066 = vpack.i.b16 %v2065, %v2064
        %v2069 = vpack.i.b16 %v2060, %v2041
        %v2070 = vshrl.u32 %v2041, 16
        %v2071 = vshrl.u32 %v2060, 16
        %v2072 = vpack.i.b16 %v2071, %v2070
        %v2073 = vunpack.c.l.b16 %v2066
        %v2074 = vpack.c.b16 %v2073, %v2073
        %2075 = vrot.lane.b32.xlu0 %v2074, 32
        %v2076 = vpop.permute.xlu0 %2075
        %v2077 = vunpack.c.l.b16 %v2069
        %v2078 = vpack.c.b16 %v2077, %v2077
        %2079 = vrot.lane.b32.xlu0 %v2078, 64
        %v2080 = vpop.permute.xlu0 %2079
        %v2081 = vunpack.c.l.b16 %v2072
        %v2082 = vpack.c.b16 %v2081, %v2081
        %2083 = vrot.lane.b32.xlu0 %v2082, 96
        %v2084 = vpop.permute.xlu0 %2083
        %v2087 = vsel %vm1725, %v2063, %v2076
        %vm2088 = vcmask 523264
        %v2090 = vsel %vm2088, %v2087, %v2080
        %vm2091 = vcmask 785408
        %v2093 = vsel %vm2091, %v2090, %v2084
        %v2095 = vld [vmem:[#allocation16] sm:$0xf]
        %v2096 = vld [vmem:[#allocation16 + $0x4] sm:$0xf]
        %v2097 = vld [vmem:[#allocation16 + $0x8] sm:$0xf]
        %v2098 = vld [vmem:[#allocation16 + $0xc] sm:$0xf]
        %v2099 = vld [vmem:[#allocation16 + $0x10] sm:$0xf]
        %v2100 = vld [vmem:[#allocation16 + $0x14] sm:$0xf]
        %v2101 = vld [vmem:[#allocation16 + $0x18] sm:$0xf]
        %v2102 = vld [vmem:[#allocation16 + $0x1c] sm:$0xf]
        %v2103 = vld [vmem:[#allocation16 + $0x20] sm:$0xf]
        %v2104 = vld [vmem:[#allocation16 + $0x24] sm:$0xf]
        %v2105 = vld [vmem:[#allocation16 + $0x28] sm:$0xf]
        %v2106 = vld [vmem:[#allocation16 + $0x2c] sm:$0xf]
        %v2107 = vld [vmem:[#allocation16 + $0x30] sm:$0xf]
        %v2108 = vld [vmem:[#allocation16 + $0x34] sm:$0xf]
        %v2109 = vld [vmem:[#allocation16 + $0x38] sm:$0xf]
        %v2110 = vld [vmem:[#allocation16 + $0x3c] sm:$0xf]
        %v2127 = vunpack.c.l.b16 %v2095
        %v2128 = vunpack.c.l.b16 %v2096
        %v2129 = vunpack.c.l.b16 %v2097
        %v2130 = vunpack.c.l.b16 %v2098
        %v2131 = vunpack.c.l.b16 %v2099
        %v2132 = vunpack.c.l.b16 %v2100
        %v2133 = vunpack.c.l.b16 %v2101
        %v2134 = vunpack.c.l.b16 %v2102
        %v2135 = vunpack.c.l.b16 %v2103
        %v2136 = vunpack.c.l.b16 %v2104
        %v2137 = vunpack.c.l.b16 %v2105
        %v2138 = vunpack.c.l.b16 %v2106
        %v2139 = vunpack.c.l.b16 %v2107
        %v2140 = vunpack.c.l.b16 %v2108
        %v2141 = vunpack.c.l.b16 %v2109
        %v2142 = vunpack.c.l.b16 %v2110
        %v2143 = vpack.c.b16 %v2128, %v2127
        %v2144 = vpack.c.b16 %v2130, %v2129
        %v2145 = vpack.c.b16 %v2132, %v2131
        %v2146 = vpack.c.b16 %v2134, %v2133
        %v2147 = vpack.c.b16 %v2136, %v2135
        %v2148 = vpack.c.b16 %v2138, %v2137
        %v2149 = vpack.c.b16 %v2140, %v2139
        %v2150 = vpack.c.b16 %v2142, %v2141
        %2159 = vmatpush.bf16.msra.mxu0 %v2150
        %2160 = vmatpush.bf16.msra.mxu0 %v2149
        %2161 = vmatpush.bf16.msra.mxu0 %v2148
        %2162 = vmatpush.bf16.msra.mxu0 %v2147
        %2163 = vmatpush.bf16.msra.mxu0 %v2146
        %2164 = vmatpush.bf16.msra.mxu0 %v2145
        %2165 = vmatpush.bf16.msra.mxu0 %v2144
        %2166 = vmatpush.bf16.msra.mxu0 %v2143
        %2167 = vmatmul.bf16.gmra.mxu0 %v2093
        %v2168 = vpop.f32.mrf.mxu0
        %v2169 = vadd.f32 0.0, %v2168
        %v2170 = vpop.f32.mrf.mxu0
        %2171 = vdwg.mxu0
        %v2172 = vadd.f32 %v1449, %v2169
        %v2173 = vld [vmem:[%s10] sm:$0x1]
        %v2175 = vperm.slane %v2173, 0
        %v2177 = vadd.f32 %v2172, %v2175
        %v2178 = vld [vmem:[%s11] sm:$0x1]
        %v2179 = vld [vmem:[%s12] sm:$0x1]
        %2180 = vadd.xlane.f32.xlu0 %v2177
        %v2181 = vpop.xlane.xlu0 %2180
        %v2182 = vmul.f32 %v2181, %v1460
        %v2183 = vsub.f32 %v2177, %v2182
        %v2184 = vmul.f32 %v2183, %v2183
        %2185 = vadd.xlane.f32.xlu0 %v2184
        %v2186 = vpop.xlane.xlu0 %2185
        %v2187 = vmul.f32 %v2186, %v1460
        %v2188 = vadd.f32 %v2187, 1e-06
        %v2189 = vrsqrt.pop %v2188
        %v2190 = vmul.f32 %v2189, %v2188
        %v2191 = vmul.f32 %v2190, %v2189
        %v2192 = vmul.f32 0.5, %v2191
        %v2193 = vsub.f32 1.5, %v2192
        %v2194 = vmul.f32 %v2189, %v2193
        %vm2195 = vweird.f32 %v2188
        %vm2196 = vweird.f32 %v2189
        %vm2197 = vmor %vm2195, %vm2196
        %v2198 = vsel %vm2197, %v2189, %v2194
        %v2199 = vmul.f32 %v2183, %v2198
        %v2201 = vperm.slane %v2178, 0
        %v2203 = vmul.f32 %v2199, %v2201
        %v2205 = vperm.slane %v2179, 0
        %v2207 = vadd.f32 %v2203, %v2205
        %v2208 = vpack.c.bf16 %v2207, %v2207
        %v2209 = vld [vmem:[#allocation17] sm:$0xff]
        %v2210 = vld [vmem:[#allocation17 + $0x8] sm:$0xff]
        %v2211 = vld [vmem:[#allocation17 + $0x10] sm:$0xff]
        %v2212 = vld [vmem:[#allocation17 + $0x18] sm:$0xff]
        %v2213 = vld [vmem:[#allocation17 + $0x20] sm:$0xff]
        %v2214 = vld [vmem:[#allocation17 + $0x28] sm:$0xff]
        %v2215 = vld [vmem:[#allocation17 + $0x30] sm:$0xff]
        %v2216 = vld [vmem:[#allocation17 + $0x38] sm:$0xff]
        %v2217 = vld [vmem:[#allocation17 + $0x40] sm:$0xff]
        %v2218 = vld [vmem:[#allocation17 + $0x48] sm:$0xff]
        %v2219 = vld [vmem:[#allocation17 + $0x50] sm:$0xff]
        %v2220 = vld [vmem:[#allocation17 + $0x58] sm:$0xff]
        %v2221 = vld [vmem:[#allocation17 + $0x60] sm:$0xff]
        %v2222 = vld [vmem:[#allocation17 + $0x68] sm:$0xff]
        %v2223 = vld [vmem:[#allocation17 + $0x70] sm:$0xff]
        %v2224 = vld [vmem:[#allocation17 + $0x78] sm:$0xff]
        %v2225 = vld [vmem:[%s14] sm:$0x3]
        %v2227 = vperm.slane %v2225, 0
        %v2228 = vperm.slane %v2225, 1
        %v2247 = vunpack.c.l.b16 %v2209
        %v2248 = vunpack.c.h.b16 %v2209
        %v2249 = vunpack.c.l.b16 %v2210
        %v2250 = vunpack.c.h.b16 %v2210
        %v2251 = vunpack.c.l.b16 %v2211
        %v2252 = vunpack.c.h.b16 %v2211
        %v2253 = vunpack.c.l.b16 %v2212
        %v2254 = vunpack.c.h.b16 %v2212
        %v2255 = vunpack.c.l.b16 %v2213
        %v2256 = vunpack.c.h.b16 %v2213
        %v2257 = vunpack.c.l.b16 %v2214
        %v2258 = vunpack.c.h.b16 %v2214
        %v2259 = vunpack.c.l.b16 %v2215
        %v2260 = vunpack.c.h.b16 %v2215
        %v2261 = vunpack.c.l.b16 %v2216
        %v2262 = vunpack.c.h.b16 %v2216
        %v2263 = vunpack.c.l.b16 %v2217
        %v2264 = vunpack.c.h.b16 %v2217
        %v2265 = vunpack.c.l.b16 %v2218
        %v2266 = vunpack.c.h.b16 %v2218
        %v2267 = vunpack.c.l.b16 %v2219
        %v2268 = vunpack.c.h.b16 %v2219
        %v2269 = vunpack.c.l.b16 %v2220
        %v2270 = vunpack.c.h.b16 %v2220
        %v2271 = vunpack.c.l.b16 %v2221
        %v2272 = vunpack.c.h.b16 %v2221
        %v2273 = vunpack.c.l.b16 %v2222
        %v2274 = vunpack.c.h.b16 %v2222
        %v2275 = vunpack.c.l.b16 %v2223
        %v2276 = vunpack.c.h.b16 %v2223
        %v2277 = vunpack.c.l.b16 %v2224
        %v2278 = vunpack.c.h.b16 %v2224
        %v2279 = vpack.c.b16 %v2249, %v2247
        %v2280 = vpack.c.b16 %v2250, %v2248
        %v2281 = vpack.c.b16 %v2253, %v2251
        %v2282 = vpack.c.b16 %v2254, %v2252
        %v2283 = vpack.c.b16 %v2257, %v2255
        %v2284 = vpack.c.b16 %v2258, %v2256
        %v2285 = vpack.c.b16 %v2261, %v2259
        %v2286 = vpack.c.b16 %v2262, %v2260
        %v2287 = vpack.c.b16 %v2265, %v2263
        %v2288 = vpack.c.b16 %v2266, %v2264
        %v2289 = vpack.c.b16 %v2269, %v2267
        %v2290 = vpack.c.b16 %v2270, %v2268
        %v2291 = vpack.c.b16 %v2273, %v2271
        %v2292 = vpack.c.b16 %v2274, %v2272
        %v2293 = vpack.c.b16 %v2277, %v2275
        %v2294 = vpack.c.b16 %v2278, %v2276
        %2311 = vmatpush.bf16.msra.mxu0 %v2293
        %2312 = vmatpush.bf16.msra.mxu0 %v2291
        %2313 = vmatpush.bf16.msra.mxu0 %v2289
        %2314 = vmatpush.bf16.msra.mxu0 %v2287
        %2315 = vmatpush.bf16.msra.mxu0 %v2285
        %2316 = vmatpush.bf16.msra.mxu0 %v2283
        %2317 = vmatpush.bf16.msra.mxu0 %v2281
        %2318 = vmatpush.bf16.msra.mxu0 %v2279
        %2319 = vmatmul.bf16.gmra.mxu0 %v2208
        %v2320 = vpop.f32.mrf.mxu0
        %v2321 = vadd.f32 %v2227, %v2320
        %v2322 = vpop.f32.mrf.mxu0
        %2323 = vdwg.mxu0
        %2324 = vmatpush.bf16.msra.mxu0 %v2294
        %2325 = vmatpush.bf16.msra.mxu0 %v2292
        %2326 = vmatpush.bf16.msra.mxu0 %v2290
        %2327 = vmatpush.bf16.msra.mxu0 %v2288
        %2328 = vmatpush.bf16.msra.mxu0 %v2286
        %2329 = vmatpush.bf16.msra.mxu0 %v2284
        %2330 = vmatpush.bf16.msra.mxu0 %v2282
        %2331 = vmatpush.bf16.msra.mxu0 %v2280
        %2332 = vmatmul.bf16.gmra.mxu0 %v2208
        %v2333 = vpop.f32.mrf.mxu0
        %v2334 = vadd.f32 %v2228, %v2333
        %v2335 = vpop.f32.mrf.mxu0
        %2336 = vdwg.mxu0
        %v2337 = vmul.f32 %v2321, 0.5
        %v2338 = vmul.f32 %v2334, 0.5
        %v2339 = vmul.f32 %v2321, 0.044715
        %v2340 = vmul.f32 %v2334, 0.044715
        %v2341 = vmul.f32 %v2339, %v2321
        %v2342 = vmul.f32 %v2340, %v2334
        %v2343 = vmul.f32 %v2341, %v2321
        %v2344 = vmul.f32 %v2342, %v2334
        %v2345 = vadd.f32 %v2321, %v2343
        %v2346 = vadd.f32 %v2334, %v2344
        %v2347 = vmul.f32 %v2345, 0.7978846
        %v2348 = vmul.f32 %v2346, 0.7978846
        %v2349 = vtanh.pop %v2347
        %v2350 = vtanh.pop %v2348
        %v2351 = vadd.f32 %v2349, 1.0
        %v2352 = vadd.f32 %v2350, 1.0
        %v2353 = vmul.f32 %v2337, %v2351
        %v2354 = vmul.f32 %v2338, %v2352
        %v2355 = vpack.c.bf16 %v2353, %v2353
        %v2356 = vpack.c.bf16 %v2354, %v2354
        %v2357 = vld [vmem:[#allocation19] sm:$0xf]
        %v2358 = vld [vmem:[#allocation19 + $0x4] sm:$0xf]
        %v2359 = vld [vmem:[#allocation19 + $0x8] sm:$0xf]
        %v2360 = vld [vmem:[#allocation19 + $0xc] sm:$0xf]
        %v2361 = vld [vmem:[#allocation19 + $0x10] sm:$0xf]
        %v2362 = vld [vmem:[#allocation19 + $0x14] sm:$0xf]
        %v2363 = vld [vmem:[#allocation19 + $0x18] sm:$0xf]
        %v2364 = vld [vmem:[#allocation19 + $0x1c] sm:$0xf]
        %v2365 = vld [vmem:[#allocation19 + $0x20] sm:$0xf]
        %v2366 = vld [vmem:[#allocation19 + $0x24] sm:$0xf]
        %v2367 = vld [vmem:[#allocation19 + $0x28] sm:$0xf]
        %v2368 = vld [vmem:[#allocation19 + $0x2c] sm:$0xf]
        %v2369 = vld [vmem:[#allocation19 + $0x30] sm:$0xf]
        %v2370 = vld [vmem:[#allocation19 + $0x34] sm:$0xf]
        %v2371 = vld [vmem:[#allocation19 + $0x38] sm:$0xf]
        %v2372 = vld [vmem:[#allocation19 + $0x3c] sm:$0xf]
        %v2373 = vld [vmem:[#allocation19 + $0x40] sm:$0xf]
        %v2374 = vld [vmem:[#allocation19 + $0x44] sm:$0xf]
        %v2375 = vld [vmem:[#allocation19 + $0x48] sm:$0xf]
        %v2376 = vld [vmem:[#allocation19 + $0x4c] sm:$0xf]
        %v2377 = vld [vmem:[#allocation19 + $0x50] sm:$0xf]
        %v2378 = vld [vmem:[#allocation19 + $0x54] sm:$0xf]
        %v2379 = vld [vmem:[#allocation19 + $0x58] sm:$0xf]
        %v2380 = vld [vmem:[#allocation19 + $0x5c] sm:$0xf]
        %v2381 = vld [vmem:[#allocation19 + $0x60] sm:$0xf]
        %v2382 = vld [vmem:[#allocation19 + $0x64] sm:$0xf]
        %v2383 = vld [vmem:[#allocation19 + $0x68] sm:$0xf]
        %v2384 = vld [vmem:[#allocation19 + $0x6c] sm:$0xf]
        %v2385 = vld [vmem:[#allocation19 + $0x70] sm:$0xf]
        %v2386 = vld [vmem:[#allocation19 + $0x74] sm:$0xf]
        %v2387 = vld [vmem:[#allocation19 + $0x78] sm:$0xf]
        %v2388 = vld [vmem:[#allocation19 + $0x7c] sm:$0xf]
        %v2389 = vld [vmem:[%s16] sm:$0x1]
        %v2391 = vperm.slane %v2389, 0
        %v2425 = vunpack.c.l.b16 %v2357
        %v2426 = vunpack.c.l.b16 %v2358
        %v2427 = vunpack.c.l.b16 %v2359
        %v2428 = vunpack.c.l.b16 %v2360
        %v2429 = vunpack.c.l.b16 %v2361
        %v2430 = vunpack.c.l.b16 %v2362
        %v2431 = vunpack.c.l.b16 %v2363
        %v2432 = vunpack.c.l.b16 %v2364
        %v2433 = vunpack.c.l.b16 %v2365
        %v2434 = vunpack.c.l.b16 %v2366
        %v2435 = vunpack.c.l.b16 %v2367
        %v2436 = vunpack.c.l.b16 %v2368
        %v2437 = vunpack.c.l.b16 %v2369
        %v2438 = vunpack.c.l.b16 %v2370
        %v2439 = vunpack.c.l.b16 %v2371
        %v2440 = vunpack.c.l.b16 %v2372
        %v2441 = vunpack.c.l.b16 %v2373
        %v2442 = vunpack.c.l.b16 %v2374
        %v2443 = vunpack.c.l.b16 %v2375
        %v2444 = vunpack.c.l.b16 %v2376
        %v2445 = vunpack.c.l.b16 %v2377
        %v2446 = vunpack.c.l.b16 %v2378
        %v2447 = vunpack.c.l.b16 %v2379
        %v2448 = vunpack.c.l.b16 %v2380
        %v2449 = vunpack.c.l.b16 %v2381
        %v2450 = vunpack.c.l.b16 %v2382
        %v2451 = vunpack.c.l.b16 %v2383
        %v2452 = vunpack.c.l.b16 %v2384
        %v2453 = vunpack.c.l.b16 %v2385
        %v2454 = vunpack.c.l.b16 %v2386
        %v2455 = vunpack.c.l.b16 %v2387
        %v2456 = vunpack.c.l.b16 %v2388
        %v2457 = vpack.c.b16 %v2426, %v2425
        %v2458 = vpack.c.b16 %v2428, %v2427
        %v2459 = vpack.c.b16 %v2430, %v2429
        %v2460 = vpack.c.b16 %v2432, %v2431
        %v2461 = vpack.c.b16 %v2434, %v2433
        %v2462 = vpack.c.b16 %v2436, %v2435
        %v2463 = vpack.c.b16 %v2438, %v2437
        %v2464 = vpack.c.b16 %v2440, %v2439
        %v2465 = vpack.c.b16 %v2442, %v2441
        %v2466 = vpack.c.b16 %v2444, %v2443
        %v2467 = vpack.c.b16 %v2446, %v2445
        %v2468 = vpack.c.b16 %v2448, %v2447
        %v2469 = vpack.c.b16 %v2450, %v2449
        %v2470 = vpack.c.b16 %v2452, %v2451
        %v2471 = vpack.c.b16 %v2454, %v2453
        %v2472 = vpack.c.b16 %v2456, %v2455
        %2489 = vmatpush.bf16.msra.mxu0 %v2464
        %2490 = vmatpush.bf16.msra.mxu0 %v2463
        %2491 = vmatpush.bf16.msra.mxu0 %v2462
        %2492 = vmatpush.bf16.msra.mxu0 %v2461
        %2493 = vmatpush.bf16.msra.mxu0 %v2460
        %2494 = vmatpush.bf16.msra.mxu0 %v2459
        %2495 = vmatpush.bf16.msra.mxu0 %v2458
        %2496 = vmatpush.bf16.msra.mxu0 %v2457
        %2497 = vmatmul.bf16.gmra.mxu0 %v2355
        %v2498 = vpop.f32.mrf.mxu0
        %v2499 = vadd.f32 %v2391, %v2498
        %v2500 = vpop.f32.mrf.mxu0
        %2501 = vdwg.mxu0
        %2502 = vmatpush.bf16.msra.mxu0 %v2472
        %2503 = vmatpush.bf16.msra.mxu0 %v2471
        %2504 = vmatpush.bf16.msra.mxu0 %v2470
        %2505 = vmatpush.bf16.msra.mxu0 %v2469
        %2506 = vmatpush.bf16.msra.mxu0 %v2468
        %2507 = vmatpush.bf16.msra.mxu0 %v2467
        %2508 = vmatpush.bf16.msra.mxu0 %v2466
        %2509 = vmatpush.bf16.msra.mxu0 %v2465
        %2510 = vmatmul.bf16.gmra.mxu0 %v2356
        %v2511 = vpop.f32.mrf.mxu0
        %v2512 = vadd.f32 %v2499, %v2511
        %v2513 = vpop.f32.mrf.mxu0
        %2514 = vdwg.mxu0
        %v2515 = vadd.f32 %v2177, %v2512
        %2516 = vst [vmem:[%s693] sm:$0xff] %v2515
        %s2517 = sand.u32 %s420, 1
        %s2518 = scalar_lea.sflag [#allocation7], %s2517
        %s2519 = sand.u32 %s420, 1
        %s2520 = smul.addr %s2519, 8
        %s2521 = scalar_lea.vmem [#allocation20], %s2520
        // Predicated region
        $region129: #{tpu_custom_call.1} parent=87 // pred_check
          %p2522 = pneg %p430
        $region130: #{tpu_custom_call.1} parent=87 // pred_check_branch
          %2524 = sbr.rel (%p2522) target = $region132
        $region131: #{tpu_custom_call.1} parent=87 // pred_region
          %2526 = vsyncadd %s2518, 0
          %s2527 = smul.addr %s40, 2
          %s2528 = sadd.s32 %s41, %s2527
          %s2529 = smul.addr %s2528, 8
          %s2530 = scalar_lea.hbm %s17, %s2529
          %s2532 = sshll.u32 %s2521, 4
          %s2533 = int_to_ptr.vmem [resolvable:$true] %s2532
          %s2534 = sshll.u32 %s2530, 4
          %s2535 = int_to_ptr.hbm [resolvable:$true] %s2534
          %2537 = dma.vmem_to_hbm [thread:$0]  %s2533, 128, %s2535, %s2518
        $region132: #{tpu_custom_call.1} parent=87 // pred_fallthru
          _
      $region88: #{tpu_custom_call.1} parent=5 // pred_fallthru
        _
      %p2538 = scmp.le.s32.totalorder 2, %s31
      // Predicated region
      $region133: #{tpu_custom_call.1} parent=5 // pred_check
        %p2539 = pneg %p2538
      $region134: #{tpu_custom_call.1} parent=5 // pred_check_branch
        %2541 = sbr.rel (%p2539) target = $region136
      $region135: #{tpu_custom_call.1} parent=5 // pred_region
        %s2542 = ssub.s32 %s31, 2
        // Predicated region
        $region137: #{tpu_custom_call.1} parent=135 // pred_check
          %p2543 = pneg %p436
        $region138: #{tpu_custom_call.1} parent=135 // pred_check_branch
          %2545 = sbr.rel (%p2543) target = $region140
        $region139: #{tpu_custom_call.1} parent=135 // pred_region
          %s2546 = sand.u32 %s421, 1
          %s2547 = scalar_lea.sflag [#allocation7], %s2546
          %s2548 = sand.u32 %s421, 1
          %s2549 = smul.addr %s2548, 8
          %s2550 = scalar_lea.vmem [#allocation20], %s2549
          %2552 = dma.done %s2547, 128
        $region140: #{tpu_custom_call.1} parent=135 // pred_fallthru
          _
      $region136: #{tpu_custom_call.1} parent=5 // pred_fallthru
        _
    $region6: #{tpu_custom_call.1} parent=1 // loop_footer
      %s35 = sadd.s32 1, %s31
    $region7: #{tpu_custom_call.1} parent=1 // loop_footer_branch
      %30 = sbr.rel target = $region3
    $region8: #{tpu_custom_call.1} parent=1 // loop_exit
      _
    %2553 = vsyncpa [#allocation6], 1
    %s2554 = scalar_lea.sflag [#allocation6], 1
    %2555 = vsyncpa %s2554, 1
    %2556 = vsyncpa [#allocation9], 1
    %2557 = vsyncpa [#allocation12], 1
    %2558 = vsyncpa [#allocation15], 1
    %2559 = vsyncpa [#allocation18], 1
    %2560 = vsyncpa [#allocation7], 1
    %s2561 = scalar_lea.sflag [#allocation7], 1
    %2562 = vsyncpa %s2561, 1

// kernel: tpu_custom_call.1
$region0: #{tpu_custom_call.1}
  #allocation0 [shape = 'u32[]', space=smem, size = 0x4, offset = 0x4, fixed_abs, tag = 'smem constant byte address 0x4 - core index']
  #allocation1 [shape = 'u32[72,128]{1,0:T(1,128)}', space=vmem, size = 0x9000, scoped, tag = 'internal scratch']
  #allocation2 [shape = 'bf16[4,16,32]{2,1,0:T(8,128)(2,1)}', space=vmem, size = 0x4000, scoped, tag = 'scratch operand']
  #allocation3 [shape = 'bf16[4,16,32]{2,1,0:T(8,128)(2,1)}', space=vmem, size = 0x4000, scoped, tag = 'scratch operand']
  #allocation4 [shape = 'bf16[4,8,32]{2,1,0:T(8,128)(2,1)}', space=vmem, size = 0x2000, scoped, tag = 'scratch operand']
  %s0 = inlined_call_operand.hbm [shape: f32[2,16,128], index: 0, kind: input, shape index: {}]
  %s1 = inlined_call_operand.hbm [shape: f32[1,128], index: 1, kind: input, shape index: {}]
  %s2 = inlined_call_operand.vmem [shape: f32[1,128], index: 2, kind: input, shape index: {}]
  %s3 = inlined_call_operand.hbm [shape: bf16[128,128], index: 3, kind: input, shape index: {}]
  %s4 = inlined_call_operand.hbm [shape: f32[1,128], index: 4, kind: input, shape index: {}]
  %s5 = inlined_call_operand.hbm [shape: bf16[128,128], index: 5, kind: input, shape index: {}]
  %s6 = inlined_call_operand.vmem [shape: f32[1,128], index: 6, kind: input, shape index: {}]
  %s7 = inlined_call_operand.hbm [shape: bf16[128,128], index: 7, kind: input, shape index: {}]
  %s8 = inlined_call_operand.vmem [shape: f32[1,128], index: 8, kind: input, shape index: {}]
  %s9 = inlined_call_operand.hbm [shape: bf16[128,128], index: 9, kind: input, shape index: {}]
  %s10 = inlined_call_operand.vmem [shape: f32[1,128], index: 10, kind: input, shape index: {}]
  %s11 = inlined_call_operand.vmem [shape: f32[1,128], index: 11, kind: input, shape index: {}]
  %s12 = inlined_call_operand.vmem [shape: f32[1,128], index: 12, kind: input, shape index: {}]
  %s13 = inlined_call_operand.hbm [shape: bf16[128,256], index: 13, kind: input, shape index: {}]
  %s14 = inlined_call_operand.vmem [shape: f32[1,256], index: 14, kind: input, shape index: {}]
  %s15 = inlined_call_operand.hbm [shape: bf16[256,128], index: 15, kind: input, shape index: {}]
  %s16 = inlined_call_operand.vmem [shape: f32[1,128], index: 16, kind: input, shape index: {}]
  %s17 = inlined_call_operand.hbm [shape: f32[2,16,128], index: 17, kind: output, shape index: {}]
  %s18 = sld [smem:[#allocation0]]
  $region141: #{tpu_custom_call.1} parent=0
    _
  %s20 = ssub.s32 1, %s18
  %s21 = scalar_select 0, %s20, %s18
  $region1: #{tpu_custom_call.1} parent=0
    #allocation5 [shape = 'u8[16384]{0}', space=vmem, size = 0x4000, scoped, tag = 'input window, operand 0']
    #allocation6 [shape = 's32[2]{0}', space=sflag, size = 0x8, scoped, tag = 'scoped memory for tpu_custom_call.1']
    #allocation7 [shape = 's32[2]{0}', space=sflag, size = 0x8, scoped, tag = 'scoped memory for tpu_custom_call.1']
    #allocation8 [shape = 'u8[512]{0}', space=vmem, size = 0x400, scoped, tag = 'input window, operand 1, single buffered']
    #allocation9 [shape = 's32[1]{0}', space=sflag, size = 0x4, scoped, tag = 'scoped memory for tpu_custom_call.1']
    #allocation10 [shape = 'u8[32768]{0}', space=vmem, size = 0x8000, scoped, tag = 'input window, operand 3, single buffered']
    #allocation11 [shape = 'u8[512]{0}', space=vmem, size = 0x400, scoped, tag = 'input window, operand 4, single buffered']
    #allocation12 [shape = 's32[1]{0}', space=sflag, size = 0x4, scoped, tag = 'scoped memory for tpu_custom_call.1']
    #allocation13 [shape = 'u8[32768]{0}', space=vmem, size = 0x8000, scoped, tag = 'input window, operand 5, single buffered']
    #allocation14 [shape = 'u8[32768]{0}', space=vmem, size = 0x8000, scoped, tag = 'input window, operand 7, single buffered']
    #allocation15 [shape = 's32[1]{0}', space=sflag, size = 0x4, scoped, tag = 'scoped memory for tpu_custom_call.1']
    #allocation16 [shape = 'u8[32768]{0}', space=vmem, size = 0x8000, scoped, tag = 'input window, operand 9, single buffered']
    #allocation17 [shape = 'u8[65536]{0}', space=vmem, size = 0x10000, scoped, tag = 'input window, operand 13, single buffered']
    #allocation18 [shape = 's32[1]{0}', space=sflag, size = 0x4, scoped, tag = 'scoped memory for tpu_custom_call.1']
    #allocation19 [shape = 'u8[65536]{0}', space=vmem, size = 0x10000, scoped, tag = 'input window, operand 15, single buffered']
    #allocation20 [shape = 'u8[8192]{0}', space=vmem, size = 0x2000, scoped, tag = 'output window, operand 0']
    %22 = vsyncpa [#allocation6], 0
    %s23 = scalar_lea.sflag [#allocation6], 1
    %24 = vsyncpa %s23, 0
    %25 = vsyncpa [#allocation9], 0
    %26 = vsyncpa [#allocation12], 0
    %27 = vsyncpa [#allocation15], 0
    %28 = vsyncpa [#allocation18], 0
    %29 = vsyncpa [#allocation7], 0
    %s30 = scalar_lea.sflag [#allocation7], 1
    %31 = vsyncpa %s30, 0
    loop: start=0, step=1, limit=6
    $region2: #{tpu_custom_call.1} parent=1 // loop_pre_header
      _
    $region3: #{tpu_custom_call.1} parent=1 // loop_header
      %s33 = sphi 0, %s37
      %p34 = scmp.ge.s32.totalorder %s33, 6
      %s40 = sphi 0, %s52
      %s41 = sphi 0, %s48
      %s42 = sphi 0, %s40
      %s43 = sphi 0, %s41
      %s44 = sphi 0, %s42
      %s45 = sphi 0, %s43
      %s55 = sphi 0, %s57
      %s58 = sphi 0, %s55
      %s59 = sphi 0, %s58
      %s75 = sphi 0, %s59
      %s79 = sphi 0, %s79
      %s81 = sphi 0, %s79
      %s82 = sphi 0, %s81
      %s96 = sphi 0, %s82
      %s100 = sphi 0, %s100
      %s102 = sphi 0, %s100
      %s103 = sphi 0, %s102
      %s117 = sphi 0, %s103
      %s121 = sphi 0, %s121
      %s123 = sphi 0, %s121
      %s124 = sphi 0, %s123
      %s138 = sphi 0, %s124
      %s142 = sphi 0, %s142
      %s144 = sphi 0, %s142
      %s145 = sphi 0, %s144
      %s159 = sphi 0, %s145
      %s163 = sphi 0, %s163
      %s165 = sphi 0, %s163
      %s166 = sphi 0, %s165
      %s180 = sphi 0, %s166
      %s184 = sphi 0, %s184
      %s186 = sphi 0, %s184
      %s187 = sphi 0, %s186
      %s201 = sphi 0, %s187
      %s205 = sphi 0, %s205
      %s207 = sphi 0, %s205
      %s208 = sphi 0, %s207
      %s222 = sphi 0, %s208
      %s226 = sphi 0, %s226
      %s228 = sphi 0, %s226
      %s229 = sphi 0, %s228
      %s243 = sphi 0, %s229
      %s247 = sphi 0, %s247
      %s249 = sphi 0, %s247
      %s250 = sphi 0, %s249
      %s264 = sphi 0, %s250
      %s268 = sphi 0, %s268
      %s270 = sphi 0, %s268
      %s271 = sphi 0, %s270
      %s285 = sphi 0, %s271
      %s289 = sphi 0, %s289
      %s291 = sphi 0, %s289
      %s292 = sphi 0, %s291
      %s306 = sphi 0, %s292
      %s310 = sphi 0, %s310
      %s312 = sphi 0, %s310
      %s313 = sphi 0, %s312
      %s327 = sphi 0, %s313
      %s331 = sphi 0, %s331
      %s333 = sphi 0, %s331
      %s334 = sphi 0, %s333
      %s348 = sphi 0, %s334
      %s352 = sphi 0, %s352
      %s354 = sphi 0, %s352
      %s355 = sphi 0, %s354
      %s369 = sphi 0, %s355
      %s373 = sphi 0, %s373
      %s375 = sphi 0, %s373
      %s376 = sphi 0, %s375
      %s390 = sphi 0, %s376
      %s394 = sphi 0, %s394
      %s396 = sphi 0, %s394
      %s397 = sphi 0, %s396
      %s411 = sphi 0, %s397
      %s419 = sphi 0, %s421
      %s422 = sphi 0, %s419
      %s423 = sphi 0, %s422
      %s439 = sphi 0, %s423
    $region4: #{tpu_custom_call.1} parent=1 // loop_header_branch
      %36 = sbr.rel (%p34) target = $region8
    $region5: #{tpu_custom_call.1} parent=1 // loop_body
      %s38 = ssub.s32 %s33, 1
      %s39 = ssub.s32 %s33, 2
      %s46 = sadd.s32 1, %s41
      %p47 = scmp.ge.s32.totalorder %s46, 2
      %s48 = scalar_select %p47, 0, %s46
      %s49 = sadd.s32 1, %s40
      %s50 = scalar_select %p47, %s49, %s40
      %p51 = scmp.ge.s32.totalorder %s50, 2
      %s52 = scalar_select %p51, 0, %s50
      %s53 = ssub.s32 %s40, %s52
      %p54 = scmp.eq.s32.totalorder %s53, 0
      %s56 = sadd.s32 %s55, 1
      %s57 = scalar_select %p54, %s55, %s56
      %p60 = pneg %p54
      %p61 = scmp.eq.s32.totalorder %s33, 3
      %p62 = por %p60, %p61
      %p63 = scmp.ne.s32.totalorder %s55, %s58
      %p64 = scmp.eq.s32.totalorder %s33, 0
      %p65 = por %p63, %p64
      %p66 = scmp.ne.s32.totalorder %s55, %s58
      %p67 = scmp.eq.s32.totalorder %s38, 3
      %p68 = por %p66, %p67
      %p69 = scmp.ne.s32.totalorder %s58, %s59
      %p70 = scmp.eq.s32.totalorder %s38, 0
      %p71 = por %p69, %p70
      %p72 = scmp.ne.s32.totalorder %s58, %s59
      %p73 = scmp.eq.s32.totalorder %s39, 3
      %p74 = por %p72, %p73
      %p76 = scmp.ne.s32.totalorder %s59, %s75
      %p77 = scmp.eq.s32.totalorder %s39, 0
      %p78 = por %p76, %p77
      %s80 = sadd.s32 %s79, 1
      %p83 = scmp.eq.s32.totalorder %s33, 3
      %p84 = scmp.ne.s32.totalorder %s79, %s81
      %p85 = scmp.eq.s32.totalorder %s33, 0
      %p86 = por %p84, %p85
      %p87 = scmp.ne.s32.totalorder %s79, %s81
      %p88 = scmp.eq.s32.totalorder %s38, 3
      %p89 = por %p87, %p88
      %p90 = scmp.ne.s32.totalorder %s81, %s82
      %p91 = scmp.eq.s32.totalorder %s38, 0
      %p92 = por %p90, %p91
      %p93 = scmp.ne.s32.totalorder %s81, %s82
      %p94 = scmp.eq.s32.totalorder %s39, 3
      %p95 = por %p93, %p94
      %p97 = scmp.ne.s32.totalorder %s82, %s96
      %p98 = scmp.eq.s32.totalorder %s39, 0
      %p99 = por %p97, %p98
      %s101 = sadd.s32 %s100, 1
      %p104 = scmp.eq.s32.totalorder %s33, 3
      %p105 = scmp.ne.s32.totalorder %s100, %s102
      %p106 = scmp.eq.s32.totalorder %s33, 0
      %p107 = por %p105, %p106
      %p108 = scmp.ne.s32.totalorder %s100, %s102
      %p109 = scmp.eq.s32.totalorder %s38, 3
      %p110 = por %p108, %p109
      %p111 = scmp.ne.s32.totalorder %s102, %s103
      %p112 = scmp.eq.s32.totalorder %s38, 0
      %p113 = por %p111, %p112
      %p114 = scmp.ne.s32.totalorder %s102, %s103
      %p115 = scmp.eq.s32.totalorder %s39, 3
      %p116 = por %p114, %p115
      %p118 = scmp.ne.s32.totalorder %s103, %s117
      %p119 = scmp.eq.s32.totalorder %s39, 0
      %p120 = por %p118, %p119
      %s122 = sadd.s32 %s121, 1
      %p125 = scmp.eq.s32.totalorder %s33, 3
      %p126 = scmp.ne.s32.totalorder %s121, %s123
      %p127 = scmp.eq.s32.totalorder %s33, 0
      %p128 = por %p126, %p127
      %p129 = scmp.ne.s32.totalorder %s121, %s123
      %p130 = scmp.eq.s32.totalorder %s38, 3
      %p131 = por %p129, %p130
      %p132 = scmp.ne.s32.totalorder %s123, %s124
      %p133 = scmp.eq.s32.totalorder %s38, 0
      %p134 = por %p132, %p133
      %p135 = scmp.ne.s32.totalorder %s123, %s124
      %p136 = scmp.eq.s32.totalorder %s39, 3
      %p137 = por %p135, %p136
      %p139 = scmp.ne.s32.totalorder %s124, %s138
      %p140 = scmp.eq.s32.totalorder %s39, 0
      %p141 = por %p139, %p140
      %s143 = sadd.s32 %s142, 1
      %p146 = scmp.eq.s32.totalorder %s33, 3
      %p147 = scmp.ne.s32.totalorder %s142, %s144
      %p148 = scmp.eq.s32.totalorder %s33, 0
      %p149 = por %p147, %p148
      %p150 = scmp.ne.s32.totalorder %s142, %s144
      %p151 = scmp.eq.s32.totalorder %s38, 3
      %p152 = por %p150, %p151
      %p153 = scmp.ne.s32.totalorder %s144, %s145
      %p154 = scmp.eq.s32.totalorder %s38, 0
      %p155 = por %p153, %p154
      %p156 = scmp.ne.s32.totalorder %s144, %s145
      %p157 = scmp.eq.s32.totalorder %s39, 3
      %p158 = por %p156, %p157
      %p160 = scmp.ne.s32.totalorder %s145, %s159
      %p161 = scmp.eq.s32.totalorder %s39, 0
      %p162 = por %p160, %p161
      %s164 = sadd.s32 %s163, 1
      %p167 = scmp.eq.s32.totalorder %s33, 3
      %p168 = scmp.ne.s32.totalorder %s163, %s165
      %p169 = scmp.eq.s32.totalorder %s33, 0
      %p170 = por %p168, %p169
      %p171 = scmp.ne.s32.totalorder %s163, %s165
      %p172 = scmp.eq.s32.totalorder %s38, 3
      %p173 = por %p171, %p172
      %p174 = scmp.ne.s32.totalorder %s165, %s166
      %p175 = scmp.eq.s32.totalorder %s38, 0
      %p176 = por %p174, %p175
      %p177 = scmp.ne.s32.totalorder %s165, %s166
      %p178 = scmp.eq.s32.totalorder %s39, 3
      %p179 = por %p177, %p178
      %p181 = scmp.ne.s32.totalorder %s166, %s180
      %p182 = scmp.eq.s32.totalorder %s39, 0
      %p183 = por %p181, %p182
      %s185 = sadd.s32 %s184, 1
      %p188 = scmp.eq.s32.totalorder %s33, 3
      %p189 = scmp.ne.s32.totalorder %s184, %s186
      %p190 = scmp.eq.s32.totalorder %s33, 0
      %p191 = por %p189, %p190
      %p192 = scmp.ne.s32.totalorder %s184, %s186
      %p193 = scmp.eq.s32.totalorder %s38, 3
      %p194 = por %p192, %p193
      %p195 = scmp.ne.s32.totalorder %s186, %s187
      %p196 = scmp.eq.s32.totalorder %s38, 0
      %p197 = por %p195, %p196
      %p198 = scmp.ne.s32.totalorder %s186, %s187
      %p199 = scmp.eq.s32.totalorder %s39, 3
      %p200 = por %p198, %p199
      %p202 = scmp.ne.s32.totalorder %s187, %s201
      %p203 = scmp.eq.s32.totalorder %s39, 0
      %p204 = por %p202, %p203
      %s206 = sadd.s32 %s205, 1
      %p209 = scmp.eq.s32.totalorder %s33, 3
      %p210 = scmp.ne.s32.totalorder %s205, %s207
      %p211 = scmp.eq.s32.totalorder %s33, 0
      %p212 = por %p210, %p211
      %p213 = scmp.ne.s32.totalorder %s205, %s207
      %p214 = scmp.eq.s32.totalorder %s38, 3
      %p215 = por %p213, %p214
      %p216 = scmp.ne.s32.totalorder %s207, %s208
      %p217 = scmp.eq.s32.totalorder %s38, 0
      %p218 = por %p216, %p217
      %p219 = scmp.ne.s32.totalorder %s207, %s208
      %p220 = scmp.eq.s32.totalorder %s39, 3
      %p221 = por %p219, %p220
      %p223 = scmp.ne.s32.totalorder %s208, %s222
      %p224 = scmp.eq.s32.totalorder %s39, 0
      %p225 = por %p223, %p224
      %s227 = sadd.s32 %s226, 1
      %p230 = scmp.eq.s32.totalorder %s33, 3
      %p231 = scmp.ne.s32.totalorder %s226, %s228
      %p232 = scmp.eq.s32.totalorder %s33, 0
      %p233 = por %p231, %p232
      %p234 = scmp.ne.s32.totalorder %s226, %s228
      %p235 = scmp.eq.s32.totalorder %s38, 3
      %p236 = por %p234, %p235
      %p237 = scmp.ne.s32.totalorder %s228, %s229
      %p238 = scmp.eq.s32.totalorder %s38, 0
      %p239 = por %p237, %p238
      %p240 = scmp.ne.s32.totalorder %s228, %s229
      %p241 = scmp.eq.s32.totalorder %s39, 3
      %p242 = por %p240, %p241
      %p244 = scmp.ne.s32.totalorder %s229, %s243
      %p245 = scmp.eq.s32.totalorder %s39, 0
      %p246 = por %p244, %p245
      %s248 = sadd.s32 %s247, 1
      %p251 = scmp.eq.s32.totalorder %s33, 3
      %p252 = scmp.ne.s32.totalorder %s247, %s249
      %p253 = scmp.eq.s32.totalorder %s33, 0
      %p254 = por %p252, %p253
      %p255 = scmp.ne.s32.totalorder %s247, %s249
      %p256 = scmp.eq.s32.totalorder %s38, 3
      %p257 = por %p255, %p256
      %p258 = scmp.ne.s32.totalorder %s249, %s250
      %p259 = scmp.eq.s32.totalorder %s38, 0
      %p260 = por %p258, %p259
      %p261 = scmp.ne.s32.totalorder %s249, %s250
      %p262 = scmp.eq.s32.totalorder %s39, 3
      %p263 = por %p261, %p262
      %p265 = scmp.ne.s32.totalorder %s250, %s264
      %p266 = scmp.eq.s32.totalorder %s39, 0
      %p267 = por %p265, %p266
      %s269 = sadd.s32 %s268, 1
      %p272 = scmp.eq.s32.totalorder %s33, 3
      %p273 = scmp.ne.s32.totalorder %s268, %s270
      %p274 = scmp.eq.s32.totalorder %s33, 0
      %p275 = por %p273, %p274
      %p276 = scmp.ne.s32.totalorder %s268, %s270
      %p277 = scmp.eq.s32.totalorder %s38, 3
      %p278 = por %p276, %p277
      %p279 = scmp.ne.s32.totalorder %s270, %s271
      %p280 = scmp.eq.s32.totalorder %s38, 0
      %p281 = por %p279, %p280
      %p282 = scmp.ne.s32.totalorder %s270, %s271
      %p283 = scmp.eq.s32.totalorder %s39, 3
      %p284 = por %p282, %p283
      %p286 = scmp.ne.s32.totalorder %s271, %s285
      %p287 = scmp.eq.s32.totalorder %s39, 0
      %p288 = por %p286, %p287
      %s290 = sadd.s32 %s289, 1
      %p293 = scmp.eq.s32.totalorder %s33, 3
      %p294 = scmp.ne.s32.totalorder %s289, %s291
      %p295 = scmp.eq.s32.totalorder %s33, 0
      %p296 = por %p294, %p295
      %p297 = scmp.ne.s32.totalorder %s289, %s291
      %p298 = scmp.eq.s32.totalorder %s38, 3
      %p299 = por %p297, %p298
      %p300 = scmp.ne.s32.totalorder %s291, %s292
      %p301 = scmp.eq.s32.totalorder %s38, 0
      %p302 = por %p300, %p301
      %p303 = scmp.ne.s32.totalorder %s291, %s292
      %p304 = scmp.eq.s32.totalorder %s39, 3
      %p305 = por %p303, %p304
      %p307 = scmp.ne.s32.totalorder %s292, %s306
      %p308 = scmp.eq.s32.totalorder %s39, 0
      %p309 = por %p307, %p308
      %s311 = sadd.s32 %s310, 1
      %p314 = scmp.eq.s32.totalorder %s33, 3
      %p315 = scmp.ne.s32.totalorder %s310, %s312
      %p316 = scmp.eq.s32.totalorder %s33, 0
      %p317 = por %p315, %p316
      %p318 = scmp.ne.s32.totalorder %s310, %s312
      %p319 = scmp.eq.s32.totalorder %s38, 3
      %p320 = por %p318, %p319
      %p321 = scmp.ne.s32.totalorder %s312, %s313
      %p322 = scmp.eq.s32.totalorder %s38, 0
      %p323 = por %p321, %p322
      %p324 = scmp.ne.s32.totalorder %s312, %s313
      %p325 = scmp.eq.s32.totalorder %s39, 3
      %p326 = por %p324, %p325
      %p328 = scmp.ne.s32.totalorder %s313, %s327
      %p329 = scmp.eq.s32.totalorder %s39, 0
      %p330 = por %p328, %p329
      %s332 = sadd.s32 %s331, 1
      %p335 = scmp.eq.s32.totalorder %s33, 3
      %p336 = scmp.ne.s32.totalorder %s331, %s333
      %p337 = scmp.eq.s32.totalorder %s33, 0
      %p338 = por %p336, %p337
      %p339 = scmp.ne.s32.totalorder %s331, %s333
      %p340 = scmp.eq.s32.totalorder %s38, 3
      %p341 = por %p339, %p340
      %p342 = scmp.ne.s32.totalorder %s333, %s334
      %p343 = scmp.eq.s32.totalorder %s38, 0
      %p344 = por %p342, %p343
      %p345 = scmp.ne.s32.totalorder %s333, %s334
      %p346 = scmp.eq.s32.totalorder %s39, 3
      %p347 = por %p345, %p346
      %p349 = scmp.ne.s32.totalorder %s334, %s348
      %p350 = scmp.eq.s32.totalorder %s39, 0
      %p351 = por %p349, %p350
      %s353 = sadd.s32 %s352, 1
      %p356 = scmp.eq.s32.totalorder %s33, 3
      %p357 = scmp.ne.s32.totalorder %s352, %s354
      %p358 = scmp.eq.s32.totalorder %s33, 0
      %p359 = por %p357, %p358
      %p360 = scmp.ne.s32.totalorder %s352, %s354
      %p361 = scmp.eq.s32.totalorder %s38, 3
      %p362 = por %p360, %p361
      %p363 = scmp.ne.s32.totalorder %s354, %s355
      %p364 = scmp.eq.s32.totalorder %s38, 0
      %p365 = por %p363, %p364
      %p366 = scmp.ne.s32.totalorder %s354, %s355
      %p367 = scmp.eq.s32.totalorder %s39, 3
      %p368 = por %p366, %p367
      %p370 = scmp.ne.s32.totalorder %s355, %s369
      %p371 = scmp.eq.s32.totalorder %s39, 0
      %p372 = por %p370, %p371
      %s374 = sadd.s32 %s373, 1
      %p377 = scmp.eq.s32.totalorder %s33, 3
      %p378 = scmp.ne.s32.totalorder %s373, %s375
      %p379 = scmp.eq.s32.totalorder %s33, 0
      %p380 = por %p378, %p379
      %p381 = scmp.ne.s32.totalorder %s373, %s375
      %p382 = scmp.eq.s32.totalorder %s38, 3
      %p383 = por %p381, %p382
      %p384 = scmp.ne.s32.totalorder %s375, %s376
      %p385 = scmp.eq.s32.totalorder %s38, 0
      %p386 = por %p384, %p385
      %p387 = scmp.ne.s32.totalorder %s375, %s376
      %p388 = scmp.eq.s32.totalorder %s39, 3
      %p389 = por %p387, %p388
      %p391 = scmp.ne.s32.totalorder %s376, %s390
      %p392 = scmp.eq.s32.totalorder %s39, 0
      %p393 = por %p391, %p392
      %s395 = sadd.s32 %s394, 1
      %p398 = scmp.eq.s32.totalorder %s33, 3
      %p399 = scmp.ne.s32.totalorder %s394, %s396
      %p400 = scmp.eq.s32.totalorder %s33, 0
      %p401 = por %p399, %p400
      %p402 = scmp.ne.s32.totalorder %s394, %s396
      %p403 = scmp.eq.s32.totalorder %s38, 3
      %p404 = por %p402, %p403
      %p405 = scmp.ne.s32.totalorder %s396, %s397
      %p406 = scmp.eq.s32.totalorder %s38, 0
      %p407 = por %p405, %p406
      %p408 = scmp.ne.s32.totalorder %s396, %s397
      %p409 = scmp.eq.s32.totalorder %s39, 3
      %p410 = por %p408, %p409
      %p412 = scmp.ne.s32.totalorder %s397, %s411
      %p413 = scmp.eq.s32.totalorder %s39, 0
      %p414 = por %p412, %p413
      %s415 = ssub.s32 %s40, %s52
      %s416 = ssub.s32 %s41, %s48
      %s417 = sor.u32 %s415, %s416
      %p418 = scmp.eq.s32.totalorder %s417, 0
      %s420 = sadd.s32 %s419, 1
      %s421 = scalar_select %p418, %s419, %s420
      %p424 = pneg %p418
      %p425 = scmp.eq.s32.totalorder %s33, 3
      %p426 = por %p424, %p425
      %p427 = scmp.ne.s32.totalorder %s419, %s422
      %p428 = scmp.eq.s32.totalorder %s33, 0
      %p429 = por %p427, %p428
      %p430 = scmp.ne.s32.totalorder %s419, %s422
      %p431 = scmp.eq.s32.totalorder %s38, 3
      %p432 = por %p430, %p431
      %p433 = scmp.ne.s32.totalorder %s422, %s423
      %p434 = scmp.eq.s32.totalorder %s38, 0
      %p435 = por %p433, %p434
      %p436 = scmp.ne.s32.totalorder %s422, %s423
      %p437 = scmp.eq.s32.totalorder %s39, 3
      %p438 = por %p436, %p437
      %p440 = scmp.ne.s32.totalorder %s423, %s439
      %p441 = scmp.eq.s32.totalorder %s39, 0
      %p442 = por %p440, %p441
      %p443 = scmp.le.s32.totalorder 1, %s33
      %p444 = scmp.lt.s32.totalorder %s33, 5
      %p445 = pnand %p443, %p444
      %p446 = pneg %p445
      // Predicated region
      $region9: #{tpu_custom_call.1} parent=5 // pred_check
        _
      $region10: #{tpu_custom_call.1} parent=5 // pred_check_branch
        %448 = sbr.rel (%p445) target = $region12
      $region11: #{tpu_custom_call.1} parent=5 // pred_region
        %s449 = ssub.s32 %s33, 1
        // Predicated region
        $region13: #{tpu_custom_call.1} parent=11 // pred_check
          %p450 = pneg %p92
        $region14: #{tpu_custom_call.1} parent=11 // pred_check_branch
          %452 = sbr.rel (%p450) target = $region16
        $region15: #{tpu_custom_call.1} parent=11 // pred_region
          %454 = vsyncadd [#allocation9], 0
          %s456 = sshll.u32 %s1, 4
          %s457 = int_to_ptr.hbm [resolvable:$true] %s456
          %s458 = sshll.u32 [#allocation8], 4
          %s459 = int_to_ptr.vmem [resolvable:$true] %s458
          %461 = dma.hbm_to_vmem [thread:$0]  %s457, 16, %s459, [#allocation9]
        $region16: #{tpu_custom_call.1} parent=11 // pred_fallthru
          _
        // Predicated region
        $region17: #{tpu_custom_call.1} parent=11 // pred_check
          %p462 = pneg %p113
        $region18: #{tpu_custom_call.1} parent=11 // pred_check_branch
          %464 = sbr.rel (%p462) target = $region20
        $region19: #{tpu_custom_call.1} parent=11 // pred_region
          _
        $region20: #{tpu_custom_call.1} parent=11 // pred_fallthru
          _
        // Predicated region
        $region21: #{tpu_custom_call.1} parent=11 // pred_check
          %p465 = pneg %p134
        $region22: #{tpu_custom_call.1} parent=11 // pred_check_branch
          %467 = sbr.rel (%p465) target = $region24
        $region23: #{tpu_custom_call.1} parent=11 // pred_region
          %469 = vsyncadd [#allocation9], 0
          %s470 = sshll.u32 %s3, 4
          %s471 = int_to_ptr.hbm [resolvable:$true] %s470
          %s472 = sshll.u32 [#allocation10], 4
          %s473 = int_to_ptr.vmem [resolvable:$true] %s472
          %478 = dma.hbm_to_vmem [thread:$0]  %s471, 1024, %s473, [#allocation9], 64, 64, 4
        $region24: #{tpu_custom_call.1} parent=11 // pred_fallthru
          _
        // Predicated region
        $region25: #{tpu_custom_call.1} parent=11 // pred_check
          %p479 = pneg %p155
        $region26: #{tpu_custom_call.1} parent=11 // pred_check_branch
          %481 = sbr.rel (%p479) target = $region28
        $region27: #{tpu_custom_call.1} parent=11 // pred_region
          %483 = vsyncadd [#allocation12], 0
          %s485 = sshll.u32 %s4, 4
          %s486 = int_to_ptr.hbm [resolvable:$true] %s485
          %s487 = sshll.u32 [#allocation11], 4
          %s488 = int_to_ptr.vmem [resolvable:$true] %s487
          %490 = dma.hbm_to_vmem [thread:$0]  %s486, 16, %s488, [#allocation12]
        $region28: #{tpu_custom_call.1} parent=11 // pred_fallthru
          _
        // Predicated region
        $region29: #{tpu_custom_call.1} parent=11 // pred_check
          %p491 = pneg %p176
        $region30: #{tpu_custom_call.1} parent=11 // pred_check_branch
          %493 = sbr.rel (%p491) target = $region32
        $region31: #{tpu_custom_call.1} parent=11 // pred_region
          %495 = vsyncadd [#allocation12], 0
          %s496 = sshll.u32 %s5, 4
          %s497 = int_to_ptr.hbm [resolvable:$true] %s496
          %s498 = sshll.u32 [#allocation13], 4
          %s499 = int_to_ptr.vmem [resolvable:$true] %s498
          %504 = dma.hbm_to_vmem [thread:$0]  %s497, 1024, %s499, [#allocation12], 64, 64, 4
        $region32: #{tpu_custom_call.1} parent=11 // pred_fallthru
          _
        // Predicated region
        $region33: #{tpu_custom_call.1} parent=11 // pred_check
          %p505 = pneg %p197
        $region34: #{tpu_custom_call.1} parent=11 // pred_check_branch
          %507 = sbr.rel (%p505) target = $region36
        $region35: #{tpu_custom_call.1} parent=11 // pred_region
          _
        $region36: #{tpu_custom_call.1} parent=11 // pred_fallthru
          _
        // Predicated region
        $region37: #{tpu_custom_call.1} parent=11 // pred_check
          %p508 = pneg %p218
        $region38: #{tpu_custom_call.1} parent=11 // pred_check_branch
          %510 = sbr.rel (%p508) target = $region40
        $region39: #{tpu_custom_call.1} parent=11 // pred_region
          %512 = vsyncadd [#allocation15], 0
          %s513 = sshll.u32 %s7, 4
          %s514 = int_to_ptr.hbm [resolvable:$true] %s513
          %s515 = sshll.u32 [#allocation14], 4
          %s516 = int_to_ptr.vmem [resolvable:$true] %s515
          %521 = dma.hbm_to_vmem [thread:$0]  %s514, 1024, %s516, [#allocation15], 64, 64, 4
        $region40: #{tpu_custom_call.1} parent=11 // pred_fallthru
          _
        // Predicated region
        $region41: #{tpu_custom_call.1} parent=11 // pred_check
          %p522 = pneg %p239
        $region42: #{tpu_custom_call.1} parent=11 // pred_check_branch
          %524 = sbr.rel (%p522) target = $region44
        $region43: #{tpu_custom_call.1} parent=11 // pred_region
          _
        $region44: #{tpu_custom_call.1} parent=11 // pred_fallthru
          _
        // Predicated region
        $region45: #{tpu_custom_call.1} parent=11 // pred_check
          %p525 = pneg %p260
        $region46: #{tpu_custom_call.1} parent=11 // pred_check_branch
          %527 = sbr.rel (%p525) target = $region48
        $region47: #{tpu_custom_call.1} parent=11 // pred_region
          %529 = vsyncadd [#allocation15], 0
          %s530 = sshll.u32 %s9, 4
          %s531 = int_to_ptr.hbm [resolvable:$true] %s530
          %s532 = sshll.u32 [#allocation16], 4
          %s533 = int_to_ptr.vmem [resolvable:$true] %s532
          %538 = dma.hbm_to_vmem [thread:$0]  %s531, 1024, %s533, [#allocation15], 64, 64, 4
        $region48: #{tpu_custom_call.1} parent=11 // pred_fallthru
          _
        // Predicated region
        $region49: #{tpu_custom_call.1} parent=11 // pred_check
          %p539 = pneg %p281
        $region50: #{tpu_custom_call.1} parent=11 // pred_check_branch
          %541 = sbr.rel (%p539) target = $region52
        $region51: #{tpu_custom_call.1} parent=11 // pred_region
          _
        $region52: #{tpu_custom_call.1} parent=11 // pred_fallthru
          _
        // Predicated region
        $region53: #{tpu_custom_call.1} parent=11 // pred_check
          %p542 = pneg %p302
        $region54: #{tpu_custom_call.1} parent=11 // pred_check_branch
          %544 = sbr.rel (%p542) target = $region56
        $region55: #{tpu_custom_call.1} parent=11 // pred_region
          _
        $region56: #{tpu_custom_call.1} parent=11 // pred_fallthru
          _
        // Predicated region
        $region57: #{tpu_custom_call.1} parent=11 // pred_check
          %p545 = pneg %p323
        $region58: #{tpu_custom_call.1} parent=11 // pred_check_branch
          %547 = sbr.rel (%p545) target = $region60
        $region59: #{tpu_custom_call.1} parent=11 // pred_region
          _
        $region60: #{tpu_custom_call.1} parent=11 // pred_fallthru
          _
        // Predicated region
        $region61: #{tpu_custom_call.1} parent=11 // pred_check
          %p548 = pneg %p344
        $region62: #{tpu_custom_call.1} parent=11 // pred_check_branch
          %550 = sbr.rel (%p548) target = $region64
        $region63: #{tpu_custom_call.1} parent=11 // pred_region
          %552 = vsyncadd [#allocation18], 0
          %s553 = sshll.u32 %s13, 4
          %s554 = int_to_ptr.hbm [resolvable:$true] %s553
          %s555 = sshll.u32 [#allocation17], 4
          %s556 = int_to_ptr.vmem [resolvable:$true] %s555
          %561 = dma.hbm_to_vmem [thread:$0]  %s554, 2048, %s556, [#allocation18], 128, 128, 8
        $region64: #{tpu_custom_call.1} parent=11 // pred_fallthru
          _
        // Predicated region
        $region65: #{tpu_custom_call.1} parent=11 // pred_check
          %p562 = pneg %p365
        $region66: #{tpu_custom_call.1} parent=11 // pred_check_branch
          %564 = sbr.rel (%p562) target = $region68
        $region67: #{tpu_custom_call.1} parent=11 // pred_region
          _
        $region68: #{tpu_custom_call.1} parent=11 // pred_fallthru
          _
        // Predicated region
        $region69: #{tpu_custom_call.1} parent=11 // pred_check
          %p565 = pneg %p386
        $region70: #{tpu_custom_call.1} parent=11 // pred_check_branch
          %567 = sbr.rel (%p565) target = $region72
        $region71: #{tpu_custom_call.1} parent=11 // pred_region
          %569 = vsyncadd [#allocation18], 0
          %s570 = sshll.u32 %s15, 4
          %s571 = int_to_ptr.hbm [resolvable:$true] %s570
          %s572 = sshll.u32 [#allocation19], 4
          %s573 = int_to_ptr.vmem [resolvable:$true] %s572
          %578 = dma.hbm_to_vmem [thread:$0]  %s571, 2048, %s573, [#allocation18], 64, 64, 4
        $region72: #{tpu_custom_call.1} parent=11 // pred_fallthru
          _
        // Predicated region
        $region73: #{tpu_custom_call.1} parent=11 // pred_check
          %p579 = pneg %p407
        $region74: #{tpu_custom_call.1} parent=11 // pred_check_branch
          %581 = sbr.rel (%p579) target = $region76
        $region75: #{tpu_custom_call.1} parent=11 // pred_region
          _
        $region76: #{tpu_custom_call.1} parent=11 // pred_fallthru
          _
      $region12: #{tpu_custom_call.1} parent=5 // pred_fallthru
        _
      %p582 = scmp.lt.s32.totalorder %s33, 4
      // Predicated region
      $region77: #{tpu_custom_call.1} parent=5 // pred_check
        %p583 = pneg %p582
      $region78: #{tpu_custom_call.1} parent=5 // pred_check_branch
        %585 = sbr.rel (%p583) target = $region80
      $region79: #{tpu_custom_call.1} parent=5 // pred_region
        // Predicated region
        $region81: #{tpu_custom_call.1} parent=79 // pred_check
          %p586 = pneg %p65
        $region82: #{tpu_custom_call.1} parent=79 // pred_check_branch
          %588 = sbr.rel (%p586) target = $region84
        $region83: #{tpu_custom_call.1} parent=79 // pred_region
          %s589 = sand.u32 %s55, 1
          %s590 = scalar_lea.sflag [#allocation6], %s589
          %s591 = sand.u32 %s55, 1
          %s592 = smul.addr %s591, 16
          %s593 = scalar_lea.vmem [#allocation5], %s592
          %595 = vsyncadd %s590, 0
          %s596 = smul.addr %s40, 2
          %s597 = smul.addr %s596, 8
          %s598 = scalar_lea.hbm %s0, %s597
          %s599 = sshll.u32 %s598, 4
          %s600 = int_to_ptr.hbm [resolvable:$true] %s599
          %s601 = sshll.u32 %s593, 4
          %s602 = int_to_ptr.vmem [resolvable:$true] %s601
          %607 = dma.hbm_to_vmem [thread:$0]  %s600, 256, %s602, %s590, 128, 128, 8
        $region84: #{tpu_custom_call.1} parent=79 // pred_fallthru
          _
      $region80: #{tpu_custom_call.1} parent=5 // pred_fallthru
        _
      %p608 = scmp.le.s32.totalorder 1, %s33
      %p609 = scmp.lt.s32.totalorder %s33, 5
      %p610 = pnand %p608, %p609
      %p611 = pneg %p610
      // Predicated region
      $region85: #{tpu_custom_call.1} parent=5 // pred_check
        _
      $region86: #{tpu_custom_call.1} parent=5 // pred_check_branch
        %613 = sbr.rel (%p610) target = $region88
      $region87: #{tpu_custom_call.1} parent=5 // pred_region
        %s614 = ssub.s32 %s33, 1
        %s615 = sand.u32 %s58, 1
        %s616 = scalar_lea.sflag [#allocation6], %s615
        %s617 = sand.u32 %s58, 1
        %s618 = smul.addr %s617, 16
        %s619 = scalar_lea.vmem [#allocation5], %s618
        // Predicated region
        $region89: #{tpu_custom_call.1} parent=87 // pred_check
          %p620 = pneg %p71
        $region90: #{tpu_custom_call.1} parent=87 // pred_check_branch
          %622 = sbr.rel (%p620) target = $region92
        $region91: #{tpu_custom_call.1} parent=87 // pred_region
          %624 = dma.done %s616, 256
        $region92: #{tpu_custom_call.1} parent=87 // pred_fallthru
          _
        // Predicated region
        $region93: #{tpu_custom_call.1} parent=87 // pred_check
          %p625 = pneg %p92
        $region94: #{tpu_custom_call.1} parent=87 // pred_check_branch
          %627 = sbr.rel (%p625) target = $region96
        $region95: #{tpu_custom_call.1} parent=87 // pred_region
          %629 = dma.done [#allocation9], 16
        $region96: #{tpu_custom_call.1} parent=87 // pred_fallthru
          _
        // Predicated region
        $region97: #{tpu_custom_call.1} parent=87 // pred_check
          %p630 = pneg %p134
        $region98: #{tpu_custom_call.1} parent=87 // pred_check_branch
          %632 = sbr.rel (%p630) target = $region100
        $region99: #{tpu_custom_call.1} parent=87 // pred_region
          %634 = dma.done [#allocation9], 1024
        $region100: #{tpu_custom_call.1} parent=87 // pred_fallthru
          _
        // Predicated region
        $region101: #{tpu_custom_call.1} parent=87 // pred_check
          %p635 = pneg %p155
        $region102: #{tpu_custom_call.1} parent=87 // pred_check_branch
          %637 = sbr.rel (%p635) target = $region104
        $region103: #{tpu_custom_call.1} parent=87 // pred_region
          %639 = dma.done [#allocation12], 16
        $region104: #{tpu_custom_call.1} parent=87 // pred_fallthru
          _
        // Predicated region
        $region105: #{tpu_custom_call.1} parent=87 // pred_check
          %p640 = pneg %p176
        $region106: #{tpu_custom_call.1} parent=87 // pred_check_branch
          %642 = sbr.rel (%p640) target = $region108
        $region107: #{tpu_custom_call.1} parent=87 // pred_region
          %644 = dma.done [#allocation12], 1024
        $region108: #{tpu_custom_call.1} parent=87 // pred_fallthru
          _
        // Predicated region
        $region109: #{tpu_custom_call.1} parent=87 // pred_check
          %p645 = pneg %p218
        $region110: #{tpu_custom_call.1} parent=87 // pred_check_branch
          %647 = sbr.rel (%p645) target = $region112
        $region111: #{tpu_custom_call.1} parent=87 // pred_region
          %649 = dma.done [#allocation15], 1024
        $region112: #{tpu_custom_call.1} parent=87 // pred_fallthru
          _
        // Predicated region
        $region113: #{tpu_custom_call.1} parent=87 // pred_check
          %p650 = pneg %p260
        $region114: #{tpu_custom_call.1} parent=87 // pred_check_branch
          %652 = sbr.rel (%p650) target = $region116
        $region115: #{tpu_custom_call.1} parent=87 // pred_region
          %654 = dma.done [#allocation15], 1024
        $region116: #{tpu_custom_call.1} parent=87 // pred_fallthru
          _
        // Predicated region
        $region117: #{tpu_custom_call.1} parent=87 // pred_check
          %p655 = pneg %p344
        $region118: #{tpu_custom_call.1} parent=87 // pred_check_branch
          %657 = sbr.rel (%p655) target = $region120
        $region119: #{tpu_custom_call.1} parent=87 // pred_region
          %659 = dma.done [#allocation18], 2048
        $region120: #{tpu_custom_call.1} parent=87 // pred_fallthru
          _
        // Predicated region
        $region121: #{tpu_custom_call.1} parent=87 // pred_check
          %p660 = pneg %p386
        $region122: #{tpu_custom_call.1} parent=87 // pred_check_branch
          %662 = sbr.rel (%p660) target = $region124
        $region123: #{tpu_custom_call.1} parent=87 // pred_region
          %664 = dma.done [#allocation18], 2048
        $region124: #{tpu_custom_call.1} parent=87 // pred_fallthru
          _
        %s665 = sand.u32 %s58, 1
        %s666 = scalar_lea.sflag [#allocation6], %s665
        %s667 = sand.u32 %s58, 1
        %s668 = smul.addr %s667, 16
        %s669 = scalar_lea.vmem [#allocation5], %s668
        %p670 = pneg %p71
        %p671 = pneg %p68
        %p672 = pneg %p92
        %p673 = pneg %p89
        %p674 = pneg %p113
        %p675 = pneg %p110
        %p676 = pneg %p134
        %p677 = pneg %p131
        %p678 = pneg %p155
        %p679 = pneg %p152
        %p680 = pneg %p176
        %p681 = pneg %p173
        %p682 = pneg %p197
        %p683 = pneg %p194
        %p684 = pneg %p218
        %p685 = pneg %p215
        %p686 = pneg %p239
        %p687 = pneg %p236
        %p688 = pneg %p260
        %p689 = pneg %p257
        %p690 = pneg %p281
        %p691 = pneg %p278
        %p692 = pneg %p302
        %p693 = pneg %p299
        %p694 = pneg %p323
        %p695 = pneg %p320
        %p696 = pneg %p344
        %p697 = pneg %p341
        %p698 = pneg %p365
        %p699 = pneg %p362
        %p700 = pneg %p386
        %p701 = pneg %p383
        %p702 = pneg %p407
        %p703 = pneg %p404
        %p704 = pneg %p435
        %p705 = pneg %p432
        %s706 = sand.u32 %s422, 1
        %s707 = scalar_lea.sflag [#allocation7], %s706
        %s708 = sand.u32 %s422, 1
        %s709 = smul.addr %s708, 8
        %s710 = scalar_lea.vmem [#allocation20], %s709
        %p712 = scmp.eq.s32.totalorder %s43, 0
        // Predicated region
        $region125: #{tpu_custom_call.1} parent=87 // pred_check
          %p713 = pneg %p712
        $region126: #{tpu_custom_call.1} parent=87 // pred_check_branch
          %715 = sbr.rel (%p713) target = $region128
        $region127: #{tpu_custom_call.1} parent=87 // pred_region
          %v716 = vld [vmem:[%s619] sm:$0xff]
          %v717 = vld [vmem:[%s619 + $0x8] sm:$0xff]
          %v718 = vld [vmem:[#allocation8] sm:$0x1]
          %v719 = vld [vmem:[%s2] sm:$0x1]
          %720 = vadd.xlane.f32.xlu0 %v716
          %v721 = vpop.xlane.xlu0 %720
          %722 = vadd.xlane.f32.xlu0 %v717
          %v723 = vpop.xlane.xlu0 %722
          %v724 = vrcp.pop 128.0
          %v725 = vmul.f32 128.0, %v724
          %v726 = vsub.f32 1.0, %v725
          %v727 = vmul.f32 %v724, %v726
          %v728 = vadd.f32 %v724, %v727
          %vm729 = vweird.f32 %v724
          %v730 = vsel %vm729, %v724, %v728
          %v731 = vmul.f32 %v721, %v730
          %v732 = vmul.f32 %v723, %v730
          %v733 = vsub.f32 %v716, %v731
          %v734 = vsub.f32 %v717, %v732
          %v735 = vmul.f32 %v733, %v733
          %v736 = vmul.f32 %v734, %v734
          %737 = vadd.xlane.f32.xlu0 %v735
          %v738 = vpop.xlane.xlu0 %737
          %739 = vadd.xlane.f32.xlu0 %v736
          %v740 = vpop.xlane.xlu0 %739
          %v741 = vmul.f32 %v738, %v730
          %v742 = vmul.f32 %v740, %v730
          %v743 = vadd.f32 %v741, 1e-06
          %v744 = vadd.f32 %v742, 1e-06
          %v745 = vrsqrt.pop %v743
          %v746 = vmul.f32 %v745, %v743
          %v747 = vmul.f32 %v746, %v745
          %v748 = vmul.f32 0.5, %v747
          %v749 = vsub.f32 1.5, %v748
          %v750 = vmul.f32 %v745, %v749
          %vm751 = vweird.f32 %v743
          %vm752 = vweird.f32 %v745
          %vm753 = vmor %vm751, %vm752
          %v754 = vsel %vm753, %v745, %v750
          %v755 = vrsqrt.pop %v744
          %v756 = vmul.f32 %v755, %v744
          %v757 = vmul.f32 %v756, %v755
          %v758 = vmul.f32 0.5, %v757
          %v759 = vsub.f32 1.5, %v758
          %v760 = vmul.f32 %v755, %v759
          %vm761 = vweird.f32 %v744
          %vm762 = vweird.f32 %v755
          %vm763 = vmor %vm761, %vm762
          %v764 = vsel %vm763, %v755, %v760
          %v765 = vmul.f32 %v733, %v754
          %v766 = vmul.f32 %v734, %v764
          %v768 = vperm.slane %v718, 0
          %v770 = vmul.f32 %v765, %v768
          %v771 = vmul.f32 %v766, %v768
          %v773 = vperm.slane %v719, 0
          %v775 = vadd.f32 %v770, %v773
          %v776 = vadd.f32 %v771, %v773
          %v777 = vpack.c.bf16 %v776, %v775
          %v778 = vld [vmem:[#allocation13] sm:$0xf]
          %v779 = vld [vmem:[#allocation13 + $0x4] sm:$0xf]
          %v780 = vld [vmem:[#allocation13 + $0x8] sm:$0xf]
          %v781 = vld [vmem:[#allocation13 + $0xc] sm:$0xf]
          %v782 = vld [vmem:[#allocation13 + $0x10] sm:$0xf]
          %v783 = vld [vmem:[#allocation13 + $0x14] sm:$0xf]
          %v784 = vld [vmem:[#allocation13 + $0x18] sm:$0xf]
          %v785 = vld [vmem:[#allocation13 + $0x1c] sm:$0xf]
          %v786 = vld [vmem:[#allocation13 + $0x20] sm:$0xf]
          %v787 = vld [vmem:[#allocation13 + $0x24] sm:$0xf]
          %v788 = vld [vmem:[#allocation13 + $0x28] sm:$0xf]
          %v789 = vld [vmem:[#allocation13 + $0x2c] sm:$0xf]
          %v790 = vld [vmem:[#allocation13 + $0x30] sm:$0xf]
          %v791 = vld [vmem:[#allocation13 + $0x34] sm:$0xf]
          %v792 = vld [vmem:[#allocation13 + $0x38] sm:$0xf]
          %v793 = vld [vmem:[#allocation13 + $0x3c] sm:$0xf]
          %v794 = vld [vmem:[%s6] sm:$0x1]
          %v796 = vperm.slane %v794, 0
          %v814 = vunpack.c.l.b16 %v778
          %v815 = vunpack.c.l.b16 %v779
          %v816 = vunpack.c.l.b16 %v780
          %v817 = vunpack.c.l.b16 %v781
          %v818 = vunpack.c.l.b16 %v782
          %v819 = vunpack.c.l.b16 %v783
          %v820 = vunpack.c.l.b16 %v784
          %v821 = vunpack.c.l.b16 %v785
          %v822 = vunpack.c.l.b16 %v786
          %v823 = vunpack.c.l.b16 %v787
          %v824 = vunpack.c.l.b16 %v788
          %v825 = vunpack.c.l.b16 %v789
          %v826 = vunpack.c.l.b16 %v790
          %v827 = vunpack.c.l.b16 %v791
          %v828 = vunpack.c.l.b16 %v792
          %v829 = vunpack.c.l.b16 %v793
          %v830 = vpack.c.b16 %v815, %v814
          %v831 = vpack.c.b16 %v817, %v816
          %v832 = vpack.c.b16 %v819, %v818
          %v833 = vpack.c.b16 %v821, %v820
          %v834 = vpack.c.b16 %v823, %v822
          %v835 = vpack.c.b16 %v825, %v824
          %v836 = vpack.c.b16 %v827, %v826
          %v837 = vpack.c.b16 %v829, %v828
          %846 = vmatpush.bf16.msra.mxu0 %v837
          %847 = vmatpush.bf16.msra.mxu0 %v836
          %848 = vmatpush.bf16.msra.mxu0 %v835
          %849 = vmatpush.bf16.msra.mxu0 %v834
          %850 = vmatpush.bf16.msra.mxu0 %v833
          %851 = vmatpush.bf16.msra.mxu0 %v832
          %852 = vmatpush.bf16.msra.mxu0 %v831
          %853 = vmatpush.bf16.msra.mxu0 %v830
          %854 = vmatmul.bf16.gmra.mxu0 %v777
          %v855 = vpop.f32.mrf.mxu0
          %v856 = vadd.f32 %v796, %v855
          %v857 = vpop.f32.mrf.mxu0
          %v858 = vadd.f32 %v796, %v857
          %859 = vdwg.mxu0
          %v860 = vpack.c.bf16 %v856, %v856
          %v861 = vpack.c.bf16 %v858, %v858
          %864 = vrot.lane.b32.xlu0 %v860, 96
          %v865 = vpop.permute.xlu0 %864
          %866 = vrot.lane.b32.xlu0 %v861, 96
          %v867 = vpop.permute.xlu0 %866
          %868 = vrot.lane.b32.xlu0 %v860, 64
          %v869 = vpop.permute.xlu0 %868
          %870 = vrot.lane.b32.xlu0 %v861, 64
          %v871 = vpop.permute.xlu0 %870
          %872 = vrot.lane.b32.xlu0 %v860, 32
          %v873 = vpop.permute.xlu0 %872
          %874 = vrot.lane.b32.xlu0 %v861, 32
          %v875 = vpop.permute.xlu0 %874
          %v878 = vpack.i.b16 %v865, %v860
          %v879 = vshrl.u32 %v860, 16
          %v880 = vshrl.u32 %v865, 16
          %v881 = vpack.i.b16 %v880, %v879
          %v884 = vpack.i.b16 %v873, %v869
          %v885 = vshrl.u32 %v869, 16
          %v886 = vshrl.u32 %v873, 16
          %v887 = vpack.i.b16 %v886, %v885
          %v890 = vpack.i.b16 %v867, %v861
          %v891 = vshrl.u32 %v861, 16
          %v892 = vshrl.u32 %v867, 16
          %v893 = vpack.i.b16 %v892, %v891
          %v896 = vpack.i.b16 %v875, %v871
          %v897 = vshrl.u32 %v871, 16
          %v898 = vshrl.u32 %v875, 16
          %v899 = vpack.i.b16 %v898, %v897
          %v902 = vunpack.c.l.s4 1983009808
          %v903 = vunpack.c.0.s8 %v902
          %v904 = vperm.slane %v878, %v903
          %v907 = vunpack.c.l.s4 1983009808
          %v908 = vunpack.c.0.s8 %v907
          %v909 = vperm.slane %v884, %v908
          %v910 = vrot.slane %v909, 4
          %vm911 = vcmask 1047556
          %v912 = vsel %vm911, %v910, %v904
          %v913 = vrot.slane %v904, 4
          %v914 = vsel %vm911, %v909, %v913
          %v916 = vunpack.c.l.s4 1934713408
          %v917 = vunpack.c.0.s8 %v916
          %v918 = vperm.slane %v912, %v917
          %v920 = vunpack.c.l.s4 1934713408
          %v921 = vunpack.c.0.s8 %v920
          %v922 = vperm.slane %v914, %v921
          %v923 = vrot.slane %v918, 4
          %v924 = vsel %vm911, 0, %v923
          %v925 = vrot.slane %v922, 4
          %v926 = vsel %vm911, 0, %v925
          %v929 = vunpack.c.l.s4 1983009808
          %v930 = vunpack.c.0.s8 %v929
          %v931 = vperm.slane %v881, %v930
          %v934 = vunpack.c.l.s4 1983009808
          %v935 = vunpack.c.0.s8 %v934
          %v936 = vperm.slane %v887, %v935
          %v937 = vrot.slane %v936, 4
          %v938 = vsel %vm911, %v937, %v931
          %v939 = vrot.slane %v931, 4
          %v940 = vsel %vm911, %v936, %v939
          %v942 = vunpack.c.l.s4 1934713408
          %v943 = vunpack.c.0.s8 %v942
          %v944 = vperm.slane %v938, %v943
          %v946 = vunpack.c.l.s4 1934713408
          %v947 = vunpack.c.0.s8 %v946
          %v948 = vperm.slane %v940, %v947
          %v949 = vrot.slane %v944, 4
          %v950 = vsel %vm911, 0, %v949
          %v951 = vrot.slane %v948, 4
          %v952 = vsel %vm911, 0, %v951
          %v955 = vunpack.c.l.s4 1983009808
          %v956 = vunpack.c.0.s8 %v955
          %v957 = vperm.slane %v890, %v956
          %v960 = vunpack.c.l.s4 1983009808
          %v961 = vunpack.c.0.s8 %v960
          %v962 = vperm.slane %v896, %v961
          %v963 = vrot.slane %v962, 4
          %v964 = vsel %vm911, %v963, %v957
          %v965 = vrot.slane %v957, 4
          %v966 = vsel %vm911, %v962, %v965
          %v968 = vunpack.c.l.s4 1934713408
          %v969 = vunpack.c.0.s8 %v968
          %v970 = vperm.slane %v964, %v969
          %v972 = vunpack.c.l.s4 1934713408
          %v973 = vunpack.c.0.s8 %v972
          %v974 = vperm.slane %v966, %v973
          %v975 = vrot.slane %v970, 4
          %v976 = vsel %vm911, 0, %v975
          %v977 = vrot.slane %v974, 4
          %v978 = vsel %vm911, 0, %v977
          %v981 = vunpack.c.l.s4 1983009808
          %v982 = vunpack.c.0.s8 %v981
          %v983 = vperm.slane %v893, %v982
          %v986 = vunpack.c.l.s4 1983009808
          %v987 = vunpack.c.0.s8 %v986
          %v988 = vperm.slane %v899, %v987
          %v989 = vrot.slane %v988, 4
          %v990 = vsel %vm911, %v989, %v983
          %v991 = vrot.slane %v983, 4
          %v992 = vsel %vm911, %v988, %v991
          %v994 = vunpack.c.l.s4 1934713408
          %v995 = vunpack.c.0.s8 %v994
          %v996 = vperm.slane %v990, %v995
          %v998 = vunpack.c.l.s4 1934713408
          %v999 = vunpack.c.0.s8 %v998
          %v1000 = vperm.slane %v992, %v999
          %v1001 = vrot.slane %v996, 4
          %v1002 = vsel %vm911, 0, %v1001
          %v1003 = vrot.slane %v1000, 4
          %v1004 = vsel %vm911, 0, %v1003
          %v1005 = vsel %vm911, %v925, %v918
          %v1007 = vunpack.c.l.s4 1983009808
          %v1008 = vunpack.c.0.s8 %v1007
          %v1009 = vperm.slane %v1005, %v1008
          %v1010 = vrot.slane %v926, 4
          %v1011 = vsel %vm911, %v1010, %v924
          %v1013 = vunpack.c.l.s4 1983009808
          %v1014 = vunpack.c.0.s8 %v1013
          %v1015 = vperm.slane %v1011, %v1014
          %v1016 = vrot.slane %v1015, 4
          %v1017 = vsel %vm911, %v1016, %v1009
          %v1019 = vunpack.c.l.s4 1934713408
          %v1020 = vunpack.c.0.s8 %v1019
          %v1021 = vperm.slane %v1017, %v1020
          %v1022 = vrot.slane %v1021, 4
          %v1023 = vsel %vm911, 0, %v1022
          %v1024 = vsel %vm911, %v951, %v944
          %v1026 = vunpack.c.l.s4 1983009808
          %v1027 = vunpack.c.0.s8 %v1026
          %v1028 = vperm.slane %v1024, %v1027
          %v1029 = vrot.slane %v952, 4
          %v1030 = vsel %vm911, %v1029, %v950
          %v1032 = vunpack.c.l.s4 1983009808
          %v1033 = vunpack.c.0.s8 %v1032
          %v1034 = vperm.slane %v1030, %v1033
          %v1035 = vrot.slane %v1034, 4
          %v1036 = vsel %vm911, %v1035, %v1028
          %v1038 = vunpack.c.l.s4 1934713408
          %v1039 = vunpack.c.0.s8 %v1038
          %v1040 = vperm.slane %v1036, %v1039
          %v1041 = vrot.slane %v1040, 4
          %v1042 = vsel %vm911, 0, %v1041
          %v1043 = vsel %vm911, %v977, %v970
          %v1045 = vunpack.c.l.s4 1983009808
          %v1046 = vunpack.c.0.s8 %v1045
          %v1047 = vperm.slane %v1043, %v1046
          %v1048 = vrot.slane %v978, 4
          %v1049 = vsel %vm911, %v1048, %v976
          %v1051 = vunpack.c.l.s4 1983009808
          %v1052 = vunpack.c.0.s8 %v1051
          %v1053 = vperm.slane %v1049, %v1052
          %v1054 = vrot.slane %v1053, 4
          %v1055 = vsel %vm911, %v1054, %v1047
          %v1057 = vunpack.c.l.s4 1934713408
          %v1058 = vunpack.c.0.s8 %v1057
          %v1059 = vperm.slane %v1055, %v1058
          %v1060 = vrot.slane %v1059, 4
          %v1061 = vsel %vm911, 0, %v1060
          %v1062 = vsel %vm911, %v1003, %v996
          %v1064 = vunpack.c.l.s4 1983009808
          %v1065 = vunpack.c.0.s8 %v1064
          %v1066 = vperm.slane %v1062, %v1065
          %v1067 = vrot.slane %v1004, 4
          %v1068 = vsel %vm911, %v1067, %v1002
          %v1070 = vunpack.c.l.s4 1983009808
          %v1071 = vunpack.c.0.s8 %v1070
          %v1072 = vperm.slane %v1068, %v1071
          %v1073 = vrot.slane %v1072, 4
          %v1074 = vsel %vm911, %v1073, %v1066
          %v1076 = vunpack.c.l.s4 1934713408
          %v1077 = vunpack.c.0.s8 %v1076
          %v1078 = vperm.slane %v1074, %v1077
          %v1079 = vrot.slane %v1078, 4
          %v1080 = vsel %vm911, 0, %v1079
          %v1083 = vpack.i.b16 %v1040, %v1021
          %v1085 = vshrl.u32 %v1021, 16
          %v1086 = vshrl.u32 %v1040, 16
          %v1087 = vpack.i.b16 %v1086, %v1085
          %v1091 = vpack.i.b16 %v1042, %v1023
          %v1093 = vshrl.u32 %v1023, 16
          %v1094 = vshrl.u32 %v1042, 16
          %v1095 = vpack.i.b16 %v1094, %v1093
          %v1099 = vpack.i.b16 %v1078, %v1059
          %v1101 = vshrl.u32 %v1059, 16
          %v1102 = vshrl.u32 %v1078, 16
          %v1103 = vpack.i.b16 %v1102, %v1101
          %v1107 = vpack.i.b16 %v1080, %v1061
          %v1109 = vshrl.u32 %v1061, 16
          %v1110 = vshrl.u32 %v1080, 16
          %v1111 = vpack.i.b16 %v1110, %v1109
          %vm1113 = vcmask 257024
          %1114 = vst.msk [vmem:[#allocation2] sm:$0xf] %vm1113, %v1083
          %1115 = vst.msk [vmem:[#allocation2 + $0x4] sm:$0xf] %vm1113, %v1099
          %1116 = vst.msk [vmem:[#allocation2 + $0x8] sm:$0xf] %vm1113, %v1087
          %1117 = vst.msk [vmem:[#allocation2 + $0xc] sm:$0xf] %vm1113, %v1103
          %1118 = vst.msk [vmem:[#allocation2 + $0x10] sm:$0xf] %vm1113, %v1091
          %1119 = vst.msk [vmem:[#allocation2 + $0x14] sm:$0xf] %vm1113, %v1107
          %1120 = vst.msk [vmem:[#allocation2 + $0x18] sm:$0xf] %vm1113, %v1095
          %1121 = vst.msk [vmem:[#allocation2 + $0x1c] sm:$0xf] %vm1113, %v1111
          %v1122 = vld [vmem:[#allocation14] sm:$0xf]
          %v1123 = vld [vmem:[#allocation14 + $0x4] sm:$0xf]
          %v1124 = vld [vmem:[#allocation14 + $0x8] sm:$0xf]
          %v1125 = vld [vmem:[#allocation14 + $0xc] sm:$0xf]
          %v1126 = vld [vmem:[#allocation14 + $0x10] sm:$0xf]
          %v1127 = vld [vmem:[#allocation14 + $0x14] sm:$0xf]
          %v1128 = vld [vmem:[#allocation14 + $0x18] sm:$0xf]
          %v1129 = vld [vmem:[#allocation14 + $0x1c] sm:$0xf]
          %v1130 = vld [vmem:[#allocation14 + $0x20] sm:$0xf]
          %v1131 = vld [vmem:[#allocation14 + $0x24] sm:$0xf]
          %v1132 = vld [vmem:[#allocation14 + $0x28] sm:$0xf]
          %v1133 = vld [vmem:[#allocation14 + $0x2c] sm:$0xf]
          %v1134 = vld [vmem:[#allocation14 + $0x30] sm:$0xf]
          %v1135 = vld [vmem:[#allocation14 + $0x34] sm:$0xf]
          %v1136 = vld [vmem:[#allocation14 + $0x38] sm:$0xf]
          %v1137 = vld [vmem:[#allocation14 + $0x3c] sm:$0xf]
          %v1138 = vld [vmem:[%s8] sm:$0x1]
          %v1140 = vperm.slane %v1138, 0
          %v1158 = vunpack.c.l.b16 %v1122
          %v1159 = vunpack.c.l.b16 %v1123
          %v1160 = vunpack.c.l.b16 %v1124
          %v1161 = vunpack.c.l.b16 %v1125
          %v1162 = vunpack.c.l.b16 %v1126
          %v1163 = vunpack.c.l.b16 %v1127
          %v1164 = vunpack.c.l.b16 %v1128
          %v1165 = vunpack.c.l.b16 %v1129
          %v1166 = vunpack.c.l.b16 %v1130
          %v1167 = vunpack.c.l.b16 %v1131
          %v1168 = vunpack.c.l.b16 %v1132
          %v1169 = vunpack.c.l.b16 %v1133
          %v1170 = vunpack.c.l.b16 %v1134
          %v1171 = vunpack.c.l.b16 %v1135
          %v1172 = vunpack.c.l.b16 %v1136
          %v1173 = vunpack.c.l.b16 %v1137
          %v1174 = vpack.c.b16 %v1159, %v1158
          %v1175 = vpack.c.b16 %v1161, %v1160
          %v1176 = vpack.c.b16 %v1163, %v1162
          %v1177 = vpack.c.b16 %v1165, %v1164
          %v1178 = vpack.c.b16 %v1167, %v1166
          %v1179 = vpack.c.b16 %v1169, %v1168
          %v1180 = vpack.c.b16 %v1171, %v1170
          %v1181 = vpack.c.b16 %v1173, %v1172
          %1190 = vmatpush.bf16.msra.mxu0 %v1181
          %1191 = vmatpush.bf16.msra.mxu0 %v1180
          %1192 = vmatpush.bf16.msra.mxu0 %v1179
          %1193 = vmatpush.bf16.msra.mxu0 %v1178
          %1194 = vmatpush.bf16.msra.mxu0 %v1177
          %1195 = vmatpush.bf16.msra.mxu0 %v1176
          %1196 = vmatpush.bf16.msra.mxu0 %v1175
          %1197 = vmatpush.bf16.msra.mxu0 %v1174
          %1198 = vmatmul.bf16.gmra.mxu0 %v777
          %v1199 = vpop.f32.mrf.mxu0
          %v1200 = vadd.f32 %v1140, %v1199
          %v1201 = vpop.f32.mrf.mxu0
          %v1202 = vadd.f32 %v1140, %v1201
          %1203 = vdwg.mxu0
          %v1204 = vpack.c.bf16 %v1200, %v1200
          %v1205 = vpack.c.bf16 %v1202, %v1202
          %1208 = vrot.lane.b32.xlu0 %v1204, 96
          %v1209 = vpop.permute.xlu0 %1208
          %1210 = vrot.lane.b32.xlu0 %v1205, 96
          %v1211 = vpop.permute.xlu0 %1210
          %1212 = vrot.lane.b32.xlu0 %v1204, 64
          %v1213 = vpop.permute.xlu0 %1212
          %1214 = vrot.lane.b32.xlu0 %v1205, 64
          %v1215 = vpop.permute.xlu0 %1214
          %1216 = vrot.lane.b32.xlu0 %v1204, 32
          %v1217 = vpop.permute.xlu0 %1216
          %1218 = vrot.lane.b32.xlu0 %v1205, 32
          %v1219 = vpop.permute.xlu0 %1218
          %v1222 = vpack.i.b16 %v1209, %v1204
          %v1223 = vshrl.u32 %v1204, 16
          %v1224 = vshrl.u32 %v1209, 16
          %v1225 = vpack.i.b16 %v1224, %v1223
          %v1228 = vpack.i.b16 %v1217, %v1213
          %v1229 = vshrl.u32 %v1213, 16
          %v1230 = vshrl.u32 %v1217, 16
          %v1231 = vpack.i.b16 %v1230, %v1229
          %v1234 = vpack.i.b16 %v1211, %v1205
          %v1235 = vshrl.u32 %v1205, 16
          %v1236 = vshrl.u32 %v1211, 16
          %v1237 = vpack.i.b16 %v1236, %v1235
          %v1240 = vpack.i.b16 %v1219, %v1215
          %v1241 = vshrl.u32 %v1215, 16
          %v1242 = vshrl.u32 %v1219, 16
          %v1243 = vpack.i.b16 %v1242, %v1241
          %v1246 = vunpack.c.l.s4 1983009808
          %v1247 = vunpack.c.0.s8 %v1246
          %v1248 = vperm.slane %v1222, %v1247
          %v1251 = vunpack.c.l.s4 1983009808
          %v1252 = vunpack.c.0.s8 %v1251
          %v1253 = vperm.slane %v1228, %v1252
          %v1254 = vrot.slane %v1253, 4
          %v1255 = vsel %vm911, %v1254, %v1248
          %v1256 = vrot.slane %v1248, 4
          %v1257 = vsel %vm911, %v1253, %v1256
          %v1259 = vunpack.c.l.s4 1934713408
          %v1260 = vunpack.c.0.s8 %v1259
          %v1261 = vperm.slane %v1255, %v1260
          %v1263 = vunpack.c.l.s4 1934713408
          %v1264 = vunpack.c.0.s8 %v1263
          %v1265 = vperm.slane %v1257, %v1264
          %v1266 = vrot.slane %v1261, 4
          %v1267 = vsel %vm911, 0, %v1266
          %v1268 = vrot.slane %v1265, 4
          %v1269 = vsel %vm911, 0, %v1268
          %v1272 = vunpack.c.l.s4 1983009808
          %v1273 = vunpack.c.0.s8 %v1272
          %v1274 = vperm.slane %v1225, %v1273
          %v1277 = vunpack.c.l.s4 1983009808
          %v1278 = vunpack.c.0.s8 %v1277
          %v1279 = vperm.slane %v1231, %v1278
          %v1280 = vrot.slane %v1279, 4
          %v1281 = vsel %vm911, %v1280, %v1274
          %v1282 = vrot.slane %v1274, 4
          %v1283 = vsel %vm911, %v1279, %v1282
          %v1285 = vunpack.c.l.s4 1934713408
          %v1286 = vunpack.c.0.s8 %v1285
          %v1287 = vperm.slane %v1281, %v1286
          %v1289 = vunpack.c.l.s4 1934713408
          %v1290 = vunpack.c.0.s8 %v1289
          %v1291 = vperm.slane %v1283, %v1290
          %v1292 = vrot.slane %v1287, 4
          %v1293 = vsel %vm911, 0, %v1292
          %v1294 = vrot.slane %v1291, 4
          %v1295 = vsel %vm911, 0, %v1294
          %v1298 = vunpack.c.l.s4 1983009808
          %v1299 = vunpack.c.0.s8 %v1298
          %v1300 = vperm.slane %v1234, %v1299
          %v1303 = vunpack.c.l.s4 1983009808
          %v1304 = vunpack.c.0.s8 %v1303
          %v1305 = vperm.slane %v1240, %v1304
          %v1306 = vrot.slane %v1305, 4
          %v1307 = vsel %vm911, %v1306, %v1300
          %v1308 = vrot.slane %v1300, 4
          %v1309 = vsel %vm911, %v1305, %v1308
          %v1311 = vunpack.c.l.s4 1934713408
          %v1312 = vunpack.c.0.s8 %v1311
          %v1313 = vperm.slane %v1307, %v1312
          %v1315 = vunpack.c.l.s4 1934713408
          %v1316 = vunpack.c.0.s8 %v1315
          %v1317 = vperm.slane %v1309, %v1316
          %v1318 = vrot.slane %v1313, 4
          %v1319 = vsel %vm911, 0, %v1318
          %v1320 = vrot.slane %v1317, 4
          %v1321 = vsel %vm911, 0, %v1320
          %v1324 = vunpack.c.l.s4 1983009808
          %v1325 = vunpack.c.0.s8 %v1324
          %v1326 = vperm.slane %v1237, %v1325
          %v1329 = vunpack.c.l.s4 1983009808
          %v1330 = vunpack.c.0.s8 %v1329
          %v1331 = vperm.slane %v1243, %v1330
          %v1332 = vrot.slane %v1331, 4
          %v1333 = vsel %vm911, %v1332, %v1326
          %v1334 = vrot.slane %v1326, 4
          %v1335 = vsel %vm911, %v1331, %v1334
          %v1337 = vunpack.c.l.s4 1934713408
          %v1338 = vunpack.c.0.s8 %v1337
          %v1339 = vperm.slane %v1333, %v1338
          %v1341 = vunpack.c.l.s4 1934713408
          %v1342 = vunpack.c.0.s8 %v1341
          %v1343 = vperm.slane %v1335, %v1342
          %v1344 = vrot.slane %v1339, 4
          %v1345 = vsel %vm911, 0, %v1344
          %v1346 = vrot.slane %v1343, 4
          %v1347 = vsel %vm911, 0, %v1346
          %v1348 = vsel %vm911, %v1268, %v1261
          %v1350 = vunpack.c.l.s4 1983009808
          %v1351 = vunpack.c.0.s8 %v1350
          %v1352 = vperm.slane %v1348, %v1351
          %v1353 = vrot.slane %v1269, 4
          %v1354 = vsel %vm911, %v1353, %v1267
          %v1356 = vunpack.c.l.s4 1983009808
          %v1357 = vunpack.c.0.s8 %v1356
          %v1358 = vperm.slane %v1354, %v1357
          %v1359 = vrot.slane %v1358, 4
          %v1360 = vsel %vm911, %v1359, %v1352
          %v1362 = vunpack.c.l.s4 1934713408
          %v1363 = vunpack.c.0.s8 %v1362
          %v1364 = vperm.slane %v1360, %v1363
          %v1365 = vrot.slane %v1364, 4
          %v1366 = vsel %vm911, 0, %v1365
          %v1367 = vsel %vm911, %v1294, %v1287
          %v1369 = vunpack.c.l.s4 1983009808
          %v1370 = vunpack.c.0.s8 %v1369
          %v1371 = vperm.slane %v1367, %v1370
          %v1372 = vrot.slane %v1295, 4
          %v1373 = vsel %vm911, %v1372, %v1293
          %v1375 = vunpack.c.l.s4 1983009808
          %v1376 = vunpack.c.0.s8 %v1375
          %v1377 = vperm.slane %v1373, %v1376
          %v1378 = vrot.slane %v1377, 4
          %v1379 = vsel %vm911, %v1378, %v1371
          %v1381 = vunpack.c.l.s4 1934713408
          %v1382 = vunpack.c.0.s8 %v1381
          %v1383 = vperm.slane %v1379, %v1382
          %v1384 = vrot.slane %v1383, 4
          %v1385 = vsel %vm911, 0, %v1384
          %v1386 = vsel %vm911, %v1320, %v1313
          %v1388 = vunpack.c.l.s4 1983009808
          %v1389 = vunpack.c.0.s8 %v1388
          %v1390 = vperm.slane %v1386, %v1389
          %v1391 = vrot.slane %v1321, 4
          %v1392 = vsel %vm911, %v1391, %v1319
          %v1394 = vunpack.c.l.s4 1983009808
          %v1395 = vunpack.c.0.s8 %v1394
          %v1396 = vperm.slane %v1392, %v1395
          %v1397 = vrot.slane %v1396, 4
          %v1398 = vsel %vm911, %v1397, %v1390
          %v1400 = vunpack.c.l.s4 1934713408
          %v1401 = vunpack.c.0.s8 %v1400
          %v1402 = vperm.slane %v1398, %v1401
          %v1403 = vrot.slane %v1402, 4
          %v1404 = vsel %vm911, 0, %v1403
          %v1405 = vsel %vm911, %v1346, %v1339
          %v1407 = vunpack.c.l.s4 1983009808
          %v1408 = vunpack.c.0.s8 %v1407
          %v1409 = vperm.slane %v1405, %v1408
          %v1410 = vrot.slane %v1347, 4
          %v1411 = vsel %vm911, %v1410, %v1345
          %v1413 = vunpack.c.l.s4 1983009808
          %v1414 = vunpack.c.0.s8 %v1413
          %v1415 = vperm.slane %v1411, %v1414
          %v1416 = vrot.slane %v1415, 4
          %v1417 = vsel %vm911, %v1416, %v1409
          %v1419 = vunpack.c.l.s4 1934713408
          %v1420 = vunpack.c.0.s8 %v1419
          %v1421 = vperm.slane %v1417, %v1420
          %v1422 = vrot.slane %v1421, 4
          %v1423 = vsel %vm911, 0, %v1422
          %v1426 = vpack.i.b16 %v1383, %v1364
          %v1428 = vshrl.u32 %v1364, 16
          %v1429 = vshrl.u32 %v1383, 16
          %v1430 = vpack.i.b16 %v1429, %v1428
          %v1434 = vpack.i.b16 %v1385, %v1366
          %v1436 = vshrl.u32 %v1366, 16
          %v1437 = vshrl.u32 %v1385, 16
          %v1438 = vpack.i.b16 %v1437, %v1436
          %v1442 = vpack.i.b16 %v1421, %v1402
          %v1444 = vshrl.u32 %v1402, 16
          %v1445 = vshrl.u32 %v1421, 16
          %v1446 = vpack.i.b16 %v1445, %v1444
          %v1450 = vpack.i.b16 %v1423, %v1404
          %v1452 = vshrl.u32 %v1404, 16
          %v1453 = vshrl.u32 %v1423, 16
          %v1454 = vpack.i.b16 %v1453, %v1452
          %1456 = vst.msk [vmem:[#allocation3] sm:$0xf] %vm1113, %v1426
          %1457 = vst.msk [vmem:[#allocation3 + $0x4] sm:$0xf] %vm1113, %v1442
          %1458 = vst.msk [vmem:[#allocation3 + $0x8] sm:$0xf] %vm1113, %v1430
          %1459 = vst.msk [vmem:[#allocation3 + $0xc] sm:$0xf] %vm1113, %v1446
          %1460 = vst.msk [vmem:[#allocation3 + $0x10] sm:$0xf] %vm1113, %v1434
          %1461 = vst.msk [vmem:[#allocation3 + $0x14] sm:$0xf] %vm1113, %v1450
          %1462 = vst.msk [vmem:[#allocation3 + $0x18] sm:$0xf] %vm1113, %v1438
          %1463 = vst.msk [vmem:[#allocation3 + $0x1c] sm:$0xf] %vm1113, %v1454
        $region128: #{tpu_custom_call.1} parent=87 // pred_fallthru
          _
        %s1464 = smul.u32 %s43, 8
        %s1465 = scalar_lea.vmem %s619, %s1464 [#allocation5]
        %v1466 = vld [vmem:[%s1465] sm:$0xff]
        %v1467 = vld [vmem:[#allocation8] sm:$0x1]
        %v1468 = vld [vmem:[%s2] sm:$0x1]
        %1469 = vadd.xlane.f32.xlu0 %v1466
        %v1470 = vpop.xlane.xlu0 %1469
        %v1471 = vrcp.pop 128.0
        %v1472 = vmul.f32 128.0, %v1471
        %v1473 = vsub.f32 1.0, %v1472
        %v1474 = vmul.f32 %v1471, %v1473
        %v1475 = vadd.f32 %v1471, %v1474
        %vm1476 = vweird.f32 %v1471
        %v1477 = vsel %vm1476, %v1471, %v1475
        %v1478 = vmul.f32 %v1470, %v1477
        %v1479 = vsub.f32 %v1466, %v1478
        %v1480 = vmul.f32 %v1479, %v1479
        %1481 = vadd.xlane.f32.xlu0 %v1480
        %v1482 = vpop.xlane.xlu0 %1481
        %v1483 = vmul.f32 %v1482, %v1477
        %v1484 = vadd.f32 %v1483, 1e-06
        %v1485 = vrsqrt.pop %v1484
        %v1486 = vmul.f32 %v1485, %v1484
        %v1487 = vmul.f32 %v1486, %v1485
        %v1488 = vmul.f32 0.5, %v1487
        %v1489 = vsub.f32 1.5, %v1488
        %v1490 = vmul.f32 %v1485, %v1489
        %vm1491 = vweird.f32 %v1484
        %vm1492 = vweird.f32 %v1485
        %vm1493 = vmor %vm1491, %vm1492
        %v1494 = vsel %vm1493, %v1485, %v1490
        %v1495 = vmul.f32 %v1479, %v1494
        %v1497 = vperm.slane %v1467, 0
        %v1499 = vmul.f32 %v1495, %v1497
        %v1501 = vperm.slane %v1468, 0
        %v1503 = vadd.f32 %v1499, %v1501
        %v1504 = vpack.c.bf16 %v1503, %v1503
        %v1505 = vld [vmem:[#allocation10] sm:$0xf]
        %v1506 = vld [vmem:[#allocation10 + $0x4] sm:$0xf]
        %v1507 = vld [vmem:[#allocation10 + $0x8] sm:$0xf]
        %v1508 = vld [vmem:[#allocation10 + $0xc] sm:$0xf]
        %v1509 = vld [vmem:[#allocation10 + $0x10] sm:$0xf]
        %v1510 = vld [vmem:[#allocation10 + $0x14] sm:$0xf]
        %v1511 = vld [vmem:[#allocation10 + $0x18] sm:$0xf]
        %v1512 = vld [vmem:[#allocation10 + $0x1c] sm:$0xf]
        %v1513 = vld [vmem:[#allocation10 + $0x20] sm:$0xf]
        %v1514 = vld [vmem:[#allocation10 + $0x24] sm:$0xf]
        %v1515 = vld [vmem:[#allocation10 + $0x28] sm:$0xf]
        %v1516 = vld [vmem:[#allocation10 + $0x2c] sm:$0xf]
        %v1517 = vld [vmem:[#allocation10 + $0x30] sm:$0xf]
        %v1518 = vld [vmem:[#allocation10 + $0x34] sm:$0xf]
        %v1519 = vld [vmem:[#allocation10 + $0x38] sm:$0xf]
        %v1520 = vld [vmem:[#allocation10 + $0x3c] sm:$0xf]
        %v1521 = vld [vmem:[#allocation11] sm:$0x1]
        %v1523 = vperm.slane %v1521, 0
        %v1541 = vunpack.c.l.b16 %v1505
        %v1542 = vunpack.c.l.b16 %v1506
        %v1543 = vunpack.c.l.b16 %v1507
        %v1544 = vunpack.c.l.b16 %v1508
        %v1545 = vunpack.c.l.b16 %v1509
        %v1546 = vunpack.c.l.b16 %v1510
        %v1547 = vunpack.c.l.b16 %v1511
        %v1548 = vunpack.c.l.b16 %v1512
        %v1549 = vunpack.c.l.b16 %v1513
        %v1550 = vunpack.c.l.b16 %v1514
        %v1551 = vunpack.c.l.b16 %v1515
        %v1552 = vunpack.c.l.b16 %v1516
        %v1553 = vunpack.c.l.b16 %v1517
        %v1554 = vunpack.c.l.b16 %v1518
        %v1555 = vunpack.c.l.b16 %v1519
        %v1556 = vunpack.c.l.b16 %v1520
        %v1557 = vpack.c.b16 %v1542, %v1541
        %v1558 = vpack.c.b16 %v1544, %v1543
        %v1559 = vpack.c.b16 %v1546, %v1545
        %v1560 = vpack.c.b16 %v1548, %v1547
        %v1561 = vpack.c.b16 %v1550, %v1549
        %v1562 = vpack.c.b16 %v1552, %v1551
        %v1563 = vpack.c.b16 %v1554, %v1553
        %v1564 = vpack.c.b16 %v1556, %v1555
        %1573 = vmatpush.bf16.msra.mxu0 %v1564
        %1574 = vmatpush.bf16.msra.mxu0 %v1563
        %1575 = vmatpush.bf16.msra.mxu0 %v1562
        %1576 = vmatpush.bf16.msra.mxu0 %v1561
        %1577 = vmatpush.bf16.msra.mxu0 %v1560
        %1578 = vmatpush.bf16.msra.mxu0 %v1559
        %1579 = vmatpush.bf16.msra.mxu0 %v1558
        %1580 = vmatpush.bf16.msra.mxu0 %v1557
        %1581 = vmatmul.bf16.gmra.mxu0 %v1504
        %v1582 = vpop.f32.mrf.mxu0
        %v1583 = vadd.f32 %v1523, %v1582
        %v1584 = vpop.f32.mrf.mxu0
        %1585 = vdwg.mxu0
        %v1586 = vmul.f32 %v1583, 0.17677669
        %1588 = vrot.lane.b32.xlu0 %v1586, 96
        %v1589 = vpop.permute.xlu0 %1588
        %1591 = vrot.lane.b32.xlu0 %v1586, 64
        %v1592 = vpop.permute.xlu0 %1591
        %1594 = vrot.lane.b32.xlu0 %v1586, 32
        %v1595 = vpop.permute.xlu0 %1594
        %v1597 = vrot.slane %v1592, 4
        %vm1598 = vcmask 1047556
        %v1599 = vsel %vm1598, %v1597, %v1586
        %v1600 = vrot.slane %v1586, 4
        %v1601 = vsel %vm1598, %v1592, %v1600
        %v1603 = vunpack.c.l.s4 1983009808
        %v1604 = vunpack.c.0.s8 %v1603
        %v1605 = vperm.slane %v1599, %v1604
        %v1607 = vunpack.c.l.s4 1983009808
        %v1608 = vunpack.c.0.s8 %v1607
        %v1609 = vperm.slane %v1601, %v1608
        %v1610 = vrot.slane %v1595, 4
        %v1611 = vsel %vm1598, %v1610, %v1589
        %v1612 = vrot.slane %v1589, 4
        %v1613 = vsel %vm1598, %v1595, %v1612
        %v1615 = vunpack.c.l.s4 1983009808
        %v1616 = vunpack.c.0.s8 %v1615
        %v1617 = vperm.slane %v1611, %v1616
        %v1619 = vunpack.c.l.s4 1983009808
        %v1620 = vunpack.c.0.s8 %v1619
        %v1621 = vperm.slane %v1613, %v1620
        %v1622 = vrot.slane %v1617, 4
        %v1623 = vsel %vm1598, %v1622, %v1605
        %v1624 = vrot.slane %v1605, 4
        %v1625 = vsel %vm1598, %v1617, %v1624
        %v1627 = vunpack.c.l.s4 1934713408
        %v1628 = vunpack.c.0.s8 %v1627
        %v1629 = vperm.slane %v1623, %v1628
        %v1631 = vunpack.c.l.s4 1934713408
        %v1632 = vunpack.c.0.s8 %v1631
        %v1633 = vperm.slane %v1625, %v1632
        %v1634 = vrot.slane %v1621, 4
        %v1635 = vsel %vm1598, %v1634, %v1609
        %v1636 = vrot.slane %v1609, 4
        %v1637 = vsel %vm1598, %v1621, %v1636
        %v1639 = vunpack.c.l.s4 1934713408
        %v1640 = vunpack.c.0.s8 %v1639
        %v1641 = vperm.slane %v1635, %v1640
        %v1643 = vunpack.c.l.s4 1934713408
        %v1644 = vunpack.c.0.s8 %v1643
        %v1645 = vperm.slane %v1637, %v1644
        %v1646 = vrot.slane %v1629, 4
        %v1647 = vsel %vm1598, 0.0, %v1646
        %v1648 = vrot.slane %v1633, 4
        %v1649 = vsel %vm1598, 0.0, %v1648
        %v1650 = vrot.slane %v1641, 4
        %v1651 = vsel %vm1598, 0.0, %v1650
        %v1652 = vrot.slane %v1645, 4
        %v1653 = vsel %vm1598, 0.0, %v1652
        %v1654 = vsel %vm1598, %v1648, %v1629
        %v1656 = vunpack.c.l.s4 1983009808
        %v1657 = vunpack.c.0.s8 %v1656
        %v1658 = vperm.slane %v1654, %v1657
        %v1659 = vrot.slane %v1649, 4
        %v1660 = vsel %vm1598, %v1659, %v1647
        %v1662 = vunpack.c.l.s4 1983009808
        %v1663 = vunpack.c.0.s8 %v1662
        %v1664 = vperm.slane %v1660, %v1663
        %v1665 = vsel %vm1598, %v1652, %v1641
        %v1667 = vunpack.c.l.s4 1983009808
        %v1668 = vunpack.c.0.s8 %v1667
        %v1669 = vperm.slane %v1665, %v1668
        %v1670 = vrot.slane %v1653, 4
        %v1671 = vsel %vm1598, %v1670, %v1651
        %v1673 = vunpack.c.l.s4 1983009808
        %v1674 = vunpack.c.0.s8 %v1673
        %v1675 = vperm.slane %v1671, %v1674
        %v1676 = vrot.slane %v1664, 4
        %v1677 = vsel %vm1598, %v1676, %v1658
        %v1678 = vrot.slane %v1658, 4
        %v1679 = vsel %vm1598, %v1664, %v1678
        %v1681 = vunpack.c.l.s4 1934713408
        %v1682 = vunpack.c.0.s8 %v1681
        %v1683 = vperm.slane %v1677, %v1682
        %v1685 = vunpack.c.l.s4 1934713408
        %v1686 = vunpack.c.0.s8 %v1685
        %v1687 = vperm.slane %v1679, %v1686
        %v1688 = vrot.slane %v1675, 4
        %v1689 = vsel %vm1598, %v1688, %v1669
        %v1690 = vrot.slane %v1669, 4
        %v1691 = vsel %vm1598, %v1675, %v1690
        %v1693 = vunpack.c.l.s4 1934713408
        %v1694 = vunpack.c.0.s8 %v1693
        %v1695 = vperm.slane %v1689, %v1694
        %v1697 = vunpack.c.l.s4 1934713408
        %v1698 = vunpack.c.0.s8 %v1697
        %v1699 = vperm.slane %v1691, %v1698
        %v1700 = vrot.slane %v1695, 4
        %v1701 = vsel %vm1598, %v1700, %v1683
        %v1702 = vrot.slane %v1683, 4
        %v1703 = vsel %vm1598, %v1695, %v1702
        %v1704 = vrot.slane %v1699, 4
        %v1705 = vsel %vm1598, %v1704, %v1687
        %v1706 = vrot.slane %v1687, 4
        %v1707 = vsel %vm1598, %v1699, %v1706
        %v1708 = vpack.c.bf16 %v1701, %v1701
        %v1709 = vpack.c.bf16 %v1703, %v1703
        %v1710 = vpack.c.bf16 %v1705, %v1705
        %v1711 = vpack.c.bf16 %v1707, %v1707
        %vm1712 = vcmask 257024
        %1713 = vst.msk [vmem:[#allocation4] sm:$0xf] %vm1712, %v1708
        %1714 = vst.msk [vmem:[#allocation4 + $0x4] sm:$0xf] %vm1712, %v1709
        %1715 = vst.msk [vmem:[#allocation4 + $0x8] sm:$0xf] %vm1712, %v1710
        %1716 = vst.msk [vmem:[#allocation4 + $0xc] sm:$0xf] %vm1712, %v1711
        %v1717 = vld [vmem:[#allocation4] sm:$0xf]
        %v1718 = vld [vmem:[#allocation4 + $0x4] sm:$0xf]
        %v1719 = vld [vmem:[#allocation4 + $0x8] sm:$0xf]
        %v1720 = vld [vmem:[#allocation4 + $0xc] sm:$0xf]
        %v1721 = vld [vmem:[#allocation2] sm:$0xf]
        %v1722 = vld [vmem:[#allocation2 + $0x4] sm:$0xf]
        %v1723 = vld [vmem:[#allocation2 + $0x8] sm:$0xf]
        %v1724 = vld [vmem:[#allocation2 + $0xc] sm:$0xf]
        %v1725 = vld [vmem:[#allocation2 + $0x10] sm:$0xf]
        %v1726 = vld [vmem:[#allocation2 + $0x14] sm:$0xf]
        %v1727 = vld [vmem:[#allocation2 + $0x18] sm:$0xf]
        %v1728 = vld [vmem:[#allocation2 + $0x1c] sm:$0xf]
        %v1729 = vld [vmem:[#allocation3] sm:$0xf]
        %v1730 = vld [vmem:[#allocation3 + $0x4] sm:$0xf]
        %v1731 = vld [vmem:[#allocation3 + $0x8] sm:$0xf]
        %v1732 = vld [vmem:[#allocation3 + $0xc] sm:$0xf]
        %v1733 = vld [vmem:[#allocation3 + $0x10] sm:$0xf]
        %v1734 = vld [vmem:[#allocation3 + $0x14] sm:$0xf]
        %v1735 = vld [vmem:[#allocation3 + $0x18] sm:$0xf]
        %v1736 = vld [vmem:[#allocation3 + $0x1c] sm:$0xf]
        %v1739 = vunpack.c.l.b16 %v1721
        %v1740 = vunpack.c.l.b16 %v1722
        %v1741 = vpack.c.b16 %v1740, %v1739
        %vm1742 = vcmask 261120
        %v1744 = vsel %vm1742, %v1717, 0
        %v1747 = vsel %vm1742, %v1741, 0
        %1749 = vmatpush.bf16.xpose.msra.mxu0 0
        %1750 = vmatpush.bf16.xpose.msra.mxu0 0
        %1751 = vmatpush.bf16.xpose.msra.mxu0 0
        %1752 = vmatpush.bf16.xpose.msra.mxu0 0
        %1753 = vmatpush.bf16.xpose.msra.mxu0 0
        %1754 = vmatpush.bf16.xpose.msra.mxu0 0
        %1755 = vmatpush.bf16.xpose.msra.mxu0 0
        %1756 = vmatpush.bf16.xpose.msra.mxu0 %v1747
        %1757 = vmatmul.bf16.gmra.mxu0 %v1744
        %v1758 = vpop.f32.mrf.mxu0
        %v1759 = vadd.f32 0.0, %v1758
        %v1760 = vpop.f32.mrf.mxu0
        %1761 = vdwg.mxu0
        %v1764 = vunpack.c.l.b16 %v1723
        %v1765 = vunpack.c.l.b16 %v1724
        %v1766 = vpack.c.b16 %v1765, %v1764
        %v1768 = vsel %vm1742, %v1718, 0
        %v1771 = vsel %vm1742, %v1766, 0
        %1773 = vmatpush.bf16.xpose.msra.mxu0 0
        %1774 = vmatpush.bf16.xpose.msra.mxu0 0
        %1775 = vmatpush.bf16.xpose.msra.mxu0 0
        %1776 = vmatpush.bf16.xpose.msra.mxu0 0
        %1777 = vmatpush.bf16.xpose.msra.mxu0 0
        %1778 = vmatpush.bf16.xpose.msra.mxu0 0
        %1779 = vmatpush.bf16.xpose.msra.mxu0 0
        %1780 = vmatpush.bf16.xpose.msra.mxu0 %v1771
        %1781 = vmatmul.bf16.gmra.mxu0 %v1768
        %v1782 = vpop.f32.mrf.mxu0
        %v1783 = vadd.f32 0.0, %v1782
        %v1784 = vpop.f32.mrf.mxu0
        %1785 = vdwg.mxu0
        %v1788 = vunpack.c.l.b16 %v1725
        %v1789 = vunpack.c.l.b16 %v1726
        %v1790 = vpack.c.b16 %v1789, %v1788
        %v1792 = vsel %vm1742, %v1719, 0
        %v1795 = vsel %vm1742, %v1790, 0
        %1797 = vmatpush.bf16.xpose.msra.mxu0 0
        %1798 = vmatpush.bf16.xpose.msra.mxu0 0
        %1799 = vmatpush.bf16.xpose.msra.mxu0 0
        %1800 = vmatpush.bf16.xpose.msra.mxu0 0
        %1801 = vmatpush.bf16.xpose.msra.mxu0 0
        %1802 = vmatpush.bf16.xpose.msra.mxu0 0
        %1803 = vmatpush.bf16.xpose.msra.mxu0 0
        %1804 = vmatpush.bf16.xpose.msra.mxu0 %v1795
        %1805 = vmatmul.bf16.gmra.mxu0 %v1792
        %v1806 = vpop.f32.mrf.mxu0
        %v1807 = vadd.f32 0.0, %v1806
        %v1808 = vpop.f32.mrf.mxu0
        %1809 = vdwg.mxu0
        %v1812 = vunpack.c.l.b16 %v1727
        %v1813 = vunpack.c.l.b16 %v1728
        %v1814 = vpack.c.b16 %v1813, %v1812
        %v1816 = vsel %vm1742, %v1720, 0
        %v1819 = vsel %vm1742, %v1814, 0
        %1821 = vmatpush.bf16.xpose.msra.mxu0 0
        %1822 = vmatpush.bf16.xpose.msra.mxu0 0
        %1823 = vmatpush.bf16.xpose.msra.mxu0 0
        %1824 = vmatpush.bf16.xpose.msra.mxu0 0
        %1825 = vmatpush.bf16.xpose.msra.mxu0 0
        %1826 = vmatpush.bf16.xpose.msra.mxu0 0
        %1827 = vmatpush.bf16.xpose.msra.mxu0 0
        %1828 = vmatpush.bf16.xpose.msra.mxu0 %v1819
        %1829 = vmatmul.bf16.gmra.mxu0 %v1816
        %v1830 = vpop.f32.mrf.mxu0
        %v1831 = vadd.f32 0.0, %v1830
        %v1832 = vpop.f32.mrf.mxu0
        %1833 = vdwg.mxu0
        %vm1834 = vcmask 130048
        %v1835 = vsel %vm1834, %v1759, -inf
        %1836 = vmax.xlane.f32.xlu0 %v1835
        %v1837 = vpop.xlane.xlu0 %1836
        %v1838 = vsel %vm1834, %v1783, -inf
        %1839 = vmax.xlane.f32.xlu0 %v1838
        %v1840 = vpop.xlane.xlu0 %1839
        %v1841 = vsel %vm1834, %v1807, -inf
        %1842 = vmax.xlane.f32.xlu0 %v1841
        %v1843 = vpop.xlane.xlu0 %1842
        %v1844 = vsel %vm1834, %v1831, -inf
        %1845 = vmax.xlane.f32.xlu0 %v1844
        %v1846 = vpop.xlane.xlu0 %1845
        %v1847 = vsub.f32 %v1759, %v1837
        %v1848 = vsub.f32 %v1783, %v1840
        %v1849 = vsub.f32 %v1807, %v1843
        %v1850 = vsub.f32 %v1831, %v1846
        %v1851 = vmul.f32 %v1847, 1.442695
        %v1852 = vpow.pop %v1851
        %v1853 = vmul.f32 %v1848, 1.442695
        %v1854 = vpow.pop %v1853
        %v1855 = vmul.f32 %v1849, 1.442695
        %v1856 = vpow.pop %v1855
        %v1857 = vmul.f32 %v1850, 1.442695
        %v1858 = vpow.pop %v1857
        %v1859 = vsel %vm1834, %v1852, 0.0
        %1860 = vadd.xlane.f32.xlu0 %v1859
        %v1861 = vpop.xlane.xlu0 %1860
        %v1862 = vsel %vm1834, %v1854, 0.0
        %1863 = vadd.xlane.f32.xlu0 %v1862
        %v1864 = vpop.xlane.xlu0 %1863
        %v1865 = vsel %vm1834, %v1856, 0.0
        %1866 = vadd.xlane.f32.xlu0 %v1865
        %v1867 = vpop.xlane.xlu0 %1866
        %v1868 = vsel %vm1834, %v1858, 0.0
        %1869 = vadd.xlane.f32.xlu0 %v1868
        %v1870 = vpop.xlane.xlu0 %1869
        %v1871 = vrcp.pop %v1861
        %v1872 = vrcp.pop %v1864
        %v1873 = vrcp.pop %v1867
        %v1874 = vrcp.pop %v1870
        %v1875 = vmul.f32 %v1852, %v1871
        %v1876 = vmul.f32 %v1854, %v1872
        %v1877 = vmul.f32 %v1856, %v1873
        %v1878 = vmul.f32 %v1858, %v1874
        %v1879 = vpack.c.bf16 %v1875, %v1875
        %v1880 = vpack.c.bf16 %v1876, %v1876
        %v1881 = vpack.c.bf16 %v1877, %v1877
        %v1882 = vpack.c.bf16 %v1878, %v1878
        %v1885 = vunpack.c.l.b16 %v1729
        %v1886 = vunpack.c.l.b16 %v1730
        %v1887 = vpack.c.b16 %v1886, %v1885
        %v1890 = vsel %vm1834, %v1879, 0
        %1892 = vmatpush.bf16.msra.mxu0 0
        %1893 = vmatpush.bf16.msra.mxu0 0
        %1894 = vmatpush.bf16.msra.mxu0 0
        %1895 = vmatpush.bf16.msra.mxu0 0
        %1896 = vmatpush.bf16.msra.mxu0 0
        %1897 = vmatpush.bf16.msra.mxu0 0
        %1898 = vmatpush.bf16.msra.mxu0 0
        %1899 = vmatpush.bf16.msra.mxu0 %v1887
        %1900 = vmatmul.bf16.gmra.mxu0 %v1890
        %v1901 = vpop.f32.mrf.mxu0
        %v1902 = vadd.f32 0.0, %v1901
        %v1903 = vpop.f32.mrf.mxu0
        %1904 = vdwg.mxu0
        %v1907 = vunpack.c.l.b16 %v1731
        %v1908 = vunpack.c.l.b16 %v1732
        %v1909 = vpack.c.b16 %v1908, %v1907
        %v1912 = vsel %vm1834, %v1880, 0
        %1914 = vmatpush.bf16.msra.mxu0 0
        %1915 = vmatpush.bf16.msra.mxu0 0
        %1916 = vmatpush.bf16.msra.mxu0 0
        %1917 = vmatpush.bf16.msra.mxu0 0
        %1918 = vmatpush.bf16.msra.mxu0 0
        %1919 = vmatpush.bf16.msra.mxu0 0
        %1920 = vmatpush.bf16.msra.mxu0 0
        %1921 = vmatpush.bf16.msra.mxu0 %v1909
        %1922 = vmatmul.bf16.gmra.mxu0 %v1912
        %v1923 = vpop.f32.mrf.mxu0
        %v1924 = vadd.f32 0.0, %v1923
        %v1925 = vpop.f32.mrf.mxu0
        %1926 = vdwg.mxu0
        %v1929 = vunpack.c.l.b16 %v1733
        %v1930 = vunpack.c.l.b16 %v1734
        %v1931 = vpack.c.b16 %v1930, %v1929
        %v1934 = vsel %vm1834, %v1881, 0
        %1936 = vmatpush.bf16.msra.mxu0 0
        %1937 = vmatpush.bf16.msra.mxu0 0
        %1938 = vmatpush.bf16.msra.mxu0 0
        %1939 = vmatpush.bf16.msra.mxu0 0
        %1940 = vmatpush.bf16.msra.mxu0 0
        %1941 = vmatpush.bf16.msra.mxu0 0
        %1942 = vmatpush.bf16.msra.mxu0 0
        %1943 = vmatpush.bf16.msra.mxu0 %v1931
        %1944 = vmatmul.bf16.gmra.mxu0 %v1934
        %v1945 = vpop.f32.mrf.mxu0
        %v1946 = vadd.f32 0.0, %v1945
        %v1947 = vpop.f32.mrf.mxu0
        %1948 = vdwg.mxu0
        %v1951 = vunpack.c.l.b16 %v1735
        %v1952 = vunpack.c.l.b16 %v1736
        %v1953 = vpack.c.b16 %v1952, %v1951
        %v1956 = vsel %vm1834, %v1882, 0
        %1958 = vmatpush.bf16.msra.mxu0 0
        %1959 = vmatpush.bf16.msra.mxu0 0
        %1960 = vmatpush.bf16.msra.mxu0 0
        %1961 = vmatpush.bf16.msra.mxu0 0
        %1962 = vmatpush.bf16.msra.mxu0 0
        %1963 = vmatpush.bf16.msra.mxu0 0
        %1964 = vmatpush.bf16.msra.mxu0 0
        %1965 = vmatpush.bf16.msra.mxu0 %v1953
        %1966 = vmatmul.bf16.gmra.mxu0 %v1956
        %v1967 = vpop.f32.mrf.mxu0
        %v1968 = vadd.f32 0.0, %v1967
        %v1969 = vpop.f32.mrf.mxu0
        %1970 = vdwg.mxu0
        %v1971 = vpack.c.bf16 %v1902, %v1902
        %v1972 = vpack.c.bf16 %v1924, %v1924
        %v1973 = vpack.c.bf16 %v1946, %v1946
        %v1974 = vpack.c.bf16 %v1968, %v1968
        %v1977 = vpack.i.b16 %v1972, %v1971
        %v1978 = vshrl.u32 %v1971, 16
        %v1979 = vshrl.u32 %v1972, 16
        %v1980 = vpack.i.b16 %v1979, %v1978
        %v1983 = vpack.i.b16 %v1974, %v1973
        %v1984 = vshrl.u32 %v1973, 16
        %v1985 = vshrl.u32 %v1974, 16
        %v1986 = vpack.i.b16 %v1985, %v1984
        %v1989 = vunpack.c.l.s4 1983009808
        %v1990 = vunpack.c.0.s8 %v1989
        %v1991 = vperm.slane %v1977, %v1990
        %v1994 = vunpack.c.l.s4 1983009808
        %v1995 = vunpack.c.0.s8 %v1994
        %v1996 = vperm.slane %v1983, %v1995
        %v1997 = vrot.slane %v1996, 4
        %vm1998 = vcmask 1047556
        %v1999 = vsel %vm1998, %v1997, %v1991
        %v2000 = vrot.slane %v1991, 4
        %v2001 = vsel %vm1998, %v1996, %v2000
        %v2003 = vunpack.c.l.s4 1934713408
        %v2004 = vunpack.c.0.s8 %v2003
        %v2005 = vperm.slane %v1999, %v2004
        %v2007 = vunpack.c.l.s4 1934713408
        %v2008 = vunpack.c.0.s8 %v2007
        %v2009 = vperm.slane %v2001, %v2008
        %v2010 = vrot.slane %v2005, 4
        %v2011 = vsel %vm1998, 0, %v2010
        %v2012 = vrot.slane %v2009, 4
        %v2013 = vsel %vm1998, 0, %v2012
        %v2016 = vunpack.c.l.s4 1983009808
        %v2017 = vunpack.c.0.s8 %v2016
        %v2018 = vperm.slane %v1980, %v2017
        %v2021 = vunpack.c.l.s4 1983009808
        %v2022 = vunpack.c.0.s8 %v2021
        %v2023 = vperm.slane %v1986, %v2022
        %v2024 = vrot.slane %v2023, 4
        %v2025 = vsel %vm1998, %v2024, %v2018
        %v2026 = vrot.slane %v2018, 4
        %v2027 = vsel %vm1998, %v2023, %v2026
        %v2029 = vunpack.c.l.s4 1934713408
        %v2030 = vunpack.c.0.s8 %v2029
        %v2031 = vperm.slane %v2025, %v2030
        %v2033 = vunpack.c.l.s4 1934713408
        %v2034 = vunpack.c.0.s8 %v2033
        %v2035 = vperm.slane %v2027, %v2034
        %v2036 = vrot.slane %v2031, 4
        %v2037 = vsel %vm1998, 0, %v2036
        %v2038 = vrot.slane %v2035, 4
        %v2039 = vsel %vm1998, 0, %v2038
        %v2040 = vsel %vm1998, %v2012, %v2005
        %v2042 = vunpack.c.l.s4 1983009808
        %v2043 = vunpack.c.0.s8 %v2042
        %v2044 = vperm.slane %v2040, %v2043
        %v2045 = vrot.slane %v2013, 4
        %v2046 = vsel %vm1998, %v2045, %v2011
        %v2048 = vunpack.c.l.s4 1983009808
        %v2049 = vunpack.c.0.s8 %v2048
        %v2050 = vperm.slane %v2046, %v2049
        %v2051 = vrot.slane %v2050, 4
        %v2052 = vsel %vm1998, %v2051, %v2044
        %v2054 = vunpack.c.l.s4 1934713408
        %v2055 = vunpack.c.0.s8 %v2054
        %v2056 = vperm.slane %v2052, %v2055
        %v2057 = vrot.slane %v2056, 4
        %v2058 = vsel %vm1998, 0, %v2057
        %v2059 = vsel %vm1998, %v2038, %v2031
        %v2061 = vunpack.c.l.s4 1983009808
        %v2062 = vunpack.c.0.s8 %v2061
        %v2063 = vperm.slane %v2059, %v2062
        %v2064 = vrot.slane %v2039, 4
        %v2065 = vsel %vm1998, %v2064, %v2037
        %v2067 = vunpack.c.l.s4 1983009808
        %v2068 = vunpack.c.0.s8 %v2067
        %v2069 = vperm.slane %v2065, %v2068
        %v2070 = vrot.slane %v2069, 4
        %v2071 = vsel %vm1998, %v2070, %v2063
        %v2073 = vunpack.c.l.s4 1934713408
        %v2074 = vunpack.c.0.s8 %v2073
        %v2075 = vperm.slane %v2071, %v2074
        %v2076 = vrot.slane %v2075, 4
        %v2077 = vsel %vm1998, 0, %v2076
        %v2080 = vpack.i.b16 %v2075, %v2056
        %v2081 = vshrl.u32 %v2056, 16
        %v2082 = vshrl.u32 %v2075, 16
        %v2083 = vpack.i.b16 %v2082, %v2081
        %v2086 = vpack.i.b16 %v2077, %v2058
        %v2087 = vshrl.u32 %v2058, 16
        %v2088 = vshrl.u32 %v2077, 16
        %v2089 = vpack.i.b16 %v2088, %v2087
        %v2090 = vunpack.c.l.b16 %v2083
        %v2091 = vpack.c.b16 %v2090, %v2090
        %2092 = vrot.lane.b32.xlu0 %v2091, 32
        %v2093 = vpop.permute.xlu0 %2092
        %v2094 = vunpack.c.l.b16 %v2086
        %v2095 = vpack.c.b16 %v2094, %v2094
        %2096 = vrot.lane.b32.xlu0 %v2095, 64
        %v2097 = vpop.permute.xlu0 %2096
        %v2098 = vunpack.c.l.b16 %v2089
        %v2099 = vpack.c.b16 %v2098, %v2098
        %2100 = vrot.lane.b32.xlu0 %v2099, 96
        %v2101 = vpop.permute.xlu0 %2100
        %v2104 = vsel %vm1742, %v2080, %v2093
        %vm2105 = vcmask 523264
        %v2107 = vsel %vm2105, %v2104, %v2097
        %vm2108 = vcmask 785408
        %v2110 = vsel %vm2108, %v2107, %v2101
        %v2112 = vld [vmem:[#allocation16] sm:$0xf]
        %v2113 = vld [vmem:[#allocation16 + $0x4] sm:$0xf]
        %v2114 = vld [vmem:[#allocation16 + $0x8] sm:$0xf]
        %v2115 = vld [vmem:[#allocation16 + $0xc] sm:$0xf]
        %v2116 = vld [vmem:[#allocation16 + $0x10] sm:$0xf]
        %v2117 = vld [vmem:[#allocation16 + $0x14] sm:$0xf]
        %v2118 = vld [vmem:[#allocation16 + $0x18] sm:$0xf]
        %v2119 = vld [vmem:[#allocation16 + $0x1c] sm:$0xf]
        %v2120 = vld [vmem:[#allocation16 + $0x20] sm:$0xf]
        %v2121 = vld [vmem:[#allocation16 + $0x24] sm:$0xf]
        %v2122 = vld [vmem:[#allocation16 + $0x28] sm:$0xf]
        %v2123 = vld [vmem:[#allocation16 + $0x2c] sm:$0xf]
        %v2124 = vld [vmem:[#allocation16 + $0x30] sm:$0xf]
        %v2125 = vld [vmem:[#allocation16 + $0x34] sm:$0xf]
        %v2126 = vld [vmem:[#allocation16 + $0x38] sm:$0xf]
        %v2127 = vld [vmem:[#allocation16 + $0x3c] sm:$0xf]
        %v2144 = vunpack.c.l.b16 %v2112
        %v2145 = vunpack.c.l.b16 %v2113
        %v2146 = vunpack.c.l.b16 %v2114
        %v2147 = vunpack.c.l.b16 %v2115
        %v2148 = vunpack.c.l.b16 %v2116
        %v2149 = vunpack.c.l.b16 %v2117
        %v2150 = vunpack.c.l.b16 %v2118
        %v2151 = vunpack.c.l.b16 %v2119
        %v2152 = vunpack.c.l.b16 %v2120
        %v2153 = vunpack.c.l.b16 %v2121
        %v2154 = vunpack.c.l.b16 %v2122
        %v2155 = vunpack.c.l.b16 %v2123
        %v2156 = vunpack.c.l.b16 %v2124
        %v2157 = vunpack.c.l.b16 %v2125
        %v2158 = vunpack.c.l.b16 %v2126
        %v2159 = vunpack.c.l.b16 %v2127
        %v2160 = vpack.c.b16 %v2145, %v2144
        %v2161 = vpack.c.b16 %v2147, %v2146
        %v2162 = vpack.c.b16 %v2149, %v2148
        %v2163 = vpack.c.b16 %v2151, %v2150
        %v2164 = vpack.c.b16 %v2153, %v2152
        %v2165 = vpack.c.b16 %v2155, %v2154
        %v2166 = vpack.c.b16 %v2157, %v2156
        %v2167 = vpack.c.b16 %v2159, %v2158
        %2176 = vmatpush.bf16.msra.mxu0 %v2167
        %2177 = vmatpush.bf16.msra.mxu0 %v2166
        %2178 = vmatpush.bf16.msra.mxu0 %v2165
        %2179 = vmatpush.bf16.msra.mxu0 %v2164
        %2180 = vmatpush.bf16.msra.mxu0 %v2163
        %2181 = vmatpush.bf16.msra.mxu0 %v2162
        %2182 = vmatpush.bf16.msra.mxu0 %v2161
        %2183 = vmatpush.bf16.msra.mxu0 %v2160
        %2184 = vmatmul.bf16.gmra.mxu0 %v2110
        %v2185 = vpop.f32.mrf.mxu0
        %v2186 = vadd.f32 0.0, %v2185
        %v2187 = vpop.f32.mrf.mxu0
        %2188 = vdwg.mxu0
        %v2189 = vadd.f32 %v1466, %v2186
        %v2190 = vld [vmem:[%s10] sm:$0x1]
        %v2192 = vperm.slane %v2190, 0
        %v2194 = vadd.f32 %v2189, %v2192
        %v2195 = vld [vmem:[%s11] sm:$0x1]
        %v2196 = vld [vmem:[%s12] sm:$0x1]
        %2197 = vadd.xlane.f32.xlu0 %v2194
        %v2198 = vpop.xlane.xlu0 %2197
        %v2199 = vmul.f32 %v2198, %v1477
        %v2200 = vsub.f32 %v2194, %v2199
        %v2201 = vmul.f32 %v2200, %v2200
        %2202 = vadd.xlane.f32.xlu0 %v2201
        %v2203 = vpop.xlane.xlu0 %2202
        %v2204 = vmul.f32 %v2203, %v1477
        %v2205 = vadd.f32 %v2204, 1e-06
        %v2206 = vrsqrt.pop %v2205
        %v2207 = vmul.f32 %v2206, %v2205
        %v2208 = vmul.f32 %v2207, %v2206
        %v2209 = vmul.f32 0.5, %v2208
        %v2210 = vsub.f32 1.5, %v2209
        %v2211 = vmul.f32 %v2206, %v2210
        %vm2212 = vweird.f32 %v2205
        %vm2213 = vweird.f32 %v2206
        %vm2214 = vmor %vm2212, %vm2213
        %v2215 = vsel %vm2214, %v2206, %v2211
        %v2216 = vmul.f32 %v2200, %v2215
        %v2218 = vperm.slane %v2195, 0
        %v2220 = vmul.f32 %v2216, %v2218
        %v2222 = vperm.slane %v2196, 0
        %v2224 = vadd.f32 %v2220, %v2222
        %v2225 = vpack.c.bf16 %v2224, %v2224
        %v2226 = vld [vmem:[#allocation17] sm:$0xff]
        %v2227 = vld [vmem:[#allocation17 + $0x8] sm:$0xff]
        %v2228 = vld [vmem:[#allocation17 + $0x10] sm:$0xff]
        %v2229 = vld [vmem:[#allocation17 + $0x18] sm:$0xff]
        %v2230 = vld [vmem:[#allocation17 + $0x20] sm:$0xff]
        %v2231 = vld [vmem:[#allocation17 + $0x28] sm:$0xff]
        %v2232 = vld [vmem:[#allocation17 + $0x30] sm:$0xff]
        %v2233 = vld [vmem:[#allocation17 + $0x38] sm:$0xff]
        %v2234 = vld [vmem:[#allocation17 + $0x40] sm:$0xff]
        %v2235 = vld [vmem:[#allocation17 + $0x48] sm:$0xff]
        %v2236 = vld [vmem:[#allocation17 + $0x50] sm:$0xff]
        %v2237 = vld [vmem:[#allocation17 + $0x58] sm:$0xff]
        %v2238 = vld [vmem:[#allocation17 + $0x60] sm:$0xff]
        %v2239 = vld [vmem:[#allocation17 + $0x68] sm:$0xff]
        %v2240 = vld [vmem:[#allocation17 + $0x70] sm:$0xff]
        %v2241 = vld [vmem:[#allocation17 + $0x78] sm:$0xff]
        %v2242 = vld [vmem:[%s14] sm:$0x3]
        %v2244 = vperm.slane %v2242, 0
        %v2245 = vperm.slane %v2242, 1
        %v2264 = vunpack.c.l.b16 %v2226
        %v2265 = vunpack.c.h.b16 %v2226
        %v2266 = vunpack.c.l.b16 %v2227
        %v2267 = vunpack.c.h.b16 %v2227
        %v2268 = vunpack.c.l.b16 %v2228
        %v2269 = vunpack.c.h.b16 %v2228
        %v2270 = vunpack.c.l.b16 %v2229
        %v2271 = vunpack.c.h.b16 %v2229
        %v2272 = vunpack.c.l.b16 %v2230
        %v2273 = vunpack.c.h.b16 %v2230
        %v2274 = vunpack.c.l.b16 %v2231
        %v2275 = vunpack.c.h.b16 %v2231
        %v2276 = vunpack.c.l.b16 %v2232
        %v2277 = vunpack.c.h.b16 %v2232
        %v2278 = vunpack.c.l.b16 %v2233
        %v2279 = vunpack.c.h.b16 %v2233
        %v2280 = vunpack.c.l.b16 %v2234
        %v2281 = vunpack.c.h.b16 %v2234
        %v2282 = vunpack.c.l.b16 %v2235
        %v2283 = vunpack.c.h.b16 %v2235
        %v2284 = vunpack.c.l.b16 %v2236
        %v2285 = vunpack.c.h.b16 %v2236
        %v2286 = vunpack.c.l.b16 %v2237
        %v2287 = vunpack.c.h.b16 %v2237
        %v2288 = vunpack.c.l.b16 %v2238
        %v2289 = vunpack.c.h.b16 %v2238
        %v2290 = vunpack.c.l.b16 %v2239
        %v2291 = vunpack.c.h.b16 %v2239
        %v2292 = vunpack.c.l.b16 %v2240
        %v2293 = vunpack.c.h.b16 %v2240
        %v2294 = vunpack.c.l.b16 %v2241
        %v2295 = vunpack.c.h.b16 %v2241
        %v2296 = vpack.c.b16 %v2266, %v2264
        %v2297 = vpack.c.b16 %v2267, %v2265
        %v2298 = vpack.c.b16 %v2270, %v2268
        %v2299 = vpack.c.b16 %v2271, %v2269
        %v2300 = vpack.c.b16 %v2274, %v2272
        %v2301 = vpack.c.b16 %v2275, %v2273
        %v2302 = vpack.c.b16 %v2278, %v2276
        %v2303 = vpack.c.b16 %v2279, %v2277
        %v2304 = vpack.c.b16 %v2282, %v2280
        %v2305 = vpack.c.b16 %v2283, %v2281
        %v2306 = vpack.c.b16 %v2286, %v2284
        %v2307 = vpack.c.b16 %v2287, %v2285
        %v2308 = vpack.c.b16 %v2290, %v2288
        %v2309 = vpack.c.b16 %v2291, %v2289
        %v2310 = vpack.c.b16 %v2294, %v2292
        %v2311 = vpack.c.b16 %v2295, %v2293
        %2328 = vmatpush.bf16.msra.mxu0 %v2310
        %2329 = vmatpush.bf16.msra.mxu0 %v2308
        %2330 = vmatpush.bf16.msra.mxu0 %v2306
        %2331 = vmatpush.bf16.msra.mxu0 %v2304
        %2332 = vmatpush.bf16.msra.mxu0 %v2302
        %2333 = vmatpush.bf16.msra.mxu0 %v2300
        %2334 = vmatpush.bf16.msra.mxu0 %v2298
        %2335 = vmatpush.bf16.msra.mxu0 %v2296
        %2336 = vmatmul.bf16.gmra.mxu0 %v2225
        %v2337 = vpop.f32.mrf.mxu0
        %v2338 = vadd.f32 %v2244, %v2337
        %v2339 = vpop.f32.mrf.mxu0
        %2340 = vdwg.mxu0
        %2341 = vmatpush.bf16.msra.mxu0 %v2311
        %2342 = vmatpush.bf16.msra.mxu0 %v2309
        %2343 = vmatpush.bf16.msra.mxu0 %v2307
        %2344 = vmatpush.bf16.msra.mxu0 %v2305
        %2345 = vmatpush.bf16.msra.mxu0 %v2303
        %2346 = vmatpush.bf16.msra.mxu0 %v2301
        %2347 = vmatpush.bf16.msra.mxu0 %v2299
        %2348 = vmatpush.bf16.msra.mxu0 %v2297
        %2349 = vmatmul.bf16.gmra.mxu0 %v2225
        %v2350 = vpop.f32.mrf.mxu0
        %v2351 = vadd.f32 %v2245, %v2350
        %v2352 = vpop.f32.mrf.mxu0
        %2353 = vdwg.mxu0
        %v2354 = vmul.f32 %v2338, 0.5
        %v2355 = vmul.f32 %v2351, 0.5
        %v2356 = vmul.f32 %v2338, 0.044715
        %v2357 = vmul.f32 %v2351, 0.044715
        %v2358 = vmul.f32 %v2356, %v2338
        %v2359 = vmul.f32 %v2357, %v2351
        %v2360 = vmul.f32 %v2358, %v2338
        %v2361 = vmul.f32 %v2359, %v2351
        %v2362 = vadd.f32 %v2338, %v2360
        %v2363 = vadd.f32 %v2351, %v2361
        %v2364 = vmul.f32 %v2362, 0.7978846
        %v2365 = vmul.f32 %v2363, 0.7978846
        %v2366 = vtanh.pop %v2364
        %v2367 = vtanh.pop %v2365
        %v2368 = vadd.f32 %v2366, 1.0
        %v2369 = vadd.f32 %v2367, 1.0
        %v2370 = vmul.f32 %v2354, %v2368
        %v2371 = vmul.f32 %v2355, %v2369
        %v2372 = vpack.c.bf16 %v2370, %v2370
        %v2373 = vpack.c.bf16 %v2371, %v2371
        %v2374 = vld [vmem:[#allocation19] sm:$0xf]
        %v2375 = vld [vmem:[#allocation19 + $0x4] sm:$0xf]
        %v2376 = vld [vmem:[#allocation19 + $0x8] sm:$0xf]
        %v2377 = vld [vmem:[#allocation19 + $0xc] sm:$0xf]
        %v2378 = vld [vmem:[#allocation19 + $0x10] sm:$0xf]
        %v2379 = vld [vmem:[#allocation19 + $0x14] sm:$0xf]
        %v2380 = vld [vmem:[#allocation19 + $0x18] sm:$0xf]
        %v2381 = vld [vmem:[#allocation19 + $0x1c] sm:$0xf]
        %v2382 = vld [vmem:[#allocation19 + $0x20] sm:$0xf]
        %v2383 = vld [vmem:[#allocation19 + $0x24] sm:$0xf]
        %v2384 = vld [vmem:[#allocation19 + $0x28] sm:$0xf]
        %v2385 = vld [vmem:[#allocation19 + $0x2c] sm:$0xf]
        %v2386 = vld [vmem:[#allocation19 + $0x30] sm:$0xf]
        %v2387 = vld [vmem:[#allocation19 + $0x34] sm:$0xf]
        %v2388 = vld [vmem:[#allocation19 + $0x38] sm:$0xf]
        %v2389 = vld [vmem:[#allocation19 + $0x3c] sm:$0xf]
        %v2390 = vld [vmem:[#allocation19 + $0x40] sm:$0xf]
        %v2391 = vld [vmem:[#allocation19 + $0x44] sm:$0xf]
        %v2392 = vld [vmem:[#allocation19 + $0x48] sm:$0xf]
        %v2393 = vld [vmem:[#allocation19 + $0x4c] sm:$0xf]
        %v2394 = vld [vmem:[#allocation19 + $0x50] sm:$0xf]
        %v2395 = vld [vmem:[#allocation19 + $0x54] sm:$0xf]
        %v2396 = vld [vmem:[#allocation19 + $0x58] sm:$0xf]
        %v2397 = vld [vmem:[#allocation19 + $0x5c] sm:$0xf]
        %v2398 = vld [vmem:[#allocation19 + $0x60] sm:$0xf]
        %v2399 = vld [vmem:[#allocation19 + $0x64] sm:$0xf]
        %v2400 = vld [vmem:[#allocation19 + $0x68] sm:$0xf]
        %v2401 = vld [vmem:[#allocation19 + $0x6c] sm:$0xf]
        %v2402 = vld [vmem:[#allocation19 + $0x70] sm:$0xf]
        %v2403 = vld [vmem:[#allocation19 + $0x74] sm:$0xf]
        %v2404 = vld [vmem:[#allocation19 + $0x78] sm:$0xf]
        %v2405 = vld [vmem:[#allocation19 + $0x7c] sm:$0xf]
        %v2406 = vld [vmem:[%s16] sm:$0x1]
        %v2408 = vperm.slane %v2406, 0
        %v2442 = vunpack.c.l.b16 %v2374
        %v2443 = vunpack.c.l.b16 %v2375
        %v2444 = vunpack.c.l.b16 %v2376
        %v2445 = vunpack.c.l.b16 %v2377
        %v2446 = vunpack.c.l.b16 %v2378
        %v2447 = vunpack.c.l.b16 %v2379
        %v2448 = vunpack.c.l.b16 %v2380
        %v2449 = vunpack.c.l.b16 %v2381
        %v2450 = vunpack.c.l.b16 %v2382
        %v2451 = vunpack.c.l.b16 %v2383
        %v2452 = vunpack.c.l.b16 %v2384
        %v2453 = vunpack.c.l.b16 %v2385
        %v2454 = vunpack.c.l.b16 %v2386
        %v2455 = vunpack.c.l.b16 %v2387
        %v2456 = vunpack.c.l.b16 %v2388
        %v2457 = vunpack.c.l.b16 %v2389
        %v2458 = vunpack.c.l.b16 %v2390
        %v2459 = vunpack.c.l.b16 %v2391
        %v2460 = vunpack.c.l.b16 %v2392
        %v2461 = vunpack.c.l.b16 %v2393
        %v2462 = vunpack.c.l.b16 %v2394
        %v2463 = vunpack.c.l.b16 %v2395
        %v2464 = vunpack.c.l.b16 %v2396
        %v2465 = vunpack.c.l.b16 %v2397
        %v2466 = vunpack.c.l.b16 %v2398
        %v2467 = vunpack.c.l.b16 %v2399
        %v2468 = vunpack.c.l.b16 %v2400
        %v2469 = vunpack.c.l.b16 %v2401
        %v2470 = vunpack.c.l.b16 %v2402
        %v2471 = vunpack.c.l.b16 %v2403
        %v2472 = vunpack.c.l.b16 %v2404
        %v2473 = vunpack.c.l.b16 %v2405
        %v2474 = vpack.c.b16 %v2443, %v2442
        %v2475 = vpack.c.b16 %v2445, %v2444
        %v2476 = vpack.c.b16 %v2447, %v2446
        %v2477 = vpack.c.b16 %v2449, %v2448
        %v2478 = vpack.c.b16 %v2451, %v2450
        %v2479 = vpack.c.b16 %v2453, %v2452
        %v2480 = vpack.c.b16 %v2455, %v2454
        %v2481 = vpack.c.b16 %v2457, %v2456
        %v2482 = vpack.c.b16 %v2459, %v2458
        %v2483 = vpack.c.b16 %v2461, %v2460
        %v2484 = vpack.c.b16 %v2463, %v2462
        %v2485 = vpack.c.b16 %v2465, %v2464
        %v2486 = vpack.c.b16 %v2467, %v2466
        %v2487 = vpack.c.b16 %v2469, %v2468
        %v2488 = vpack.c.b16 %v2471, %v2470
        %v2489 = vpack.c.b16 %v2473, %v2472
        %2506 = vmatpush.bf16.msra.mxu0 %v2481
        %2507 = vmatpush.bf16.msra.mxu0 %v2480
        %2508 = vmatpush.bf16.msra.mxu0 %v2479
        %2509 = vmatpush.bf16.msra.mxu0 %v2478
        %2510 = vmatpush.bf16.msra.mxu0 %v2477
        %2511 = vmatpush.bf16.msra.mxu0 %v2476
        %2512 = vmatpush.bf16.msra.mxu0 %v2475
        %2513 = vmatpush.bf16.msra.mxu0 %v2474
        %2514 = vmatmul.bf16.gmra.mxu0 %v2372
        %v2515 = vpop.f32.mrf.mxu0
        %v2516 = vadd.f32 %v2408, %v2515
        %v2517 = vpop.f32.mrf.mxu0
        %2518 = vdwg.mxu0
        %2519 = vmatpush.bf16.msra.mxu0 %v2489
        %2520 = vmatpush.bf16.msra.mxu0 %v2488
        %2521 = vmatpush.bf16.msra.mxu0 %v2487
        %2522 = vmatpush.bf16.msra.mxu0 %v2486
        %2523 = vmatpush.bf16.msra.mxu0 %v2485
        %2524 = vmatpush.bf16.msra.mxu0 %v2484
        %2525 = vmatpush.bf16.msra.mxu0 %v2483
        %2526 = vmatpush.bf16.msra.mxu0 %v2482
        %2527 = vmatmul.bf16.gmra.mxu0 %v2373
        %v2528 = vpop.f32.mrf.mxu0
        %v2529 = vadd.f32 %v2516, %v2528
        %v2530 = vpop.f32.mrf.mxu0
        %2531 = vdwg.mxu0
        %v2532 = vadd.f32 %v2194, %v2529
        %2533 = vst [vmem:[%s710] sm:$0xff] %v2532
        %s2534 = sand.u32 %s422, 1
        %s2535 = scalar_lea.sflag [#allocation7], %s2534
        %s2536 = sand.u32 %s422, 1
        %s2537 = smul.addr %s2536, 8
        %s2538 = scalar_lea.vmem [#allocation20], %s2537
        // Predicated region
        $region129: #{tpu_custom_call.1} parent=87 // pred_check
          %p2539 = pneg %p432
        $region130: #{tpu_custom_call.1} parent=87 // pred_check_branch
          %2541 = sbr.rel (%p2539) target = $region132
        $region131: #{tpu_custom_call.1} parent=87 // pred_region
          %2543 = vsyncadd %s2535, 0
          %s2544 = smul.addr %s42, 2
          %s2545 = sadd.s32 %s43, %s2544
          %s2546 = smul.addr %s2545, 8
          %s2547 = scalar_lea.hbm %s17, %s2546
          %s2549 = sshll.u32 %s2538, 4
          %s2550 = int_to_ptr.vmem [resolvable:$true] %s2549
          %s2551 = sshll.u32 %s2547, 4
          %s2552 = int_to_ptr.hbm [resolvable:$true] %s2551
          %2554 = dma.vmem_to_hbm [thread:$0]  %s2550, 128, %s2552, %s2535
        $region132: #{tpu_custom_call.1} parent=87 // pred_fallthru
          _
      $region88: #{tpu_custom_call.1} parent=5 // pred_fallthru
        _
      %p2555 = scmp.le.s32.totalorder 2, %s33
      // Predicated region
      $region133: #{tpu_custom_call.1} parent=5 // pred_check
        %p2556 = pneg %p2555
      $region134: #{tpu_custom_call.1} parent=5 // pred_check_branch
        %2558 = sbr.rel (%p2556) target = $region136
      $region135: #{tpu_custom_call.1} parent=5 // pred_region
        %s2559 = ssub.s32 %s33, 2
        // Predicated region
        $region137: #{tpu_custom_call.1} parent=135 // pred_check
          %p2560 = pneg %p438
        $region138: #{tpu_custom_call.1} parent=135 // pred_check_branch
          %2562 = sbr.rel (%p2560) target = $region140
        $region139: #{tpu_custom_call.1} parent=135 // pred_region
          %s2563 = sand.u32 %s423, 1
          %s2564 = scalar_lea.sflag [#allocation7], %s2563
          %s2565 = sand.u32 %s423, 1
          %s2566 = smul.addr %s2565, 8
          %s2567 = scalar_lea.vmem [#allocation20], %s2566
          %2569 = dma.done %s2564, 128
        $region140: #{tpu_custom_call.1} parent=135 // pred_fallthru
          _
      $region136: #{tpu_custom_call.1} parent=5 // pred_fallthru
        _
    $region6: #{tpu_custom_call.1} parent=1 // loop_footer
      %s37 = sadd.s32 1, %s33
    $region7: #{tpu_custom_call.1} parent=1 // loop_footer_branch
      %32 = sbr.rel target = $region3
    $region8: #{tpu_custom_call.1} parent=1 // loop_exit
      _
    %2570 = vsyncpa [#allocation6], 1
    %s2571 = scalar_lea.sflag [#allocation6], 1
    %2572 = vsyncpa %s2571, 1
    %2573 = vsyncpa [#allocation9], 1
    %2574 = vsyncpa [#allocation12], 1
    %2575 = vsyncpa [#allocation15], 1
    %2576 = vsyncpa [#allocation18], 1
    %2577 = vsyncpa [#allocation7], 1
    %s2578 = scalar_lea.sflag [#allocation7], 1
    %2579 = vsyncpa %s2578, 1

</llo_original>
